<compile_context>
chip_gen: v5e
topology: v5e:2x2
jax: 0.10.0
libtpu: 0.0.40
codegen_flags: <defaults>
</compile_context>

<pallas_src>
import functools

import jax
import jax.numpy as jnp
from jax.experimental import pallas as pl
from jax.experimental.pallas import tpu as pltpu

LANE = 128
EPS = 1e-5
FUSED_VMEM_BUDGET = 40 << 20   # stay well under v7x's 64 MiB physical VMEM


def _round_up(x, m):
    return (x + m - 1) // m * m


def _nbytes(*arrays):
    return sum(int(a.size) * a.dtype.itemsize for a in arrays)


def _cp(resident_bytes, dims=None):
    # Explicit scoped-VMEM budget (v5e default is only 16 MiB, v6e/v7x 32 MiB).
    limit = int(min(64 << 20, max(32 << 20, 2 * resident_bytes)))
    return pltpu.CompilerParams(vmem_limit_bytes=limit,
                                dimension_semantics=dims)


# ---------------------------------------------------------------------------
# In-kernel building blocks
# ---------------------------------------------------------------------------
def _class_select(tbl_ref, labels, num_classes):
    """Per-class row lookup as an unrolled VPU select chain (no MXU dots).

    tbl_ref: (num_classes, out) f32, labels: (B, 1) int32  ->  (B, out) f32.
    """
    sel = tbl_ref[pl.ds(0, 1), :]                            # (1, out)
    for c in range(1, num_classes):
        sel = jnp.where(labels == c, tbl_ref[pl.ds(c, 1), :], sel)
    return sel


def _hidden_stack(x, labels, param_refs, num_hidden, num_classes):
    """Hidden blocks: Linear -> CBN (train-mode batch stats) -> ReLU.

    Hidden Linear bias dropped (cancelled exactly by the BN mean subtraction
    in training mode). Activations stay bf16 between layers; all BN/affine
    math in f32.
    """
    for i in range(num_hidden):
        w_ref = param_refs[3 * i]
        gamma_ref = param_refs[3 * i + 1]
        beta_ref = param_refs[3 * i + 2]

        h = jnp.dot(x, w_ref[...], preferred_element_type=jnp.float32)

        # Fused CBN epilogue: var = E[h^2] - mean^2, then one scale*h + shift
        # pass (no live diff / h_norm intermediates).
        m = jnp.mean(h, axis=0, keepdims=True)
        var = jnp.maximum(jnp.mean(h * h, axis=0, keepdims=True) - m * m, 0.0)
        inv = jax.lax.rsqrt(var + EPS)

        gamma = _class_select(gamma_ref, labels, num_classes)
        beta = _class_select(beta_ref, labels, num_classes)
        scale = gamma * inv
        shift = beta - scale * m

        x = jnp.maximum(scale * h + shift, 0.0).astype(jnp.bfloat16)
    return x


def _lsn(y, library_size):
    """LSN with EUP approx reciprocal + one Newton step (~f32-exact)."""
    s = jnp.maximum(jnp.sum(y, axis=1, keepdims=True), 1e-12)
    r = pl.reciprocal(s, approx=True)
    r = r * (2.0 - s * r)
    return y * (jnp.float32(library_size) * r)


# ---------------------------------------------------------------------------
# Kernels
# ---------------------------------------------------------------------------
def _fused_kernel(labels_ref, noise_ref, *refs, num_hidden, num_classes,
                  library_size):
    """Whole network in one kernel (all weights VMEM-resident)."""
    out_ref = refs[-1]
    p = refs[:-1]          # [w0, g0, b0, ..., w_final, b_final]
    labels = labels_ref[...]                                   # (B, 1) int32
    x = _hidden_stack(noise_ref[...].astype(jnp.bfloat16), labels,
                      p[:3 * num_hidden], num_hidden, num_classes)
    wf_ref = p[3 * num_hidden]
    bf_ref = p[3 * num_hidden + 1]
    y = jnp.maximum(
        jnp.dot(x, wf_ref[...], preferred_element_type=jnp.float32)
        + bf_ref[...], 0.0)
    if library_size is not None:
        y = _lsn(y, library_size)
    out_ref[...] = y


def _hidden_only_kernel(labels_ref, noise_ref, *refs, num_hidden, num_classes):
    """Hidden stack only (used ahead of the N-tiled final layer)."""
    out_ref = refs[-1]
    out_ref[...] = _hidden_stack(noise_ref[...].astype(jnp.bfloat16),
                                 labels_ref[...], refs[:-1],
                                 num_hidden, num_classes)


def _final_tiled_kernel(x_ref, wf_ref, bf_ref, y_ref, psum_ref):
    """One N tile of the final Linear + ReLU, plus per-tile partial row sums."""
    y = jnp.maximum(
        jnp.dot(x_ref[...], wf_ref[...], preferred_element_type=jnp.float32)
        + bf_ref[...], 0.0)
    y_ref[...] = y
    # Partial row sums stored lane-0-only in a 128-wide slab so the store is a
    # full-lane vst and the LSN pass can simply sum the whole slab.
    lane = jax.lax.broadcasted_iota(jnp.int32, (y.shape[0], LANE), 1)
    psum_ref[...] = jnp.where(lane == 0, jnp.sum(y, axis=1, keepdims=True), 0.0)


def _lsn_tiled_kernel(y_ref, psum_ref, out_ref, *, library_size):
    """LSN scaling pass over one N tile, using the accumulated partial sums."""
    total = jnp.maximum(jnp.sum(psum_ref[...], axis=1, keepdims=True), 1e-12)
    r = pl.reciprocal(total, approx=True)
    r = r * (2.0 - total * r)
    out_ref[...] = y_ref[...] * (jnp.float32(library_size) * r)


# ---------------------------------------------------------------------------
# Wrapper
# ---------------------------------------------------------------------------
def conditional_generator_forward(params, noise, labels, *, num_classes,
                                  library_size=None, tile_n=512,
                                  force_tiled=False):
    num_hidden = len(params["hidden"])
    batch = noise.shape[0]
    out_dim = params["final"]["w"].shape[1]
    labels2d = labels.reshape(batch, 1).astype(jnp.int32)

    hidden_inputs = []
    for layer in params["hidden"]:
        hidden_inputs += [layer["w"], layer["gamma_tbl"], layer["beta_tbl"]]

    wf, bf = params["final"]["w"], params["final"]["b"]
    n_pad = _round_up(out_dim, LANE)

    fused_bytes = (_nbytes(labels2d, noise, wf, bf, *hidden_inputs)
                   + batch * n_pad * 4)
    use_tiled = force_tiled or fused_bytes > FUSED_VMEM_BUDGET

    if use_tiled:
        tile_n = max(LANE, min(_round_up(tile_n, LANE), n_pad))
        n_pad = _round_up(n_pad, tile_n)

    if n_pad != out_dim:
        # Zero-padded columns stay exactly zero through bias(0) + ReLU and do
        # not perturb LSN row sums; sliced off below. Keeps stores lane-dense.
        wf = jnp.pad(wf, ((0, 0), (0, n_pad - out_dim)))
        bf = jnp.pad(bf, ((0, 0), (0, n_pad - out_dim)))

    vmem_spec = pl.BlockSpec(memory_space=pltpu.MemorySpace.VMEM)

    # ---------------- fully fused path (everything VMEM-resident) ----------
    if not use_tiled:
        inputs = [labels2d, noise] + hidden_inputs + [wf, bf]
        kernel = functools.partial(_fused_kernel, num_hidden=num_hidden,
                                   num_classes=num_classes,
                                   library_size=library_size)
        out = pl.pallas_call(
            kernel,
            out_shape=jax.ShapeDtypeStruct((batch, n_pad), jnp.float32),
            in_specs=[vmem_spec] * len(inputs),
            out_specs=vmem_spec,
            compiler_params=_cp(_nbytes(*inputs) + batch * n_pad * 4),
        )(*inputs)
        return out[:, :out_dim]

    # ---------------- tiled path (realistic output_cells_dim) --------------
    k_last = (params["hidden"][-1]["w"].shape[1] if num_hidden
              else noise.shape[1])

    # Call A: fused hidden stack (small; fully VMEM-resident).
    a_inputs = [labels2d, noise] + hidden_inputs
    x = pl.pallas_call(
        functools.partial(_hidden_only_kernel, num_hidden=num_hidden,
                          num_classes=num_classes),
        out_shape=jax.ShapeDtypeStruct((batch, k_last), jnp.bfloat16),
        in_specs=[vmem_spec] * len(a_inputs),
        out_specs=vmem_spec,
        compiler_params=_cp(_nbytes(*a_inputs) + batch * k_last * 2),
    )(*a_inputs)

    # Call B: N-tiled final Linear + ReLU (+ partial row sums). The weight
    # tile of column block j+1 is pipelined under compute of block j; the
    # "parallel" axis lets v7x's two TensorCores split the N range.
    n_tiles = n_pad // tile_n
    tile_bytes = 2 * (k_last * tile_n * 2 + tile_n * 4
                      + batch * tile_n * 4 + batch * LANE * 4)
    y, psum = pl.pallas_call(
        _final_tiled_kernel,
        grid=(n_tiles,),
        out_shape=(jax.ShapeDtypeStruct((batch, n_pad), jnp.float32),
                   jax.ShapeDtypeStruct((batch, n_tiles * LANE), jnp.float32)),
        in_specs=[pl.BlockSpec((batch, k_last), lambda j: (0, 0)),
                  pl.BlockSpec((k_last, tile_n), lambda j: (0, j)),
                  pl.BlockSpec((1, tile_n), lambda j: (0, j))],
        out_specs=(pl.BlockSpec((batch, tile_n), lambda j: (0, j)),
                   pl.BlockSpec((batch, LANE), lambda j: (0, j))),
        compiler_params=_cp(_nbytes(x) + tile_bytes, dims=("parallel",)),
    )(x, wf, bf)

    if library_size is None:
        return y[:, :out_dim]

    # Call C: LSN scaling pass (needs the full-row total -> second pass).
    out = pl.pallas_call(
        functools.partial(_lsn_tiled_kernel, library_size=library_size),
        grid=(n_tiles,),
        out_shape=jax.ShapeDtypeStruct((batch, n_pad), jnp.float32),
        in_specs=[pl.BlockSpec((batch, tile_n), lambda j: (0, j)),
                  pl.BlockSpec((batch, n_tiles * LANE), lambda j: (0, 0))],
        out_specs=pl.BlockSpec((batch, tile_n), lambda j: (0, j)),
        compiler_params=_cp(_nbytes(psum) + 4 * batch * tile_n * 4,
                            dims=("parallel",)),
    )(y, psum)
    return out[:, :out_dim]


# ---------------------------------------------------------------------------
# Parameter construction (mirrors module __init__ shapes / inits)
# ---------------------------------------------------------------------------
def init_params(key, z_input, output_cells_dim, num_classes, gen_layers):
    params = {"hidden": [], "final": {}}
    in_dim = z_input
    for out_dim in gen_layers:
        key, kw, kg = jax.random.split(key, 3)
        # xavier_uniform hidden weight (stored bf16 for the MXU; bias dropped,
        # exactly cancelled by training-mode BN mean subtraction).
        limit = float(jnp.sqrt(6.0 / (in_dim + out_dim)))
        w = jax.random.uniform(kw, (in_dim, out_dim), jnp.float32, -limit, limit)
        # ConditionalBatchNorm embedding: gamma ~ N(1, 0.02), beta = 0 (f32).
        gamma_tbl = 1.0 + 0.02 * jax.random.normal(
            kg, (num_classes, out_dim), jnp.float32)
        beta_tbl = jnp.zeros((num_classes, out_dim), jnp.float32)
        params["hidden"].append({"w": w.astype(jnp.bfloat16),
                                 "gamma_tbl": gamma_tbl,
                                 "beta_tbl": beta_tbl})
        in_dim = out_dim
    # Final linear: kaiming_normal (fan_in, relu), bias = 0.
    key, kw = jax.random.split(key)
    std = float(jnp.sqrt(2.0 / in_dim))
    w = std * jax.random.normal(kw, (in_dim, output_cells_dim), jnp.float32)
    params["final"] = {"w": w.astype(jnp.bfloat16),
                       "b": jnp.zeros((1, output_cells_dim), jnp.float32)}
    return params


# ---------------------------------------------------------------------------
# Pure-JAX reference (same numerics: bf16 weights/activations, f32 BN math)
# ---------------------------------------------------------------------------
def reference_forward(params, noise, labels, *, library_size):
    x = noise.astype(jnp.bfloat16)
    lab = labels.astype(jnp.int32)
    for layer in params["hidden"]:
        h = jnp.dot(x, layer["w"], preferred_element_type=jnp.float32)
        m = jnp.mean(h, axis=0, keepdims=True)
        var = jnp.maximum(jnp.mean(h * h, axis=0, keepdims=True) - m * m, 0.0)
        inv = jax.lax.rsqrt(var + EPS)
        gamma = layer["gamma_tbl"][lab]
        beta = layer["beta_tbl"][lab]
        scale = gamma * inv
        x = jnp.maximum(scale * h + (beta - scale * m), 0.0).astype(jnp.bfloat16)
    h = (jnp.dot(x, params["final"]["w"], preferred_element_type=jnp.float32)
         + params["final"]["b"])
    y = jnp.maximum(h, 0.0)
    if library_size is not None:
        y = y * (library_size
                 / jnp.maximum(jnp.sum(y, axis=1, keepdims=True), 1e-12))
    return y


# ---------------------------------------------------------------------------
# Main
# ---------------------------------------------------------------------------
if __name__ == "__main__":
    batch = 128                # fills v5e's 128-row MXU (half of v6e/v7x)
    z_input = 128
    gen_layers = [256, 256]    # 256-wide: full MXU width on v6e/v7x
    output_cells_dim = 500     # NOT 128-aligned -> exercises output padding
    num_classes = 4
    library_size = 2000        # exercises the LSN path

    key = jax.random.PRNGKey(0)
    k_params, k_noise, k_labels = jax.random.split(key, 3)

    params = init_params(k_params, z_input, output_cells_dim,
                         num_classes, gen_layers)
    noise = jax.random.normal(k_noise, (batch, z_input), jnp.float32)
    labels = jax.random.randint(k_labels, (batch,), 0, num_classes)

    fwd = functools.partial(conditional_generator_forward,
                            num_classes=num_classes, library_size=library_size)

    # Fully fused path (everything fits VMEM at these sizes).
    out_fused = jax.block_until_ready(fwd(params, noise, labels))
    # N-tiled final-layer path (what realistic gene counts would use).
    out_tiled = jax.block_until_ready(
        fwd(params, noise, labels, force_tiled=True, tile_n=256))

    assert out_fused.shape == (batch, output_cells_dim)
    assert out_fused.dtype == jnp.float32
    for out in (out_fused, out_tiled):
        assert bool(jnp.all(jnp.isfinite(out)))
        assert bool(jnp.all(out >= 0.0))
        # LSN: every generated cell sums (approximately) to library_size.
        assert jnp.allclose(jnp.sum(out, axis=1), library_size, rtol=1e-3)

    # Both structural paths must agree.
    assert jnp.allclose(out_fused, out_tiled, rtol=1e-3, atol=1e-3)

    # Cross-check against a pure-JAX reference with matching numerics.
    ref = reference_forward(params, noise, labels, library_size=library_size)
    assert jnp.allclose(out_fused, ref, rtol=2e-2, atol=2e-2)

    print("KERNEL_OK")
</pallas_src>

<mosaic_0001>
module attributes {stable_mosaic.version = 11 : i64} {
  func.func @_fused_kernel(%arg0: memref<128x1xi32, #tpu.memory_space<vmem>>, %arg1: memref<128x128xf32, #tpu.memory_space<vmem>>, %arg2: memref<128x256xbf16, #tpu.memory_space<vmem>>, %arg3: memref<4x256xf32, #tpu.memory_space<vmem>>, %arg4: memref<4x256xf32, #tpu.memory_space<vmem>>, %arg5: memref<256x256xbf16, #tpu.memory_space<vmem>>, %arg6: memref<4x256xf32, #tpu.memory_space<vmem>>, %arg7: memref<4x256xf32, #tpu.memory_space<vmem>>, %arg8: memref<256x512xbf16, #tpu.memory_space<vmem>>, %arg9: memref<1x512xf32, #tpu.memory_space<vmem>>, %arg10: memref<128x512xf32, #tpu.memory_space<vmem>>) attributes {dimension_semantics = [], scalar_prefetch = 0 : i64, scratch_operands = 0 : i64, tpu.core_type = #tpu.core_type<tc>} {
    %c0 = arith.constant 0 : index
    %c0_0 = arith.constant 0 : index
    %0 = vector.load %arg0[%c0, %c0_0] : memref<128x1xi32, #tpu.memory_space<vmem>>, vector<128x1xi32>
    %c0_1 = arith.constant 0 : index
    %c0_2 = arith.constant 0 : index
    %1 = vector.load %arg1[%c0_1, %c0_2] : memref<128x128xf32, #tpu.memory_space<vmem>>, vector<128x128xf32>
    %2 = arith.truncf %1 : vector<128x128xf32> to vector<128x128xbf16>
    %c0_3 = arith.constant 0 : index
    %c0_4 = arith.constant 0 : index
    %3 = vector.load %arg2[%c0_3, %c0_4] : memref<128x256xbf16, #tpu.memory_space<vmem>>, vector<128x256xbf16>
    %cst = arith.constant dense<0.000000e+00> : vector<128x256xf32>
    %4 = tpu.matmul %2, %3, %cst {dimension_numbers = #tpu.dot_dimension_numbers<[1], [0], [0], [1], [0, 0, 1, 1], [], []>} : vector<128x128xbf16>, vector<128x256xbf16>, vector<128x256xf32> -> vector<128x256xf32>
    %cst_5 = arith.constant dense<0.000000e+00> : vector<256xf32>
    %5 = vector.multi_reduction <add>, %4, %cst_5 [0] : vector<128x256xf32> to vector<256xf32>
    %6 = vector.shape_cast %5 : vector<256xf32> to vector<1x256xf32>
    %cst_6 = arith.constant 1.280000e+02 : f32
    %7 = vector.broadcast %cst_6 : f32 to vector<1x256xf32>
    %8 = arith.divf %6, %7 : vector<1x256xf32>
    %9 = arith.mulf %4, %4 : vector<128x256xf32>
    %cst_7 = arith.constant dense<0.000000e+00> : vector<256xf32>
    %10 = vector.multi_reduction <add>, %9, %cst_7 [0] : vector<128x256xf32> to vector<256xf32>
    %11 = vector.shape_cast %10 : vector<256xf32> to vector<1x256xf32>
    %cst_8 = arith.constant 1.280000e+02 : f32
    %12 = vector.broadcast %cst_8 : f32 to vector<1x256xf32>
    %13 = arith.divf %11, %12 : vector<1x256xf32>
    %14 = arith.mulf %8, %8 : vector<1x256xf32>
    %15 = arith.subf %13, %14 : vector<1x256xf32>
    %cst_9 = arith.constant 0.000000e+00 : f32
    %16 = vector.broadcast %cst_9 : f32 to vector<1x256xf32>
    %17 = arith.maximumf %15, %16 : vector<1x256xf32>
    %cst_10 = arith.constant 9.99999974E-6 : f32
    %18 = vector.broadcast %cst_10 : f32 to vector<1x256xf32>
    %19 = arith.addf %17, %18 : vector<1x256xf32>
    %20 = math.rsqrt %19 : vector<1x256xf32>
    %c0_11 = arith.constant 0 : index
    %c0_12 = arith.constant 0 : index
    %21 = vector.load %arg3[%c0_11, %c0_12] : memref<4x256xf32, #tpu.memory_space<vmem>>, vector<1x256xf32>
    %c1_i32 = arith.constant 1 : i32
    %22 = vector.broadcast %c1_i32 : i32 to vector<128x1xi32>
    %23 = arith.cmpi eq, %0, %22 : vector<128x1xi32>
    %c1 = arith.constant 1 : index
    %c0_13 = arith.constant 0 : index
    %24 = vector.load %arg3[%c1, %c0_13] : memref<4x256xf32, #tpu.memory_space<vmem>>, vector<1x256xf32>
    %25 = vector.shape_cast %23 : vector<128x1xi1> to vector<128x1xi1>
    %26 = vector.broadcast %25 : vector<128x1xi1> to vector<128x256xi1>
    %27 = vector.shape_cast %24 : vector<1x256xf32> to vector<1x256xf32>
    %28 = vector.broadcast %27 : vector<1x256xf32> to vector<128x256xf32>
    %29 = vector.shape_cast %21 : vector<1x256xf32> to vector<1x256xf32>
    %30 = vector.broadcast %29 : vector<1x256xf32> to vector<128x256xf32>
    %31 = arith.select %26, %28, %30 : vector<128x256xi1>, vector<128x256xf32>
    %c2_i32 = arith.constant 2 : i32
    %32 = vector.broadcast %c2_i32 : i32 to vector<128x1xi32>
    %33 = arith.cmpi eq, %0, %32 : vector<128x1xi32>
    %c2 = arith.constant 2 : index
    %c0_14 = arith.constant 0 : index
    %34 = vector.load %arg3[%c2, %c0_14] : memref<4x256xf32, #tpu.memory_space<vmem>>, vector<1x256xf32>
    %35 = vector.shape_cast %33 : vector<128x1xi1> to vector<128x1xi1>
    %36 = vector.broadcast %35 : vector<128x1xi1> to vector<128x256xi1>
    %37 = vector.shape_cast %34 : vector<1x256xf32> to vector<1x256xf32>
    %38 = vector.broadcast %37 : vector<1x256xf32> to vector<128x256xf32>
    %39 = arith.select %36, %38, %31 : vector<128x256xi1>, vector<128x256xf32>
    %c3_i32 = arith.constant 3 : i32
    %40 = vector.broadcast %c3_i32 : i32 to vector<128x1xi32>
    %41 = arith.cmpi eq, %0, %40 : vector<128x1xi32>
    %c3 = arith.constant 3 : index
    %c0_15 = arith.constant 0 : index
    %42 = vector.load %arg3[%c3, %c0_15] : memref<4x256xf32, #tpu.memory_space<vmem>>, vector<1x256xf32>
    %43 = vector.shape_cast %41 : vector<128x1xi1> to vector<128x1xi1>
    %44 = vector.broadcast %43 : vector<128x1xi1> to vector<128x256xi1>
    %45 = vector.shape_cast %42 : vector<1x256xf32> to vector<1x256xf32>
    %46 = vector.broadcast %45 : vector<1x256xf32> to vector<128x256xf32>
    %47 = arith.select %44, %46, %39 : vector<128x256xi1>, vector<128x256xf32>
    %c0_16 = arith.constant 0 : index
    %c0_17 = arith.constant 0 : index
    %48 = vector.load %arg4[%c0_16, %c0_17] : memref<4x256xf32, #tpu.memory_space<vmem>>, vector<1x256xf32>
    %c1_i32_18 = arith.constant 1 : i32
    %49 = vector.broadcast %c1_i32_18 : i32 to vector<128x1xi32>
    %50 = arith.cmpi eq, %0, %49 : vector<128x1xi32>
    %c1_19 = arith.constant 1 : index
    %c0_20 = arith.constant 0 : index
    %51 = vector.load %arg4[%c1_19, %c0_20] : memref<4x256xf32, #tpu.memory_space<vmem>>, vector<1x256xf32>
    %52 = vector.shape_cast %50 : vector<128x1xi1> to vector<128x1xi1>
    %53 = vector.broadcast %52 : vector<128x1xi1> to vector<128x256xi1>
    %54 = vector.shape_cast %51 : vector<1x256xf32> to vector<1x256xf32>
    %55 = vector.broadcast %54 : vector<1x256xf32> to vector<128x256xf32>
    %56 = vector.shape_cast %48 : vector<1x256xf32> to vector<1x256xf32>
    %57 = vector.broadcast %56 : vector<1x256xf32> to vector<128x256xf32>
    %58 = arith.select %53, %55, %57 : vector<128x256xi1>, vector<128x256xf32>
    %c2_i32_21 = arith.constant 2 : i32
    %59 = vector.broadcast %c2_i32_21 : i32 to vector<128x1xi32>
    %60 = arith.cmpi eq, %0, %59 : vector<128x1xi32>
    %c2_22 = arith.constant 2 : index
    %c0_23 = arith.constant 0 : index
    %61 = vector.load %arg4[%c2_22, %c0_23] : memref<4x256xf32, #tpu.memory_space<vmem>>, vector<1x256xf32>
    %62 = vector.shape_cast %60 : vector<128x1xi1> to vector<128x1xi1>
    %63 = vector.broadcast %62 : vector<128x1xi1> to vector<128x256xi1>
    %64 = vector.shape_cast %61 : vector<1x256xf32> to vector<1x256xf32>
    %65 = vector.broadcast %64 : vector<1x256xf32> to vector<128x256xf32>
    %66 = arith.select %63, %65, %58 : vector<128x256xi1>, vector<128x256xf32>
    %c3_i32_24 = arith.constant 3 : i32
    %67 = vector.broadcast %c3_i32_24 : i32 to vector<128x1xi32>
    %68 = arith.cmpi eq, %0, %67 : vector<128x1xi32>
    %c3_25 = arith.constant 3 : index
    %c0_26 = arith.constant 0 : index
    %69 = vector.load %arg4[%c3_25, %c0_26] : memref<4x256xf32, #tpu.memory_space<vmem>>, vector<1x256xf32>
    %70 = vector.shape_cast %68 : vector<128x1xi1> to vector<128x1xi1>
    %71 = vector.broadcast %70 : vector<128x1xi1> to vector<128x256xi1>
    %72 = vector.shape_cast %69 : vector<1x256xf32> to vector<1x256xf32>
    %73 = vector.broadcast %72 : vector<1x256xf32> to vector<128x256xf32>
    %74 = arith.select %71, %73, %66 : vector<128x256xi1>, vector<128x256xf32>
    %75 = vector.broadcast %20 : vector<1x256xf32> to vector<128x256xf32>
    %76 = arith.mulf %47, %75 : vector<128x256xf32>
    %77 = vector.broadcast %8 : vector<1x256xf32> to vector<128x256xf32>
    %78 = arith.mulf %76, %77 : vector<128x256xf32>
    %79 = arith.subf %74, %78 : vector<128x256xf32>
    %80 = arith.mulf %76, %4 : vector<128x256xf32>
    %81 = arith.addf %80, %79 : vector<128x256xf32>
    %cst_27 = arith.constant 0.000000e+00 : f32
    %82 = vector.broadcast %cst_27 : f32 to vector<128x256xf32>
    %83 = arith.maximumf %81, %82 : vector<128x256xf32>
    %84 = arith.truncf %83 : vector<128x256xf32> to vector<128x256xbf16>
    %c0_28 = arith.constant 0 : index
    %c0_29 = arith.constant 0 : index
    %85 = vector.load %arg5[%c0_28, %c0_29] : memref<256x256xbf16, #tpu.memory_space<vmem>>, vector<256x256xbf16>
    %cst_30 = arith.constant dense<0.000000e+00> : vector<128x256xf32>
    %86 = tpu.matmul %84, %85, %cst_30 {dimension_numbers = #tpu.dot_dimension_numbers<[1], [0], [0], [1], [0, 0, 1, 1], [], []>} : vector<128x256xbf16>, vector<256x256xbf16>, vector<128x256xf32> -> vector<128x256xf32>
    %cst_31 = arith.constant dense<0.000000e+00> : vector<256xf32>
    %87 = vector.multi_reduction <add>, %86, %cst_31 [0] : vector<128x256xf32> to vector<256xf32>
    %88 = vector.shape_cast %87 : vector<256xf32> to vector<1x256xf32>
    %cst_32 = arith.constant 1.280000e+02 : f32
    %89 = vector.broadcast %cst_32 : f32 to vector<1x256xf32>
    %90 = arith.divf %88, %89 : vector<1x256xf32>
    %91 = arith.mulf %86, %86 : vector<128x256xf32>
    %cst_33 = arith.constant dense<0.000000e+00> : vector<256xf32>
    %92 = vector.multi_reduction <add>, %91, %cst_33 [0] : vector<128x256xf32> to vector<256xf32>
    %93 = vector.shape_cast %92 : vector<256xf32> to vector<1x256xf32>
    %cst_34 = arith.constant 1.280000e+02 : f32
    %94 = vector.broadcast %cst_34 : f32 to vector<1x256xf32>
    %95 = arith.divf %93, %94 : vector<1x256xf32>
    %96 = arith.mulf %90, %90 : vector<1x256xf32>
    %97 = arith.subf %95, %96 : vector<1x256xf32>
    %cst_35 = arith.constant 0.000000e+00 : f32
    %98 = vector.broadcast %cst_35 : f32 to vector<1x256xf32>
    %99 = arith.maximumf %97, %98 : vector<1x256xf32>
    %cst_36 = arith.constant 9.99999974E-6 : f32
    %100 = vector.broadcast %cst_36 : f32 to vector<1x256xf32>
    %101 = arith.addf %99, %100 : vector<1x256xf32>
    %102 = math.rsqrt %101 : vector<1x256xf32>
    %c0_37 = arith.constant 0 : index
    %c0_38 = arith.constant 0 : index
    %103 = vector.load %arg6[%c0_37, %c0_38] : memref<4x256xf32, #tpu.memory_space<vmem>>, vector<1x256xf32>
    %c1_i32_39 = arith.constant 1 : i32
    %104 = vector.broadcast %c1_i32_39 : i32 to vector<128x1xi32>
    %105 = arith.cmpi eq, %0, %104 : vector<128x1xi32>
    %c1_40 = arith.constant 1 : index
    %c0_41 = arith.constant 0 : index
    %106 = vector.load %arg6[%c1_40, %c0_41] : memref<4x256xf32, #tpu.memory_space<vmem>>, vector<1x256xf32>
    %107 = vector.shape_cast %105 : vector<128x1xi1> to vector<128x1xi1>
    %108 = vector.broadcast %107 : vector<128x1xi1> to vector<128x256xi1>
    %109 = vector.shape_cast %106 : vector<1x256xf32> to vector<1x256xf32>
    %110 = vector.broadcast %109 : vector<1x256xf32> to vector<128x256xf32>
    %111 = vector.shape_cast %103 : vector<1x256xf32> to vector<1x256xf32>
    %112 = vector.broadcast %111 : vector<1x256xf32> to vector<128x256xf32>
    %113 = arith.select %108, %110, %112 : vector<128x256xi1>, vector<128x256xf32>
    %c2_i32_42 = arith.constant 2 : i32
    %114 = vector.broadcast %c2_i32_42 : i32 to vector<128x1xi32>
    %115 = arith.cmpi eq, %0, %114 : vector<128x1xi32>
    %c2_43 = arith.constant 2 : index
    %c0_44 = arith.constant 0 : index
    %116 = vector.load %arg6[%c2_43, %c0_44] : memref<4x256xf32, #tpu.memory_space<vmem>>, vector<1x256xf32>
    %117 = vector.shape_cast %115 : vector<128x1xi1> to vector<128x1xi1>
    %118 = vector.broadcast %117 : vector<128x1xi1> to vector<128x256xi1>
    %119 = vector.shape_cast %116 : vector<1x256xf32> to vector<1x256xf32>
    %120 = vector.broadcast %119 : vector<1x256xf32> to vector<128x256xf32>
    %121 = arith.select %118, %120, %113 : vector<128x256xi1>, vector<128x256xf32>
    %c3_i32_45 = arith.constant 3 : i32
    %122 = vector.broadcast %c3_i32_45 : i32 to vector<128x1xi32>
    %123 = arith.cmpi eq, %0, %122 : vector<128x1xi32>
    %c3_46 = arith.constant 3 : index
    %c0_47 = arith.constant 0 : index
    %124 = vector.load %arg6[%c3_46, %c0_47] : memref<4x256xf32, #tpu.memory_space<vmem>>, vector<1x256xf32>
    %125 = vector.shape_cast %123 : vector<128x1xi1> to vector<128x1xi1>
    %126 = vector.broadcast %125 : vector<128x1xi1> to vector<128x256xi1>
    %127 = vector.shape_cast %124 : vector<1x256xf32> to vector<1x256xf32>
    %128 = vector.broadcast %127 : vector<1x256xf32> to vector<128x256xf32>
    %129 = arith.select %126, %128, %121 : vector<128x256xi1>, vector<128x256xf32>
    %c0_48 = arith.constant 0 : index
    %c0_49 = arith.constant 0 : index
    %130 = vector.load %arg7[%c0_48, %c0_49] : memref<4x256xf32, #tpu.memory_space<vmem>>, vector<1x256xf32>
    %c1_i32_50 = arith.constant 1 : i32
    %131 = vector.broadcast %c1_i32_50 : i32 to vector<128x1xi32>
    %132 = arith.cmpi eq, %0, %131 : vector<128x1xi32>
    %c1_51 = arith.constant 1 : index
    %c0_52 = arith.constant 0 : index
    %133 = vector.load %arg7[%c1_51, %c0_52] : memref<4x256xf32, #tpu.memory_space<vmem>>, vector<1x256xf32>
    %134 = vector.shape_cast %132 : vector<128x1xi1> to vector<128x1xi1>
    %135 = vector.broadcast %134 : vector<128x1xi1> to vector<128x256xi1>
    %136 = vector.shape_cast %133 : vector<1x256xf32> to vector<1x256xf32>
    %137 = vector.broadcast %136 : vector<1x256xf32> to vector<128x256xf32>
    %138 = vector.shape_cast %130 : vector<1x256xf32> to vector<1x256xf32>
    %139 = vector.broadcast %138 : vector<1x256xf32> to vector<128x256xf32>
    %140 = arith.select %135, %137, %139 : vector<128x256xi1>, vector<128x256xf32>
    %c2_i32_53 = arith.constant 2 : i32
    %141 = vector.broadcast %c2_i32_53 : i32 to vector<128x1xi32>
    %142 = arith.cmpi eq, %0, %141 : vector<128x1xi32>
    %c2_54 = arith.constant 2 : index
    %c0_55 = arith.constant 0 : index
    %143 = vector.load %arg7[%c2_54, %c0_55] : memref<4x256xf32, #tpu.memory_space<vmem>>, vector<1x256xf32>
    %144 = vector.shape_cast %142 : vector<128x1xi1> to vector<128x1xi1>
    %145 = vector.broadcast %144 : vector<128x1xi1> to vector<128x256xi1>
    %146 = vector.shape_cast %143 : vector<1x256xf32> to vector<1x256xf32>
    %147 = vector.broadcast %146 : vector<1x256xf32> to vector<128x256xf32>
    %148 = arith.select %145, %147, %140 : vector<128x256xi1>, vector<128x256xf32>
    %c3_i32_56 = arith.constant 3 : i32
    %149 = vector.broadcast %c3_i32_56 : i32 to vector<128x1xi32>
    %150 = arith.cmpi eq, %0, %149 : vector<128x1xi32>
    %c3_57 = arith.constant 3 : index
    %c0_58 = arith.constant 0 : index
    %151 = vector.load %arg7[%c3_57, %c0_58] : memref<4x256xf32, #tpu.memory_space<vmem>>, vector<1x256xf32>
    %152 = vector.shape_cast %150 : vector<128x1xi1> to vector<128x1xi1>
    %153 = vector.broadcast %152 : vector<128x1xi1> to vector<128x256xi1>
    %154 = vector.shape_cast %151 : vector<1x256xf32> to vector<1x256xf32>
    %155 = vector.broadcast %154 : vector<1x256xf32> to vector<128x256xf32>
    %156 = arith.select %153, %155, %148 : vector<128x256xi1>, vector<128x256xf32>
    %157 = vector.broadcast %102 : vector<1x256xf32> to vector<128x256xf32>
    %158 = arith.mulf %129, %157 : vector<128x256xf32>
    %159 = vector.broadcast %90 : vector<1x256xf32> to vector<128x256xf32>
    %160 = arith.mulf %158, %159 : vector<128x256xf32>
    %161 = arith.subf %156, %160 : vector<128x256xf32>
    %162 = arith.mulf %158, %86 : vector<128x256xf32>
    %163 = arith.addf %162, %161 : vector<128x256xf32>
    %cst_59 = arith.constant 0.000000e+00 : f32
    %164 = vector.broadcast %cst_59 : f32 to vector<128x256xf32>
    %165 = arith.maximumf %163, %164 : vector<128x256xf32>
    %166 = arith.truncf %165 : vector<128x256xf32> to vector<128x256xbf16>
    %c0_60 = arith.constant 0 : index
    %c0_61 = arith.constant 0 : index
    %167 = vector.load %arg8[%c0_60, %c0_61] : memref<256x512xbf16, #tpu.memory_space<vmem>>, vector<256x512xbf16>
    %cst_62 = arith.constant dense<0.000000e+00> : vector<128x512xf32>
    %168 = tpu.matmul %166, %167, %cst_62 {dimension_numbers = #tpu.dot_dimension_numbers<[1], [0], [0], [1], [0, 0, 1, 1], [], []>} : vector<128x256xbf16>, vector<256x512xbf16>, vector<128x512xf32> -> vector<128x512xf32>
    %c0_63 = arith.constant 0 : index
    %c0_64 = arith.constant 0 : index
    %169 = vector.load %arg9[%c0_63, %c0_64] : memref<1x512xf32, #tpu.memory_space<vmem>>, vector<1x512xf32>
    %170 = vector.broadcast %169 : vector<1x512xf32> to vector<128x512xf32>
    %171 = arith.addf %168, %170 : vector<128x512xf32>
    %cst_65 = arith.constant 0.000000e+00 : f32
    %172 = vector.broadcast %cst_65 : f32 to vector<128x512xf32>
    %173 = arith.maximumf %171, %172 : vector<128x512xf32>
    %cst_66 = arith.constant dense<0.000000e+00> : vector<128xf32>
    %174 = vector.multi_reduction <add>, %173, %cst_66 [1] : vector<128x512xf32> to vector<128xf32>
    %175 = vector.shape_cast %174 : vector<128xf32> to vector<128x1xf32>
    %cst_67 = arith.constant 9.99999996E-13 : f32
    %176 = vector.broadcast %cst_67 : f32 to vector<128x1xf32>
    %177 = arith.maximumf %175, %176 : vector<128x1xf32>
    %178 = tpu.reciprocal %177 {approx = true} : vector<128x1xf32> -> vector<128x1xf32>
    %179 = arith.mulf %177, %178 : vector<128x1xf32>
    %cst_68 = arith.constant 2.000000e+00 : f32
    %180 = vector.broadcast %cst_68 : f32 to vector<128x1xf32>
    %181 = arith.subf %180, %179 : vector<128x1xf32>
    %182 = arith.mulf %178, %181 : vector<128x1xf32>
    %cst_69 = arith.constant 2.000000e+03 : f32
    %183 = vector.broadcast %cst_69 : f32 to vector<128x1xf32>
    %184 = arith.mulf %183, %182 : vector<128x1xf32>
    %185 = vector.broadcast %184 : vector<128x1xf32> to vector<128x512xf32>
    %186 = arith.mulf %173, %185 : vector<128x512xf32>
    %c0_70 = arith.constant 0 : index
    %c0_71 = arith.constant 0 : index
    %187 = vector.load %arg10[%c0_70, %c0_71] : memref<128x512xf32, #tpu.memory_space<vmem>>, vector<128x512xf32>
    tpu.vector_store %arg10[%c0_70, %c0_71], %186 {strides = array<i32>} : memref<128x512xf32, #tpu.memory_space<vmem>>, vector<128x512xf32>,
    return
  }
}

</mosaic_0001>

<llo_original>
// kernel: tpu_custom_call.1
$region0: #{tpu_custom_call.1}
  #allocation0 [shape = 'u32[]', space=smem, size = 0x4, offset = 0x4, fixed_abs, tag = 'smem constant byte address 0x4 - core index']
  #allocation1 [shape = 'u32[72,128]{1,0:T(1,128)}', space=vmem, size = 0x9000, scoped, tag = 'internal scratch']
  %s0 = inlined_call_operand.vmem [shape: s32[128,1], index: 0, kind: input, shape index: {}]
  %s1 = inlined_call_operand.vmem [shape: f32[128,128], index: 1, kind: input, shape index: {}]
  %s2 = inlined_call_operand.hbm [shape: bf16[128,256], index: 2, kind: input, shape index: {}]
  %s3 = inlined_call_operand.hbm [shape: f32[4,256], index: 3, kind: input, shape index: {}]
  %s4 = inlined_call_operand.hbm [shape: f32[4,256], index: 4, kind: input, shape index: {}]
  %s5 = inlined_call_operand.hbm [shape: bf16[256,256], index: 5, kind: input, shape index: {}]
  %s6 = inlined_call_operand.hbm [shape: f32[4,256], index: 6, kind: input, shape index: {}]
  %s7 = inlined_call_operand.hbm [shape: f32[4,256], index: 7, kind: input, shape index: {}]
  %s8 = inlined_call_operand.hbm [shape: bf16[256,512], index: 8, kind: input, shape index: {}]
  %s9 = inlined_call_operand.vmem [shape: f32[1,512], index: 9, kind: input, shape index: {}]
  %s10 = inlined_call_operand.hbm [shape: f32[128,512], index: 10, kind: output, shape index: {}]
  %s11 = sld [smem:[#allocation0]]
  $region78: #{tpu_custom_call.1} parent=0
    _
  %s13 = ssub.s32 1, %s11
  %s14 = scalar_select 0, %s13, %s11
  $region1: #{tpu_custom_call.1} parent=0
    #allocation2 [shape = 'u8[65536]{0}', space=vmem, size = 0x10000, scoped, tag = 'input window, operand 2, single buffered']
    #allocation3 [shape = 's32[1]{0}', space=sflag, size = 0x4, scoped, tag = 'scoped memory for tpu_custom_call.1']
    #allocation4 [shape = 's32[1]{0}', space=sflag, size = 0x4, scoped, tag = 'scoped memory for tpu_custom_call.1']
    #allocation5 [shape = 'u8[4096]{0}', space=vmem, size = 0x1000, scoped, tag = 'input window, operand 3, single buffered']
    #allocation6 [shape = 's32[1]{0}', space=sflag, size = 0x4, scoped, tag = 'scoped memory for tpu_custom_call.1']
    #allocation7 [shape = 'u8[4096]{0}', space=vmem, size = 0x1000, scoped, tag = 'input window, operand 4, single buffered']
    #allocation8 [shape = 'u8[131072]{0}', space=vmem, size = 0x20000, scoped, tag = 'input window, operand 5, single buffered']
    #allocation9 [shape = 's32[1]{0}', space=sflag, size = 0x4, scoped, tag = 'scoped memory for tpu_custom_call.1']
    #allocation10 [shape = 'u8[4096]{0}', space=vmem, size = 0x1000, scoped, tag = 'input window, operand 6, single buffered']
    #allocation11 [shape = 'u8[4096]{0}', space=vmem, size = 0x1000, scoped, tag = 'input window, operand 7, single buffered']
    #allocation12 [shape = 's32[1]{0}', space=sflag, size = 0x4, scoped, tag = 'scoped memory for tpu_custom_call.1']
    #allocation13 [shape = 'u8[262144]{0}', space=vmem, size = 0x40000, scoped, tag = 'input window, operand 8, single buffered']
    #allocation14 [shape = 'u8[262144]{0}', space=vmem, size = 0x40000, scoped, tag = 'output window, operand 0, single buffered']
    %15 = vsyncpa [#allocation3], 0
    %16 = vsyncpa [#allocation6], 0
    %17 = vsyncpa [#allocation9], 0
    %18 = vsyncpa [#allocation12], 0
    %19 = vsyncpa [#allocation4], 0
    // Predicated region
    $region2: #{tpu_custom_call.1} parent=1 // pred_check
      _
    $region3: #{tpu_custom_call.1} parent=1 // pred_check_branch
      %21 = sbr.rel (0) target = $region5
    $region4: #{tpu_custom_call.1} parent=1 // pred_region
      _
    $region5: #{tpu_custom_call.1} parent=1 // pred_fallthru
      _
    // Predicated region
    $region6: #{tpu_custom_call.1} parent=1 // pred_check
      _
    $region7: #{tpu_custom_call.1} parent=1 // pred_check_branch
      %23 = sbr.rel (0) target = $region9
    $region8: #{tpu_custom_call.1} parent=1 // pred_region
      _
    $region9: #{tpu_custom_call.1} parent=1 // pred_fallthru
      _
    // Predicated region
    $region10: #{tpu_custom_call.1} parent=1 // pred_check
      _
    $region11: #{tpu_custom_call.1} parent=1 // pred_check_branch
      %25 = sbr.rel (0) target = $region13
    $region12: #{tpu_custom_call.1} parent=1 // pred_region
      %27 = vsyncadd [#allocation3], 0
      %s28 = sshll.u32 %s2, 4
      %s29 = int_to_ptr.hbm [resolvable:$true] %s28
      %s30 = sshll.u32 [#allocation2], 4
      %s31 = int_to_ptr.vmem [resolvable:$true] %s30
      %36 = dma.hbm_to_vmem [thread:$0]  %s29, 2048, %s31, [#allocation3], 128, 128, 8
    $region13: #{tpu_custom_call.1} parent=1 // pred_fallthru
      _
    // Predicated region
    $region14: #{tpu_custom_call.1} parent=1 // pred_check
      _
    $region15: #{tpu_custom_call.1} parent=1 // pred_check_branch
      %38 = sbr.rel (0) target = $region17
    $region16: #{tpu_custom_call.1} parent=1 // pred_region
      %40 = vsyncadd [#allocation6], 0
      %s42 = sshll.u32 %s3, 4
      %s43 = int_to_ptr.hbm [resolvable:$true] %s42
      %s44 = sshll.u32 [#allocation5], 4
      %s45 = int_to_ptr.vmem [resolvable:$true] %s44
      %47 = dma.hbm_to_vmem [thread:$0]  %s43, 128, %s45, [#allocation6]
    $region17: #{tpu_custom_call.1} parent=1 // pred_fallthru
      _
    // Predicated region
    $region18: #{tpu_custom_call.1} parent=1 // pred_check
      _
    $region19: #{tpu_custom_call.1} parent=1 // pred_check_branch
      %49 = sbr.rel (0) target = $region21
    $region20: #{tpu_custom_call.1} parent=1 // pred_region
      %51 = vsyncadd [#allocation6], 0
      %s53 = sshll.u32 %s4, 4
      %s54 = int_to_ptr.hbm [resolvable:$true] %s53
      %s55 = sshll.u32 [#allocation7], 4
      %s56 = int_to_ptr.vmem [resolvable:$true] %s55
      %58 = dma.hbm_to_vmem [thread:$0]  %s54, 128, %s56, [#allocation6]
    $region21: #{tpu_custom_call.1} parent=1 // pred_fallthru
      _
    // Predicated region
    $region22: #{tpu_custom_call.1} parent=1 // pred_check
      _
    $region23: #{tpu_custom_call.1} parent=1 // pred_check_branch
      %60 = sbr.rel (0) target = $region25
    $region24: #{tpu_custom_call.1} parent=1 // pred_region
      %62 = vsyncadd [#allocation9], 0
      %s63 = sshll.u32 %s5, 4
      %s64 = int_to_ptr.hbm [resolvable:$true] %s63
      %s65 = sshll.u32 [#allocation8], 4
      %s66 = int_to_ptr.vmem [resolvable:$true] %s65
      %71 = dma.hbm_to_vmem [thread:$0]  %s64, 4096, %s66, [#allocation9], 128, 128, 8
    $region25: #{tpu_custom_call.1} parent=1 // pred_fallthru
      _
    // Predicated region
    $region26: #{tpu_custom_call.1} parent=1 // pred_check
      _
    $region27: #{tpu_custom_call.1} parent=1 // pred_check_branch
      %73 = sbr.rel (0) target = $region29
    $region28: #{tpu_custom_call.1} parent=1 // pred_region
      %75 = vsyncadd [#allocation9], 0
      %s77 = sshll.u32 %s6, 4
      %s78 = int_to_ptr.hbm [resolvable:$true] %s77
      %s79 = sshll.u32 [#allocation10], 4
      %s80 = int_to_ptr.vmem [resolvable:$true] %s79
      %82 = dma.hbm_to_vmem [thread:$0]  %s78, 128, %s80, [#allocation9]
    $region29: #{tpu_custom_call.1} parent=1 // pred_fallthru
      _
    // Predicated region
    $region30: #{tpu_custom_call.1} parent=1 // pred_check
      _
    $region31: #{tpu_custom_call.1} parent=1 // pred_check_branch
      %84 = sbr.rel (0) target = $region33
    $region32: #{tpu_custom_call.1} parent=1 // pred_region
      %86 = vsyncadd [#allocation12], 0
      %s88 = sshll.u32 %s7, 4
      %s89 = int_to_ptr.hbm [resolvable:$true] %s88
      %s90 = sshll.u32 [#allocation11], 4
      %s91 = int_to_ptr.vmem [resolvable:$true] %s90
      %93 = dma.hbm_to_vmem [thread:$0]  %s89, 128, %s91, [#allocation12]
    $region33: #{tpu_custom_call.1} parent=1 // pred_fallthru
      _
    // Predicated region
    $region34: #{tpu_custom_call.1} parent=1 // pred_check
      _
    $region35: #{tpu_custom_call.1} parent=1 // pred_check_branch
      %95 = sbr.rel (0) target = $region37
    $region36: #{tpu_custom_call.1} parent=1 // pred_region
      %97 = vsyncadd [#allocation12], 0
      %s98 = sshll.u32 %s8, 4
      %s99 = int_to_ptr.hbm [resolvable:$true] %s98
      %s100 = sshll.u32 [#allocation13], 4
      %s101 = int_to_ptr.vmem [resolvable:$true] %s100
      %106 = dma.hbm_to_vmem [thread:$0]  %s99, 8192, %s101, [#allocation12], 256, 256, 16
    $region37: #{tpu_custom_call.1} parent=1 // pred_fallthru
      _
    // Predicated region
    $region38: #{tpu_custom_call.1} parent=1 // pred_check
      _
    $region39: #{tpu_custom_call.1} parent=1 // pred_check_branch
      %108 = sbr.rel (0) target = $region41
    $region40: #{tpu_custom_call.1} parent=1 // pred_region
      _
    $region41: #{tpu_custom_call.1} parent=1 // pred_fallthru
      _
    // Predicated region
    $region42: #{tpu_custom_call.1} parent=1 // pred_check
      _
    $region43: #{tpu_custom_call.1} parent=1 // pred_check_branch
      %110 = sbr.rel (0) target = $region45
    $region44: #{tpu_custom_call.1} parent=1 // pred_region
      %112 = dma.done [#allocation3], 2048
    $region45: #{tpu_custom_call.1} parent=1 // pred_fallthru
      _
    // Predicated region
    $region46: #{tpu_custom_call.1} parent=1 // pred_check
      _
    $region47: #{tpu_custom_call.1} parent=1 // pred_check_branch
      %114 = sbr.rel (0) target = $region49
    $region48: #{tpu_custom_call.1} parent=1 // pred_region
      %116 = dma.done [#allocation6], 128
    $region49: #{tpu_custom_call.1} parent=1 // pred_fallthru
      _
    // Predicated region
    $region50: #{tpu_custom_call.1} parent=1 // pred_check
      _
    $region51: #{tpu_custom_call.1} parent=1 // pred_check_branch
      %118 = sbr.rel (0) target = $region53
    $region52: #{tpu_custom_call.1} parent=1 // pred_region
      %120 = dma.done [#allocation6], 128
    $region53: #{tpu_custom_call.1} parent=1 // pred_fallthru
      _
    // Predicated region
    $region54: #{tpu_custom_call.1} parent=1 // pred_check
      _
    $region55: #{tpu_custom_call.1} parent=1 // pred_check_branch
      %122 = sbr.rel (0) target = $region57
    $region56: #{tpu_custom_call.1} parent=1 // pred_region
      %124 = dma.done [#allocation9], 4096
    $region57: #{tpu_custom_call.1} parent=1 // pred_fallthru
      _
    // Predicated region
    $region58: #{tpu_custom_call.1} parent=1 // pred_check
      _
    $region59: #{tpu_custom_call.1} parent=1 // pred_check_branch
      %126 = sbr.rel (0) target = $region61
    $region60: #{tpu_custom_call.1} parent=1 // pred_region
      %128 = dma.done [#allocation9], 128
    $region61: #{tpu_custom_call.1} parent=1 // pred_fallthru
      _
    // Predicated region
    $region62: #{tpu_custom_call.1} parent=1 // pred_check
      _
    $region63: #{tpu_custom_call.1} parent=1 // pred_check_branch
      %130 = sbr.rel (0) target = $region65
    $region64: #{tpu_custom_call.1} parent=1 // pred_region
      %132 = dma.done [#allocation12], 128
    $region65: #{tpu_custom_call.1} parent=1 // pred_fallthru
      _
    // Predicated region
    $region66: #{tpu_custom_call.1} parent=1 // pred_check
      _
    $region67: #{tpu_custom_call.1} parent=1 // pred_check_branch
      %134 = sbr.rel (0) target = $region69
    $region68: #{tpu_custom_call.1} parent=1 // pred_region
      %136 = dma.done [#allocation12], 8192
    $region69: #{tpu_custom_call.1} parent=1 // pred_fallthru
      _
    %v137 = vld [vmem:[%s0] sm:$0xff]
    %v138 = vld [vmem:[%s0 + $0x8] sm:$0xff]
    %v139 = vld [vmem:[%s0 + $0x10] sm:$0xff]
    %v140 = vld [vmem:[%s0 + $0x18] sm:$0xff]
    %v141 = vld [vmem:[%s0 + $0x20] sm:$0xff]
    %v142 = vld [vmem:[%s0 + $0x28] sm:$0xff]
    %v143 = vld [vmem:[%s0 + $0x30] sm:$0xff]
    %v144 = vld [vmem:[%s0 + $0x38] sm:$0xff]
    %v145 = vld [vmem:[%s0 + $0x40] sm:$0xff]
    %v146 = vld [vmem:[%s0 + $0x48] sm:$0xff]
    %v147 = vld [vmem:[%s0 + $0x50] sm:$0xff]
    %v148 = vld [vmem:[%s0 + $0x58] sm:$0xff]
    %v149 = vld [vmem:[%s0 + $0x60] sm:$0xff]
    %v150 = vld [vmem:[%s0 + $0x68] sm:$0xff]
    %v151 = vld [vmem:[%s0 + $0x70] sm:$0xff]
    %v152 = vld [vmem:[%s0 + $0x78] sm:$0xff]
    %v153 = vld [vmem:[%s1] sm:$0xff]
    %v154 = vld [vmem:[%s1 + $0x8] sm:$0xff]
    %v155 = vld [vmem:[%s1 + $0x10] sm:$0xff]
    %v156 = vld [vmem:[%s1 + $0x18] sm:$0xff]
    %v157 = vld [vmem:[%s1 + $0x20] sm:$0xff]
    %v158 = vld [vmem:[%s1 + $0x28] sm:$0xff]
    %v159 = vld [vmem:[%s1 + $0x30] sm:$0xff]
    %v160 = vld [vmem:[%s1 + $0x38] sm:$0xff]
    %v161 = vld [vmem:[%s1 + $0x40] sm:$0xff]
    %v162 = vld [vmem:[%s1 + $0x48] sm:$0xff]
    %v163 = vld [vmem:[%s1 + $0x50] sm:$0xff]
    %v164 = vld [vmem:[%s1 + $0x58] sm:$0xff]
    %v165 = vld [vmem:[%s1 + $0x60] sm:$0xff]
    %v166 = vld [vmem:[%s1 + $0x68] sm:$0xff]
    %v167 = vld [vmem:[%s1 + $0x70] sm:$0xff]
    %v168 = vld [vmem:[%s1 + $0x78] sm:$0xff]
    %v169 = vpack.c.bf16 %v154, %v153
    %v170 = vpack.c.bf16 %v156, %v155
    %v171 = vpack.c.bf16 %v158, %v157
    %v172 = vpack.c.bf16 %v160, %v159
    %v173 = vpack.c.bf16 %v162, %v161
    %v174 = vpack.c.bf16 %v164, %v163
    %v175 = vpack.c.bf16 %v166, %v165
    %v176 = vpack.c.bf16 %v168, %v167
    %v177 = vld [vmem:[#allocation2] sm:$0xff]
    %v178 = vld [vmem:[#allocation2 + $0x8] sm:$0xff]
    %v179 = vld [vmem:[#allocation2 + $0x10] sm:$0xff]
    %v180 = vld [vmem:[#allocation2 + $0x18] sm:$0xff]
    %v181 = vld [vmem:[#allocation2 + $0x20] sm:$0xff]
    %v182 = vld [vmem:[#allocation2 + $0x28] sm:$0xff]
    %v183 = vld [vmem:[#allocation2 + $0x30] sm:$0xff]
    %v184 = vld [vmem:[#allocation2 + $0x38] sm:$0xff]
    %v185 = vld [vmem:[#allocation2 + $0x40] sm:$0xff]
    %v186 = vld [vmem:[#allocation2 + $0x48] sm:$0xff]
    %v187 = vld [vmem:[#allocation2 + $0x50] sm:$0xff]
    %v188 = vld [vmem:[#allocation2 + $0x58] sm:$0xff]
    %v189 = vld [vmem:[#allocation2 + $0x60] sm:$0xff]
    %v190 = vld [vmem:[#allocation2 + $0x68] sm:$0xff]
    %v191 = vld [vmem:[#allocation2 + $0x70] sm:$0xff]
    %v192 = vld [vmem:[#allocation2 + $0x78] sm:$0xff]
    %v209 = vunpack.c.l.b16 %v177
    %v210 = vunpack.c.h.b16 %v177
    %v211 = vunpack.c.l.b16 %v178
    %v212 = vunpack.c.h.b16 %v178
    %v213 = vunpack.c.l.b16 %v179
    %v214 = vunpack.c.h.b16 %v179
    %v215 = vunpack.c.l.b16 %v180
    %v216 = vunpack.c.h.b16 %v180
    %v217 = vunpack.c.l.b16 %v181
    %v218 = vunpack.c.h.b16 %v181
    %v219 = vunpack.c.l.b16 %v182
    %v220 = vunpack.c.h.b16 %v182
    %v221 = vunpack.c.l.b16 %v183
    %v222 = vunpack.c.h.b16 %v183
    %v223 = vunpack.c.l.b16 %v184
    %v224 = vunpack.c.h.b16 %v184
    %v225 = vunpack.c.l.b16 %v185
    %v226 = vunpack.c.h.b16 %v185
    %v227 = vunpack.c.l.b16 %v186
    %v228 = vunpack.c.h.b16 %v186
    %v229 = vunpack.c.l.b16 %v187
    %v230 = vunpack.c.h.b16 %v187
    %v231 = vunpack.c.l.b16 %v188
    %v232 = vunpack.c.h.b16 %v188
    %v233 = vunpack.c.l.b16 %v189
    %v234 = vunpack.c.h.b16 %v189
    %v235 = vunpack.c.l.b16 %v190
    %v236 = vunpack.c.h.b16 %v190
    %v237 = vunpack.c.l.b16 %v191
    %v238 = vunpack.c.h.b16 %v191
    %v239 = vunpack.c.l.b16 %v192
    %v240 = vunpack.c.h.b16 %v192
    %v241 = vpack.c.b16 %v211, %v209
    %v242 = vpack.c.b16 %v212, %v210
    %v243 = vpack.c.b16 %v215, %v213
    %v244 = vpack.c.b16 %v216, %v214
    %v245 = vpack.c.b16 %v219, %v217
    %v246 = vpack.c.b16 %v220, %v218
    %v247 = vpack.c.b16 %v223, %v221
    %v248 = vpack.c.b16 %v224, %v222
    %v249 = vpack.c.b16 %v227, %v225
    %v250 = vpack.c.b16 %v228, %v226
    %v251 = vpack.c.b16 %v231, %v229
    %v252 = vpack.c.b16 %v232, %v230
    %v253 = vpack.c.b16 %v235, %v233
    %v254 = vpack.c.b16 %v236, %v234
    %v255 = vpack.c.b16 %v239, %v237
    %v256 = vpack.c.b16 %v240, %v238
    %273 = vmatpush.bf16.msra.mxu0 %v255
    %274 = vmatpush.bf16.msra.mxu0 %v253
    %275 = vmatpush.bf16.msra.mxu0 %v251
    %276 = vmatpush.bf16.msra.mxu0 %v249
    %277 = vmatpush.bf16.msra.mxu0 %v247
    %278 = vmatpush.bf16.msra.mxu0 %v245
    %279 = vmatpush.bf16.msra.mxu0 %v243
    %280 = vmatpush.bf16.msra.mxu0 %v241
    %281 = vmatmul.bf16.gmra.mxu0 %v169
    %v282 = vpop.f32.mrf.mxu0
    %v283 = vadd.f32 0.0, %v282
    %v284 = vpop.f32.mrf.mxu0
    %v285 = vadd.f32 0.0, %v284
    %286 = vmatmul.bf16.gmra.mxu0 %v170
    %v287 = vpop.f32.mrf.mxu0
    %v288 = vadd.f32 0.0, %v287
    %v289 = vpop.f32.mrf.mxu0
    %v290 = vadd.f32 0.0, %v289
    %291 = vmatmul.bf16.gmra.mxu0 %v171
    %v292 = vpop.f32.mrf.mxu0
    %v293 = vadd.f32 0.0, %v292
    %v294 = vpop.f32.mrf.mxu0
    %v295 = vadd.f32 0.0, %v294
    %296 = vmatmul.bf16.gmra.mxu0 %v172
    %v297 = vpop.f32.mrf.mxu0
    %v298 = vadd.f32 0.0, %v297
    %v299 = vpop.f32.mrf.mxu0
    %v300 = vadd.f32 0.0, %v299
    %301 = vmatmul.bf16.gmra.mxu0 %v173
    %v302 = vpop.f32.mrf.mxu0
    %v303 = vadd.f32 0.0, %v302
    %v304 = vpop.f32.mrf.mxu0
    %v305 = vadd.f32 0.0, %v304
    %306 = vmatmul.bf16.gmra.mxu0 %v174
    %v307 = vpop.f32.mrf.mxu0
    %v308 = vadd.f32 0.0, %v307
    %v309 = vpop.f32.mrf.mxu0
    %v310 = vadd.f32 0.0, %v309
    %311 = vmatmul.bf16.gmra.mxu0 %v175
    %v312 = vpop.f32.mrf.mxu0
    %v313 = vadd.f32 0.0, %v312
    %v314 = vpop.f32.mrf.mxu0
    %v315 = vadd.f32 0.0, %v314
    %316 = vmatmul.bf16.gmra.mxu0 %v176
    %v317 = vpop.f32.mrf.mxu0
    %v318 = vadd.f32 0.0, %v317
    %v319 = vpop.f32.mrf.mxu0
    %v320 = vadd.f32 0.0, %v319
    %321 = vdwg.mxu0
    %322 = vmatpush.bf16.msra.mxu0 %v256
    %323 = vmatpush.bf16.msra.mxu0 %v254
    %324 = vmatpush.bf16.msra.mxu0 %v252
    %325 = vmatpush.bf16.msra.mxu0 %v250
    %326 = vmatpush.bf16.msra.mxu0 %v248
    %327 = vmatpush.bf16.msra.mxu0 %v246
    %328 = vmatpush.bf16.msra.mxu0 %v244
    %329 = vmatpush.bf16.msra.mxu0 %v242
    %330 = vmatmul.bf16.gmra.mxu0 %v169
    %v331 = vpop.f32.mrf.mxu0
    %v332 = vadd.f32 0.0, %v331
    %v333 = vpop.f32.mrf.mxu0
    %v334 = vadd.f32 0.0, %v333
    %335 = vmatmul.bf16.gmra.mxu0 %v170
    %v336 = vpop.f32.mrf.mxu0
    %v337 = vadd.f32 0.0, %v336
    %v338 = vpop.f32.mrf.mxu0
    %v339 = vadd.f32 0.0, %v338
    %340 = vmatmul.bf16.gmra.mxu0 %v171
    %v341 = vpop.f32.mrf.mxu0
    %v342 = vadd.f32 0.0, %v341
    %v343 = vpop.f32.mrf.mxu0
    %v344 = vadd.f32 0.0, %v343
    %345 = vmatmul.bf16.gmra.mxu0 %v172
    %v346 = vpop.f32.mrf.mxu0
    %v347 = vadd.f32 0.0, %v346
    %v348 = vpop.f32.mrf.mxu0
    %v349 = vadd.f32 0.0, %v348
    %350 = vmatmul.bf16.gmra.mxu0 %v173
    %v351 = vpop.f32.mrf.mxu0
    %v352 = vadd.f32 0.0, %v351
    %v353 = vpop.f32.mrf.mxu0
    %v354 = vadd.f32 0.0, %v353
    %355 = vmatmul.bf16.gmra.mxu0 %v174
    %v356 = vpop.f32.mrf.mxu0
    %v357 = vadd.f32 0.0, %v356
    %v358 = vpop.f32.mrf.mxu0
    %v359 = vadd.f32 0.0, %v358
    %360 = vmatmul.bf16.gmra.mxu0 %v175
    %v361 = vpop.f32.mrf.mxu0
    %v362 = vadd.f32 0.0, %v361
    %v363 = vpop.f32.mrf.mxu0
    %v364 = vadd.f32 0.0, %v363
    %365 = vmatmul.bf16.gmra.mxu0 %v176
    %v366 = vpop.f32.mrf.mxu0
    %v367 = vadd.f32 0.0, %v366
    %v368 = vpop.f32.mrf.mxu0
    %v369 = vadd.f32 0.0, %v368
    %370 = vdwg.mxu0
    %v371 = vadd.f32 %v283, %v285
    %v372 = vadd.f32 %v371, %v288
    %v373 = vadd.f32 %v372, %v290
    %v374 = vadd.f32 %v373, %v293
    %v375 = vadd.f32 %v374, %v295
    %v376 = vadd.f32 %v375, %v298
    %v377 = vadd.f32 %v376, %v300
    %v378 = vadd.f32 %v377, %v303
    %v379 = vadd.f32 %v378, %v305
    %v380 = vadd.f32 %v379, %v308
    %v381 = vadd.f32 %v380, %v310
    %v382 = vadd.f32 %v381, %v313
    %v383 = vadd.f32 %v382, %v315
    %v384 = vadd.f32 %v383, %v318
    %v385 = vadd.f32 %v384, %v320
    %v386 = vrot.slane %v385, 4
    %v387 = vadd.f32 %v385, %v386
    %v388 = vrot.slane %v387, 2
    %v389 = vadd.f32 %v387, %v388
    %v390 = vrot.slane %v389, 1
    %v391 = vadd.f32 %v389, %v390
    %v392 = vadd.f32 %v332, %v334
    %v393 = vadd.f32 %v392, %v337
    %v394 = vadd.f32 %v393, %v339
    %v395 = vadd.f32 %v394, %v342
    %v396 = vadd.f32 %v395, %v344
    %v397 = vadd.f32 %v396, %v347
    %v398 = vadd.f32 %v397, %v349
    %v399 = vadd.f32 %v398, %v352
    %v400 = vadd.f32 %v399, %v354
    %v401 = vadd.f32 %v400, %v357
    %v402 = vadd.f32 %v401, %v359
    %v403 = vadd.f32 %v402, %v362
    %v404 = vadd.f32 %v403, %v364
    %v405 = vadd.f32 %v404, %v367
    %v406 = vadd.f32 %v405, %v369
    %v407 = vrot.slane %v406, 4
    %v408 = vadd.f32 %v406, %v407
    %v409 = vrot.slane %v408, 2
    %v410 = vadd.f32 %v408, %v409
    %v411 = vrot.slane %v410, 1
    %v412 = vadd.f32 %v410, %v411
    %v413 = vrcp.pop 128.0
    %v414 = vmul.f32 128.0, %v413
    %v415 = vsub.f32 1.0, %v414
    %v416 = vmul.f32 %v413, %v415
    %v417 = vadd.f32 %v413, %v416
    %vm418 = vweird.f32 %v413
    %v419 = vsel %vm418, %v413, %v417
    %v420 = vmul.f32 %v391, %v419
    %v421 = vmul.f32 %v412, %v419
    %v422 = vmul.f32 %v283, %v283
    %v423 = vmul.f32 %v332, %v332
    %v424 = vmul.f32 %v285, %v285
    %v425 = vmul.f32 %v334, %v334
    %v426 = vmul.f32 %v288, %v288
    %v427 = vmul.f32 %v337, %v337
    %v428 = vmul.f32 %v290, %v290
    %v429 = vmul.f32 %v339, %v339
    %v430 = vmul.f32 %v293, %v293
    %v431 = vmul.f32 %v342, %v342
    %v432 = vmul.f32 %v295, %v295
    %v433 = vmul.f32 %v344, %v344
    %v434 = vmul.f32 %v298, %v298
    %v435 = vmul.f32 %v347, %v347
    %v436 = vmul.f32 %v300, %v300
    %v437 = vmul.f32 %v349, %v349
    %v438 = vmul.f32 %v303, %v303
    %v439 = vmul.f32 %v352, %v352
    %v440 = vmul.f32 %v305, %v305
    %v441 = vmul.f32 %v354, %v354
    %v442 = vmul.f32 %v308, %v308
    %v443 = vmul.f32 %v357, %v357
    %v444 = vmul.f32 %v310, %v310
    %v445 = vmul.f32 %v359, %v359
    %v446 = vmul.f32 %v313, %v313
    %v447 = vmul.f32 %v362, %v362
    %v448 = vmul.f32 %v315, %v315
    %v449 = vmul.f32 %v364, %v364
    %v450 = vmul.f32 %v318, %v318
    %v451 = vmul.f32 %v367, %v367
    %v452 = vmul.f32 %v320, %v320
    %v453 = vmul.f32 %v369, %v369
    %v454 = vadd.f32 %v422, %v424
    %v455 = vadd.f32 %v454, %v426
    %v456 = vadd.f32 %v455, %v428
    %v457 = vadd.f32 %v456, %v430
    %v458 = vadd.f32 %v457, %v432
    %v459 = vadd.f32 %v458, %v434
    %v460 = vadd.f32 %v459, %v436
    %v461 = vadd.f32 %v460, %v438
    %v462 = vadd.f32 %v461, %v440
    %v463 = vadd.f32 %v462, %v442
    %v464 = vadd.f32 %v463, %v444
    %v465 = vadd.f32 %v464, %v446
    %v466 = vadd.f32 %v465, %v448
    %v467 = vadd.f32 %v466, %v450
    %v468 = vadd.f32 %v467, %v452
    %v469 = vrot.slane %v468, 4
    %v470 = vadd.f32 %v468, %v469
    %v471 = vrot.slane %v470, 2
    %v472 = vadd.f32 %v470, %v471
    %v473 = vrot.slane %v472, 1
    %v474 = vadd.f32 %v472, %v473
    %v475 = vadd.f32 %v423, %v425
    %v476 = vadd.f32 %v475, %v427
    %v477 = vadd.f32 %v476, %v429
    %v478 = vadd.f32 %v477, %v431
    %v479 = vadd.f32 %v478, %v433
    %v480 = vadd.f32 %v479, %v435
    %v481 = vadd.f32 %v480, %v437
    %v482 = vadd.f32 %v481, %v439
    %v483 = vadd.f32 %v482, %v441
    %v484 = vadd.f32 %v483, %v443
    %v485 = vadd.f32 %v484, %v445
    %v486 = vadd.f32 %v485, %v447
    %v487 = vadd.f32 %v486, %v449
    %v488 = vadd.f32 %v487, %v451
    %v489 = vadd.f32 %v488, %v453
    %v490 = vrot.slane %v489, 4
    %v491 = vadd.f32 %v489, %v490
    %v492 = vrot.slane %v491, 2
    %v493 = vadd.f32 %v491, %v492
    %v494 = vrot.slane %v493, 1
    %v495 = vadd.f32 %v493, %v494
    %v496 = vmul.f32 %v474, %v419
    %v497 = vmul.f32 %v495, %v419
    %v498 = vmul.f32 %v420, %v420
    %v499 = vmul.f32 %v421, %v421
    %v500 = vsub.f32 %v496, %v498
    %v501 = vsub.f32 %v497, %v499
    %v502 = vmax.f32 %v500, 0.0
    %v503 = vmax.f32 %v501, 0.0
    %v504 = vadd.f32 %v502, 1e-05
    %v505 = vadd.f32 %v503, 1e-05
    %v506 = vrsqrt.pop %v504
    %v507 = vmul.f32 %v506, %v504
    %v508 = vmul.f32 %v507, %v506
    %v509 = vmul.f32 0.5, %v508
    %v510 = vsub.f32 1.5, %v509
    %v511 = vmul.f32 %v506, %v510
    %vm512 = vweird.f32 %v504
    %vm513 = vweird.f32 %v506
    %vm514 = vmor %vm512, %vm513
    %v515 = vsel %vm514, %v506, %v511
    %v516 = vrsqrt.pop %v505
    %v517 = vmul.f32 %v516, %v505
    %v518 = vmul.f32 %v517, %v516
    %v519 = vmul.f32 0.5, %v518
    %v520 = vsub.f32 1.5, %v519
    %v521 = vmul.f32 %v516, %v520
    %vm522 = vweird.f32 %v505
    %vm523 = vweird.f32 %v516
    %vm524 = vmor %vm522, %vm523
    %v525 = vsel %vm524, %v516, %v521
    %v526 = vld [vmem:[#allocation5] ss:$4 sm:$0x3]
    %vm527 = vcmp.eq.s32.totalorder %v137, 1
    %vm528 = vcmp.eq.s32.totalorder %v138, 1
    %vm529 = vcmp.eq.s32.totalorder %v139, 1
    %vm530 = vcmp.eq.s32.totalorder %v140, 1
    %vm531 = vcmp.eq.s32.totalorder %v141, 1
    %vm532 = vcmp.eq.s32.totalorder %v142, 1
    %vm533 = vcmp.eq.s32.totalorder %v143, 1
    %vm534 = vcmp.eq.s32.totalorder %v144, 1
    %vm535 = vcmp.eq.s32.totalorder %v145, 1
    %vm536 = vcmp.eq.s32.totalorder %v146, 1
    %vm537 = vcmp.eq.s32.totalorder %v147, 1
    %vm538 = vcmp.eq.s32.totalorder %v148, 1
    %vm539 = vcmp.eq.s32.totalorder %v149, 1
    %vm540 = vcmp.eq.s32.totalorder %v150, 1
    %vm541 = vcmp.eq.s32.totalorder %v151, 1
    %vm542 = vcmp.eq.s32.totalorder %v152, 1
    %s543 = scalar_lea.vmem [#allocation5], 1
    %v544 = vld [vmem:[%s543] ss:$4 sm:$0x3]
    %v545 = vsel %vm527, 1, 0
    %v546 = vsel %vm528, 1, 0
    %v547 = vsel %vm529, 1, 0
    %v548 = vsel %vm530, 1, 0
    %v549 = vsel %vm531, 1, 0
    %v550 = vsel %vm532, 1, 0
    %v551 = vsel %vm533, 1, 0
    %v552 = vsel %vm534, 1, 0
    %v553 = vsel %vm535, 1, 0
    %v554 = vsel %vm536, 1, 0
    %v555 = vsel %vm537, 1, 0
    %v556 = vsel %vm538, 1, 0
    %v557 = vsel %vm539, 1, 0
    %v558 = vsel %vm540, 1, 0
    %v559 = vsel %vm541, 1, 0
    %v560 = vsel %vm542, 1, 0
    %561 = vset.pattern.permute.xlu0 0
    %562 = vperm.xlu0 %561, %v545
    %v563 = vpop.permute.xlu0 %562
    %564 = vset.pattern.permute.xlu0 0
    %565 = vperm.xlu0 %564, %v546
    %v566 = vpop.permute.xlu0 %565
    %567 = vset.pattern.permute.xlu0 0
    %568 = vperm.xlu0 %567, %v547
    %v569 = vpop.permute.xlu0 %568
    %570 = vset.pattern.permute.xlu0 0
    %571 = vperm.xlu0 %570, %v548
    %v572 = vpop.permute.xlu0 %571
    %573 = vset.pattern.permute.xlu0 0
    %574 = vperm.xlu0 %573, %v549
    %v575 = vpop.permute.xlu0 %574
    %576 = vset.pattern.permute.xlu0 0
    %577 = vperm.xlu0 %576, %v550
    %v578 = vpop.permute.xlu0 %577
    %579 = vset.pattern.permute.xlu0 0
    %580 = vperm.xlu0 %579, %v551
    %v581 = vpop.permute.xlu0 %580
    %582 = vset.pattern.permute.xlu0 0
    %583 = vperm.xlu0 %582, %v552
    %v584 = vpop.permute.xlu0 %583
    %585 = vset.pattern.permute.xlu0 0
    %586 = vperm.xlu0 %585, %v553
    %v587 = vpop.permute.xlu0 %586
    %588 = vset.pattern.permute.xlu0 0
    %589 = vperm.xlu0 %588, %v554
    %v590 = vpop.permute.xlu0 %589
    %591 = vset.pattern.permute.xlu0 0
    %592 = vperm.xlu0 %591, %v555
    %v593 = vpop.permute.xlu0 %592
    %594 = vset.pattern.permute.xlu0 0
    %595 = vperm.xlu0 %594, %v556
    %v596 = vpop.permute.xlu0 %595
    %597 = vset.pattern.permute.xlu0 0
    %598 = vperm.xlu0 %597, %v557
    %v599 = vpop.permute.xlu0 %598
    %600 = vset.pattern.permute.xlu0 0
    %601 = vperm.xlu0 %600, %v558
    %v602 = vpop.permute.xlu0 %601
    %603 = vset.pattern.permute.xlu0 0
    %604 = vperm.xlu0 %603, %v559
    %v605 = vpop.permute.xlu0 %604
    %606 = vset.pattern.permute.xlu0 0
    %607 = vperm.xlu0 %606, %v560
    %v608 = vpop.permute.xlu0 %607
    %vm609 = vcmp.eq.s32.totalorder %v563, 1
    %vm610 = vcmp.eq.s32.totalorder %v566, 1
    %vm611 = vcmp.eq.s32.totalorder %v569, 1
    %vm612 = vcmp.eq.s32.totalorder %v572, 1
    %vm613 = vcmp.eq.s32.totalorder %v575, 1
    %vm614 = vcmp.eq.s32.totalorder %v578, 1
    %vm615 = vcmp.eq.s32.totalorder %v581, 1
    %vm616 = vcmp.eq.s32.totalorder %v584, 1
    %vm617 = vcmp.eq.s32.totalorder %v587, 1
    %vm618 = vcmp.eq.s32.totalorder %v590, 1
    %vm619 = vcmp.eq.s32.totalorder %v593, 1
    %vm620 = vcmp.eq.s32.totalorder %v596, 1
    %vm621 = vcmp.eq.s32.totalorder %v599, 1
    %vm622 = vcmp.eq.s32.totalorder %v602, 1
    %vm623 = vcmp.eq.s32.totalorder %v605, 1
    %vm624 = vcmp.eq.s32.totalorder %v608, 1
    %v626 = vperm.slane %v544, 0
    %v627 = vperm.slane %v544, 1
    %v631 = vperm.slane %v526, 0
    %v632 = vperm.slane %v526, 1
    %v635 = vsel %vm609, %v626, %v631
    %v636 = vsel %vm609, %v627, %v632
    %v637 = vsel %vm610, %v626, %v631
    %v638 = vsel %vm610, %v627, %v632
    %v639 = vsel %vm611, %v626, %v631
    %v640 = vsel %vm611, %v627, %v632
    %v641 = vsel %vm612, %v626, %v631
    %v642 = vsel %vm612, %v627, %v632
    %v643 = vsel %vm613, %v626, %v631
    %v644 = vsel %vm613, %v627, %v632
    %v645 = vsel %vm614, %v626, %v631
    %v646 = vsel %vm614, %v627, %v632
    %v647 = vsel %vm615, %v626, %v631
    %v648 = vsel %vm615, %v627, %v632
    %v649 = vsel %vm616, %v626, %v631
    %v650 = vsel %vm616, %v627, %v632
    %v651 = vsel %vm617, %v626, %v631
    %v652 = vsel %vm617, %v627, %v632
    %v653 = vsel %vm618, %v626, %v631
    %v654 = vsel %vm618, %v627, %v632
    %v655 = vsel %vm619, %v626, %v631
    %v656 = vsel %vm619, %v627, %v632
    %v657 = vsel %vm620, %v626, %v631
    %v658 = vsel %vm620, %v627, %v632
    %v659 = vsel %vm621, %v626, %v631
    %v660 = vsel %vm621, %v627, %v632
    %v661 = vsel %vm622, %v626, %v631
    %v662 = vsel %vm622, %v627, %v632
    %v663 = vsel %vm623, %v626, %v631
    %v664 = vsel %vm623, %v627, %v632
    %v665 = vsel %vm624, %v626, %v631
    %v666 = vsel %vm624, %v627, %v632
    %vm667 = vcmp.eq.s32.totalorder %v137, 2
    %vm668 = vcmp.eq.s32.totalorder %v138, 2
    %vm669 = vcmp.eq.s32.totalorder %v139, 2
    %vm670 = vcmp.eq.s32.totalorder %v140, 2
    %vm671 = vcmp.eq.s32.totalorder %v141, 2
    %vm672 = vcmp.eq.s32.totalorder %v142, 2
    %vm673 = vcmp.eq.s32.totalorder %v143, 2
    %vm674 = vcmp.eq.s32.totalorder %v144, 2
    %vm675 = vcmp.eq.s32.totalorder %v145, 2
    %vm676 = vcmp.eq.s32.totalorder %v146, 2
    %vm677 = vcmp.eq.s32.totalorder %v147, 2
    %vm678 = vcmp.eq.s32.totalorder %v148, 2
    %vm679 = vcmp.eq.s32.totalorder %v149, 2
    %vm680 = vcmp.eq.s32.totalorder %v150, 2
    %vm681 = vcmp.eq.s32.totalorder %v151, 2
    %vm682 = vcmp.eq.s32.totalorder %v152, 2
    %s683 = scalar_lea.vmem [#allocation5], 2
    %v684 = vld [vmem:[%s683] ss:$4 sm:$0x3]
    %v685 = vsel %vm667, 1, 0
    %v686 = vsel %vm668, 1, 0
    %v687 = vsel %vm669, 1, 0
    %v688 = vsel %vm670, 1, 0
    %v689 = vsel %vm671, 1, 0
    %v690 = vsel %vm672, 1, 0
    %v691 = vsel %vm673, 1, 0
    %v692 = vsel %vm674, 1, 0
    %v693 = vsel %vm675, 1, 0
    %v694 = vsel %vm676, 1, 0
    %v695 = vsel %vm677, 1, 0
    %v696 = vsel %vm678, 1, 0
    %v697 = vsel %vm679, 1, 0
    %v698 = vsel %vm680, 1, 0
    %v699 = vsel %vm681, 1, 0
    %v700 = vsel %vm682, 1, 0
    %701 = vset.pattern.permute.xlu0 0
    %702 = vperm.xlu0 %701, %v685
    %v703 = vpop.permute.xlu0 %702
    %704 = vset.pattern.permute.xlu0 0
    %705 = vperm.xlu0 %704, %v686
    %v706 = vpop.permute.xlu0 %705
    %707 = vset.pattern.permute.xlu0 0
    %708 = vperm.xlu0 %707, %v687
    %v709 = vpop.permute.xlu0 %708
    %710 = vset.pattern.permute.xlu0 0
    %711 = vperm.xlu0 %710, %v688
    %v712 = vpop.permute.xlu0 %711
    %713 = vset.pattern.permute.xlu0 0
    %714 = vperm.xlu0 %713, %v689
    %v715 = vpop.permute.xlu0 %714
    %716 = vset.pattern.permute.xlu0 0
    %717 = vperm.xlu0 %716, %v690
    %v718 = vpop.permute.xlu0 %717
    %719 = vset.pattern.permute.xlu0 0
    %720 = vperm.xlu0 %719, %v691
    %v721 = vpop.permute.xlu0 %720
    %722 = vset.pattern.permute.xlu0 0
    %723 = vperm.xlu0 %722, %v692
    %v724 = vpop.permute.xlu0 %723
    %725 = vset.pattern.permute.xlu0 0
    %726 = vperm.xlu0 %725, %v693
    %v727 = vpop.permute.xlu0 %726
    %728 = vset.pattern.permute.xlu0 0
    %729 = vperm.xlu0 %728, %v694
    %v730 = vpop.permute.xlu0 %729
    %731 = vset.pattern.permute.xlu0 0
    %732 = vperm.xlu0 %731, %v695
    %v733 = vpop.permute.xlu0 %732
    %734 = vset.pattern.permute.xlu0 0
    %735 = vperm.xlu0 %734, %v696
    %v736 = vpop.permute.xlu0 %735
    %737 = vset.pattern.permute.xlu0 0
    %738 = vperm.xlu0 %737, %v697
    %v739 = vpop.permute.xlu0 %738
    %740 = vset.pattern.permute.xlu0 0
    %741 = vperm.xlu0 %740, %v698
    %v742 = vpop.permute.xlu0 %741
    %743 = vset.pattern.permute.xlu0 0
    %744 = vperm.xlu0 %743, %v699
    %v745 = vpop.permute.xlu0 %744
    %746 = vset.pattern.permute.xlu0 0
    %747 = vperm.xlu0 %746, %v700
    %v748 = vpop.permute.xlu0 %747
    %vm749 = vcmp.eq.s32.totalorder %v703, 1
    %vm750 = vcmp.eq.s32.totalorder %v706, 1
    %vm751 = vcmp.eq.s32.totalorder %v709, 1
    %vm752 = vcmp.eq.s32.totalorder %v712, 1
    %vm753 = vcmp.eq.s32.totalorder %v715, 1
    %vm754 = vcmp.eq.s32.totalorder %v718, 1
    %vm755 = vcmp.eq.s32.totalorder %v721, 1
    %vm756 = vcmp.eq.s32.totalorder %v724, 1
    %vm757 = vcmp.eq.s32.totalorder %v727, 1
    %vm758 = vcmp.eq.s32.totalorder %v730, 1
    %vm759 = vcmp.eq.s32.totalorder %v733, 1
    %vm760 = vcmp.eq.s32.totalorder %v736, 1
    %vm761 = vcmp.eq.s32.totalorder %v739, 1
    %vm762 = vcmp.eq.s32.totalorder %v742, 1
    %vm763 = vcmp.eq.s32.totalorder %v745, 1
    %vm764 = vcmp.eq.s32.totalorder %v748, 1
    %v766 = vperm.slane %v684, 0
    %v767 = vperm.slane %v684, 1
    %v770 = vsel %vm749, %v766, %v635
    %v771 = vsel %vm749, %v767, %v636
    %v772 = vsel %vm750, %v766, %v637
    %v773 = vsel %vm750, %v767, %v638
    %v774 = vsel %vm751, %v766, %v639
    %v775 = vsel %vm751, %v767, %v640
    %v776 = vsel %vm752, %v766, %v641
    %v777 = vsel %vm752, %v767, %v642
    %v778 = vsel %vm753, %v766, %v643
    %v779 = vsel %vm753, %v767, %v644
    %v780 = vsel %vm754, %v766, %v645
    %v781 = vsel %vm754, %v767, %v646
    %v782 = vsel %vm755, %v766, %v647
    %v783 = vsel %vm755, %v767, %v648
    %v784 = vsel %vm756, %v766, %v649
    %v785 = vsel %vm756, %v767, %v650
    %v786 = vsel %vm757, %v766, %v651
    %v787 = vsel %vm757, %v767, %v652
    %v788 = vsel %vm758, %v766, %v653
    %v789 = vsel %vm758, %v767, %v654
    %v790 = vsel %vm759, %v766, %v655
    %v791 = vsel %vm759, %v767, %v656
    %v792 = vsel %vm760, %v766, %v657
    %v793 = vsel %vm760, %v767, %v658
    %v794 = vsel %vm761, %v766, %v659
    %v795 = vsel %vm761, %v767, %v660
    %v796 = vsel %vm762, %v766, %v661
    %v797 = vsel %vm762, %v767, %v662
    %v798 = vsel %vm763, %v766, %v663
    %v799 = vsel %vm763, %v767, %v664
    %v800 = vsel %vm764, %v766, %v665
    %v801 = vsel %vm764, %v767, %v666
    %vm802 = vcmp.eq.s32.totalorder %v137, 3
    %vm803 = vcmp.eq.s32.totalorder %v138, 3
    %vm804 = vcmp.eq.s32.totalorder %v139, 3
    %vm805 = vcmp.eq.s32.totalorder %v140, 3
    %vm806 = vcmp.eq.s32.totalorder %v141, 3
    %vm807 = vcmp.eq.s32.totalorder %v142, 3
    %vm808 = vcmp.eq.s32.totalorder %v143, 3
    %vm809 = vcmp.eq.s32.totalorder %v144, 3
    %vm810 = vcmp.eq.s32.totalorder %v145, 3
    %vm811 = vcmp.eq.s32.totalorder %v146, 3
    %vm812 = vcmp.eq.s32.totalorder %v147, 3
    %vm813 = vcmp.eq.s32.totalorder %v148, 3
    %vm814 = vcmp.eq.s32.totalorder %v149, 3
    %vm815 = vcmp.eq.s32.totalorder %v150, 3
    %vm816 = vcmp.eq.s32.totalorder %v151, 3
    %vm817 = vcmp.eq.s32.totalorder %v152, 3
    %s818 = scalar_lea.vmem [#allocation5], 3
    %v819 = vld [vmem:[%s818] ss:$4 sm:$0x3]
    %v820 = vsel %vm802, 1, 0
    %v821 = vsel %vm803, 1, 0
    %v822 = vsel %vm804, 1, 0
    %v823 = vsel %vm805, 1, 0
    %v824 = vsel %vm806, 1, 0
    %v825 = vsel %vm807, 1, 0
    %v826 = vsel %vm808, 1, 0
    %v827 = vsel %vm809, 1, 0
    %v828 = vsel %vm810, 1, 0
    %v829 = vsel %vm811, 1, 0
    %v830 = vsel %vm812, 1, 0
    %v831 = vsel %vm813, 1, 0
    %v832 = vsel %vm814, 1, 0
    %v833 = vsel %vm815, 1, 0
    %v834 = vsel %vm816, 1, 0
    %v835 = vsel %vm817, 1, 0
    %836 = vset.pattern.permute.xlu0 0
    %837 = vperm.xlu0 %836, %v820
    %v838 = vpop.permute.xlu0 %837
    %839 = vset.pattern.permute.xlu0 0
    %840 = vperm.xlu0 %839, %v821
    %v841 = vpop.permute.xlu0 %840
    %842 = vset.pattern.permute.xlu0 0
    %843 = vperm.xlu0 %842, %v822
    %v844 = vpop.permute.xlu0 %843
    %845 = vset.pattern.permute.xlu0 0
    %846 = vperm.xlu0 %845, %v823
    %v847 = vpop.permute.xlu0 %846
    %848 = vset.pattern.permute.xlu0 0
    %849 = vperm.xlu0 %848, %v824
    %v850 = vpop.permute.xlu0 %849
    %851 = vset.pattern.permute.xlu0 0
    %852 = vperm.xlu0 %851, %v825
    %v853 = vpop.permute.xlu0 %852
    %854 = vset.pattern.permute.xlu0 0
    %855 = vperm.xlu0 %854, %v826
    %v856 = vpop.permute.xlu0 %855
    %857 = vset.pattern.permute.xlu0 0
    %858 = vperm.xlu0 %857, %v827
    %v859 = vpop.permute.xlu0 %858
    %860 = vset.pattern.permute.xlu0 0
    %861 = vperm.xlu0 %860, %v828
    %v862 = vpop.permute.xlu0 %861
    %863 = vset.pattern.permute.xlu0 0
    %864 = vperm.xlu0 %863, %v829
    %v865 = vpop.permute.xlu0 %864
    %866 = vset.pattern.permute.xlu0 0
    %867 = vperm.xlu0 %866, %v830
    %v868 = vpop.permute.xlu0 %867
    %869 = vset.pattern.permute.xlu0 0
    %870 = vperm.xlu0 %869, %v831
    %v871 = vpop.permute.xlu0 %870
    %872 = vset.pattern.permute.xlu0 0
    %873 = vperm.xlu0 %872, %v832
    %v874 = vpop.permute.xlu0 %873
    %875 = vset.pattern.permute.xlu0 0
    %876 = vperm.xlu0 %875, %v833
    %v877 = vpop.permute.xlu0 %876
    %878 = vset.pattern.permute.xlu0 0
    %879 = vperm.xlu0 %878, %v834
    %v880 = vpop.permute.xlu0 %879
    %881 = vset.pattern.permute.xlu0 0
    %882 = vperm.xlu0 %881, %v835
    %v883 = vpop.permute.xlu0 %882
    %vm884 = vcmp.eq.s32.totalorder %v838, 1
    %vm885 = vcmp.eq.s32.totalorder %v841, 1
    %vm886 = vcmp.eq.s32.totalorder %v844, 1
    %vm887 = vcmp.eq.s32.totalorder %v847, 1
    %vm888 = vcmp.eq.s32.totalorder %v850, 1
    %vm889 = vcmp.eq.s32.totalorder %v853, 1
    %vm890 = vcmp.eq.s32.totalorder %v856, 1
    %vm891 = vcmp.eq.s32.totalorder %v859, 1
    %vm892 = vcmp.eq.s32.totalorder %v862, 1
    %vm893 = vcmp.eq.s32.totalorder %v865, 1
    %vm894 = vcmp.eq.s32.totalorder %v868, 1
    %vm895 = vcmp.eq.s32.totalorder %v871, 1
    %vm896 = vcmp.eq.s32.totalorder %v874, 1
    %vm897 = vcmp.eq.s32.totalorder %v877, 1
    %vm898 = vcmp.eq.s32.totalorder %v880, 1
    %vm899 = vcmp.eq.s32.totalorder %v883, 1
    %v901 = vperm.slane %v819, 0
    %v902 = vperm.slane %v819, 1
    %v905 = vsel %vm884, %v901, %v770
    %v906 = vsel %vm884, %v902, %v771
    %v907 = vsel %vm885, %v901, %v772
    %v908 = vsel %vm885, %v902, %v773
    %v909 = vsel %vm886, %v901, %v774
    %v910 = vsel %vm886, %v902, %v775
    %v911 = vsel %vm887, %v901, %v776
    %v912 = vsel %vm887, %v902, %v777
    %v913 = vsel %vm888, %v901, %v778
    %v914 = vsel %vm888, %v902, %v779
    %v915 = vsel %vm889, %v901, %v780
    %v916 = vsel %vm889, %v902, %v781
    %v917 = vsel %vm890, %v901, %v782
    %v918 = vsel %vm890, %v902, %v783
    %v919 = vsel %vm891, %v901, %v784
    %v920 = vsel %vm891, %v902, %v785
    %v921 = vsel %vm892, %v901, %v786
    %v922 = vsel %vm892, %v902, %v787
    %v923 = vsel %vm893, %v901, %v788
    %v924 = vsel %vm893, %v902, %v789
    %v925 = vsel %vm894, %v901, %v790
    %v926 = vsel %vm894, %v902, %v791
    %v927 = vsel %vm895, %v901, %v792
    %v928 = vsel %vm895, %v902, %v793
    %v929 = vsel %vm896, %v901, %v794
    %v930 = vsel %vm896, %v902, %v795
    %v931 = vsel %vm897, %v901, %v796
    %v932 = vsel %vm897, %v902, %v797
    %v933 = vsel %vm898, %v901, %v798
    %v934 = vsel %vm898, %v902, %v799
    %v935 = vsel %vm899, %v901, %v800
    %v936 = vsel %vm899, %v902, %v801
    %v937 = vld [vmem:[#allocation7] ss:$4 sm:$0x3]
    %s938 = scalar_lea.vmem [#allocation7], 1
    %v939 = vld [vmem:[%s938] ss:$4 sm:$0x3]
    %v941 = vperm.slane %v939, 0
    %v942 = vperm.slane %v939, 1
    %v946 = vperm.slane %v937, 0
    %v947 = vperm.slane %v937, 1
    %v950 = vsel %vm609, %v941, %v946
    %v951 = vsel %vm609, %v942, %v947
    %v952 = vsel %vm610, %v941, %v946
    %v953 = vsel %vm610, %v942, %v947
    %v954 = vsel %vm611, %v941, %v946
    %v955 = vsel %vm611, %v942, %v947
    %v956 = vsel %vm612, %v941, %v946
    %v957 = vsel %vm612, %v942, %v947
    %v958 = vsel %vm613, %v941, %v946
    %v959 = vsel %vm613, %v942, %v947
    %v960 = vsel %vm614, %v941, %v946
    %v961 = vsel %vm614, %v942, %v947
    %v962 = vsel %vm615, %v941, %v946
    %v963 = vsel %vm615, %v942, %v947
    %v964 = vsel %vm616, %v941, %v946
    %v965 = vsel %vm616, %v942, %v947
    %v966 = vsel %vm617, %v941, %v946
    %v967 = vsel %vm617, %v942, %v947
    %v968 = vsel %vm618, %v941, %v946
    %v969 = vsel %vm618, %v942, %v947
    %v970 = vsel %vm619, %v941, %v946
    %v971 = vsel %vm619, %v942, %v947
    %v972 = vsel %vm620, %v941, %v946
    %v973 = vsel %vm620, %v942, %v947
    %v974 = vsel %vm621, %v941, %v946
    %v975 = vsel %vm621, %v942, %v947
    %v976 = vsel %vm622, %v941, %v946
    %v977 = vsel %vm622, %v942, %v947
    %v978 = vsel %vm623, %v941, %v946
    %v979 = vsel %vm623, %v942, %v947
    %v980 = vsel %vm624, %v941, %v946
    %v981 = vsel %vm624, %v942, %v947
    %s982 = scalar_lea.vmem [#allocation7], 2
    %v983 = vld [vmem:[%s982] ss:$4 sm:$0x3]
    %v985 = vperm.slane %v983, 0
    %v986 = vperm.slane %v983, 1
    %v989 = vsel %vm749, %v985, %v950
    %v990 = vsel %vm749, %v986, %v951
    %v991 = vsel %vm750, %v985, %v952
    %v992 = vsel %vm750, %v986, %v953
    %v993 = vsel %vm751, %v985, %v954
    %v994 = vsel %vm751, %v986, %v955
    %v995 = vsel %vm752, %v985, %v956
    %v996 = vsel %vm752, %v986, %v957
    %v997 = vsel %vm753, %v985, %v958
    %v998 = vsel %vm753, %v986, %v959
    %v999 = vsel %vm754, %v985, %v960
    %v1000 = vsel %vm754, %v986, %v961
    %v1001 = vsel %vm755, %v985, %v962
    %v1002 = vsel %vm755, %v986, %v963
    %v1003 = vsel %vm756, %v985, %v964
    %v1004 = vsel %vm756, %v986, %v965
    %v1005 = vsel %vm757, %v985, %v966
    %v1006 = vsel %vm757, %v986, %v967
    %v1007 = vsel %vm758, %v985, %v968
    %v1008 = vsel %vm758, %v986, %v969
    %v1009 = vsel %vm759, %v985, %v970
    %v1010 = vsel %vm759, %v986, %v971
    %v1011 = vsel %vm760, %v985, %v972
    %v1012 = vsel %vm760, %v986, %v973
    %v1013 = vsel %vm761, %v985, %v974
    %v1014 = vsel %vm761, %v986, %v975
    %v1015 = vsel %vm762, %v985, %v976
    %v1016 = vsel %vm762, %v986, %v977
    %v1017 = vsel %vm763, %v985, %v978
    %v1018 = vsel %vm763, %v986, %v979
    %v1019 = vsel %vm764, %v985, %v980
    %v1020 = vsel %vm764, %v986, %v981
    %s1021 = scalar_lea.vmem [#allocation7], 3
    %v1022 = vld [vmem:[%s1021] ss:$4 sm:$0x3]
    %v1024 = vperm.slane %v1022, 0
    %v1025 = vperm.slane %v1022, 1
    %v1028 = vsel %vm884, %v1024, %v989
    %v1029 = vsel %vm884, %v1025, %v990
    %v1030 = vsel %vm885, %v1024, %v991
    %v1031 = vsel %vm885, %v1025, %v992
    %v1032 = vsel %vm886, %v1024, %v993
    %v1033 = vsel %vm886, %v1025, %v994
    %v1034 = vsel %vm887, %v1024, %v995
    %v1035 = vsel %vm887, %v1025, %v996
    %v1036 = vsel %vm888, %v1024, %v997
    %v1037 = vsel %vm888, %v1025, %v998
    %v1038 = vsel %vm889, %v1024, %v999
    %v1039 = vsel %vm889, %v1025, %v1000
    %v1040 = vsel %vm890, %v1024, %v1001
    %v1041 = vsel %vm890, %v1025, %v1002
    %v1042 = vsel %vm891, %v1024, %v1003
    %v1043 = vsel %vm891, %v1025, %v1004
    %v1044 = vsel %vm892, %v1024, %v1005
    %v1045 = vsel %vm892, %v1025, %v1006
    %v1046 = vsel %vm893, %v1024, %v1007
    %v1047 = vsel %vm893, %v1025, %v1008
    %v1048 = vsel %vm894, %v1024, %v1009
    %v1049 = vsel %vm894, %v1025, %v1010
    %v1050 = vsel %vm895, %v1024, %v1011
    %v1051 = vsel %vm895, %v1025, %v1012
    %v1052 = vsel %vm896, %v1024, %v1013
    %v1053 = vsel %vm896, %v1025, %v1014
    %v1054 = vsel %vm897, %v1024, %v1015
    %v1055 = vsel %vm897, %v1025, %v1016
    %v1056 = vsel %vm898, %v1024, %v1017
    %v1057 = vsel %vm898, %v1025, %v1018
    %v1058 = vsel %vm899, %v1024, %v1019
    %v1059 = vsel %vm899, %v1025, %v1020
    %v1060 = vmul.f32 %v905, %v515
    %v1061 = vmul.f32 %v906, %v525
    %v1062 = vmul.f32 %v907, %v515
    %v1063 = vmul.f32 %v908, %v525
    %v1064 = vmul.f32 %v909, %v515
    %v1065 = vmul.f32 %v910, %v525
    %v1066 = vmul.f32 %v911, %v515
    %v1067 = vmul.f32 %v912, %v525
    %v1068 = vmul.f32 %v913, %v515
    %v1069 = vmul.f32 %v914, %v525
    %v1070 = vmul.f32 %v915, %v515
    %v1071 = vmul.f32 %v916, %v525
    %v1072 = vmul.f32 %v917, %v515
    %v1073 = vmul.f32 %v918, %v525
    %v1074 = vmul.f32 %v919, %v515
    %v1075 = vmul.f32 %v920, %v525
    %v1076 = vmul.f32 %v921, %v515
    %v1077 = vmul.f32 %v922, %v525
    %v1078 = vmul.f32 %v923, %v515
    %v1079 = vmul.f32 %v924, %v525
    %v1080 = vmul.f32 %v925, %v515
    %v1081 = vmul.f32 %v926, %v525
    %v1082 = vmul.f32 %v927, %v515
    %v1083 = vmul.f32 %v928, %v525
    %v1084 = vmul.f32 %v929, %v515
    %v1085 = vmul.f32 %v930, %v525
    %v1086 = vmul.f32 %v931, %v515
    %v1087 = vmul.f32 %v932, %v525
    %v1088 = vmul.f32 %v933, %v515
    %v1089 = vmul.f32 %v934, %v525
    %v1090 = vmul.f32 %v935, %v515
    %v1091 = vmul.f32 %v936, %v525
    %v1092 = vmul.f32 %v1060, %v420
    %v1093 = vmul.f32 %v1061, %v421
    %v1094 = vmul.f32 %v1062, %v420
    %v1095 = vmul.f32 %v1063, %v421
    %v1096 = vmul.f32 %v1064, %v420
    %v1097 = vmul.f32 %v1065, %v421
    %v1098 = vmul.f32 %v1066, %v420
    %v1099 = vmul.f32 %v1067, %v421
    %v1100 = vmul.f32 %v1068, %v420
    %v1101 = vmul.f32 %v1069, %v421
    %v1102 = vmul.f32 %v1070, %v420
    %v1103 = vmul.f32 %v1071, %v421
    %v1104 = vmul.f32 %v1072, %v420
    %v1105 = vmul.f32 %v1073, %v421
    %v1106 = vmul.f32 %v1074, %v420
    %v1107 = vmul.f32 %v1075, %v421
    %v1108 = vmul.f32 %v1076, %v420
    %v1109 = vmul.f32 %v1077, %v421
    %v1110 = vmul.f32 %v1078, %v420
    %v1111 = vmul.f32 %v1079, %v421
    %v1112 = vmul.f32 %v1080, %v420
    %v1113 = vmul.f32 %v1081, %v421
    %v1114 = vmul.f32 %v1082, %v420
    %v1115 = vmul.f32 %v1083, %v421
    %v1116 = vmul.f32 %v1084, %v420
    %v1117 = vmul.f32 %v1085, %v421
    %v1118 = vmul.f32 %v1086, %v420
    %v1119 = vmul.f32 %v1087, %v421
    %v1120 = vmul.f32 %v1088, %v420
    %v1121 = vmul.f32 %v1089, %v421
    %v1122 = vmul.f32 %v1090, %v420
    %v1123 = vmul.f32 %v1091, %v421
    %v1124 = vsub.f32 %v1028, %v1092
    %v1125 = vsub.f32 %v1029, %v1093
    %v1126 = vsub.f32 %v1030, %v1094
    %v1127 = vsub.f32 %v1031, %v1095
    %v1128 = vsub.f32 %v1032, %v1096
    %v1129 = vsub.f32 %v1033, %v1097
    %v1130 = vsub.f32 %v1034, %v1098
    %v1131 = vsub.f32 %v1035, %v1099
    %v1132 = vsub.f32 %v1036, %v1100
    %v1133 = vsub.f32 %v1037, %v1101
    %v1134 = vsub.f32 %v1038, %v1102
    %v1135 = vsub.f32 %v1039, %v1103
    %v1136 = vsub.f32 %v1040, %v1104
    %v1137 = vsub.f32 %v1041, %v1105
    %v1138 = vsub.f32 %v1042, %v1106
    %v1139 = vsub.f32 %v1043, %v1107
    %v1140 = vsub.f32 %v1044, %v1108
    %v1141 = vsub.f32 %v1045, %v1109
    %v1142 = vsub.f32 %v1046, %v1110
    %v1143 = vsub.f32 %v1047, %v1111
    %v1144 = vsub.f32 %v1048, %v1112
    %v1145 = vsub.f32 %v1049, %v1113
    %v1146 = vsub.f32 %v1050, %v1114
    %v1147 = vsub.f32 %v1051, %v1115
    %v1148 = vsub.f32 %v1052, %v1116
    %v1149 = vsub.f32 %v1053, %v1117
    %v1150 = vsub.f32 %v1054, %v1118
    %v1151 = vsub.f32 %v1055, %v1119
    %v1152 = vsub.f32 %v1056, %v1120
    %v1153 = vsub.f32 %v1057, %v1121
    %v1154 = vsub.f32 %v1058, %v1122
    %v1155 = vsub.f32 %v1059, %v1123
    %v1156 = vmul.f32 %v1060, %v283
    %v1157 = vmul.f32 %v1061, %v332
    %v1158 = vmul.f32 %v1062, %v285
    %v1159 = vmul.f32 %v1063, %v334
    %v1160 = vmul.f32 %v1064, %v288
    %v1161 = vmul.f32 %v1065, %v337
    %v1162 = vmul.f32 %v1066, %v290
    %v1163 = vmul.f32 %v1067, %v339
    %v1164 = vmul.f32 %v1068, %v293
    %v1165 = vmul.f32 %v1069, %v342
    %v1166 = vmul.f32 %v1070, %v295
    %v1167 = vmul.f32 %v1071, %v344
    %v1168 = vmul.f32 %v1072, %v298
    %v1169 = vmul.f32 %v1073, %v347
    %v1170 = vmul.f32 %v1074, %v300
    %v1171 = vmul.f32 %v1075, %v349
    %v1172 = vmul.f32 %v1076, %v303
    %v1173 = vmul.f32 %v1077, %v352
    %v1174 = vmul.f32 %v1078, %v305
    %v1175 = vmul.f32 %v1079, %v354
    %v1176 = vmul.f32 %v1080, %v308
    %v1177 = vmul.f32 %v1081, %v357
    %v1178 = vmul.f32 %v1082, %v310
    %v1179 = vmul.f32 %v1083, %v359
    %v1180 = vmul.f32 %v1084, %v313
    %v1181 = vmul.f32 %v1085, %v362
    %v1182 = vmul.f32 %v1086, %v315
    %v1183 = vmul.f32 %v1087, %v364
    %v1184 = vmul.f32 %v1088, %v318
    %v1185 = vmul.f32 %v1089, %v367
    %v1186 = vmul.f32 %v1090, %v320
    %v1187 = vmul.f32 %v1091, %v369
    %v1188 = vadd.f32 %v1156, %v1124
    %v1189 = vadd.f32 %v1157, %v1125
    %v1190 = vadd.f32 %v1158, %v1126
    %v1191 = vadd.f32 %v1159, %v1127
    %v1192 = vadd.f32 %v1160, %v1128
    %v1193 = vadd.f32 %v1161, %v1129
    %v1194 = vadd.f32 %v1162, %v1130
    %v1195 = vadd.f32 %v1163, %v1131
    %v1196 = vadd.f32 %v1164, %v1132
    %v1197 = vadd.f32 %v1165, %v1133
    %v1198 = vadd.f32 %v1166, %v1134
    %v1199 = vadd.f32 %v1167, %v1135
    %v1200 = vadd.f32 %v1168, %v1136
    %v1201 = vadd.f32 %v1169, %v1137
    %v1202 = vadd.f32 %v1170, %v1138
    %v1203 = vadd.f32 %v1171, %v1139
    %v1204 = vadd.f32 %v1172, %v1140
    %v1205 = vadd.f32 %v1173, %v1141
    %v1206 = vadd.f32 %v1174, %v1142
    %v1207 = vadd.f32 %v1175, %v1143
    %v1208 = vadd.f32 %v1176, %v1144
    %v1209 = vadd.f32 %v1177, %v1145
    %v1210 = vadd.f32 %v1178, %v1146
    %v1211 = vadd.f32 %v1179, %v1147
    %v1212 = vadd.f32 %v1180, %v1148
    %v1213 = vadd.f32 %v1181, %v1149
    %v1214 = vadd.f32 %v1182, %v1150
    %v1215 = vadd.f32 %v1183, %v1151
    %v1216 = vadd.f32 %v1184, %v1152
    %v1217 = vadd.f32 %v1185, %v1153
    %v1218 = vadd.f32 %v1186, %v1154
    %v1219 = vadd.f32 %v1187, %v1155
    %v1220 = vmax.f32 %v1188, 0.0
    %v1221 = vmax.f32 %v1189, 0.0
    %v1222 = vmax.f32 %v1190, 0.0
    %v1223 = vmax.f32 %v1191, 0.0
    %v1224 = vmax.f32 %v1192, 0.0
    %v1225 = vmax.f32 %v1193, 0.0
    %v1226 = vmax.f32 %v1194, 0.0
    %v1227 = vmax.f32 %v1195, 0.0
    %v1228 = vmax.f32 %v1196, 0.0
    %v1229 = vmax.f32 %v1197, 0.0
    %v1230 = vmax.f32 %v1198, 0.0
    %v1231 = vmax.f32 %v1199, 0.0
    %v1232 = vmax.f32 %v1200, 0.0
    %v1233 = vmax.f32 %v1201, 0.0
    %v1234 = vmax.f32 %v1202, 0.0
    %v1235 = vmax.f32 %v1203, 0.0
    %v1236 = vmax.f32 %v1204, 0.0
    %v1237 = vmax.f32 %v1205, 0.0
    %v1238 = vmax.f32 %v1206, 0.0
    %v1239 = vmax.f32 %v1207, 0.0
    %v1240 = vmax.f32 %v1208, 0.0
    %v1241 = vmax.f32 %v1209, 0.0
    %v1242 = vmax.f32 %v1210, 0.0
    %v1243 = vmax.f32 %v1211, 0.0
    %v1244 = vmax.f32 %v1212, 0.0
    %v1245 = vmax.f32 %v1213, 0.0
    %v1246 = vmax.f32 %v1214, 0.0
    %v1247 = vmax.f32 %v1215, 0.0
    %v1248 = vmax.f32 %v1216, 0.0
    %v1249 = vmax.f32 %v1217, 0.0
    %v1250 = vmax.f32 %v1218, 0.0
    %v1251 = vmax.f32 %v1219, 0.0
    %v1252 = vpack.c.bf16 %v1222, %v1220
    %v1253 = vpack.c.bf16 %v1223, %v1221
    %v1254 = vpack.c.bf16 %v1226, %v1224
    %v1255 = vpack.c.bf16 %v1227, %v1225
    %v1256 = vpack.c.bf16 %v1230, %v1228
    %v1257 = vpack.c.bf16 %v1231, %v1229
    %v1258 = vpack.c.bf16 %v1234, %v1232
    %v1259 = vpack.c.bf16 %v1235, %v1233
    %v1260 = vpack.c.bf16 %v1238, %v1236
    %v1261 = vpack.c.bf16 %v1239, %v1237
    %v1262 = vpack.c.bf16 %v1242, %v1240
    %v1263 = vpack.c.bf16 %v1243, %v1241
    %v1264 = vpack.c.bf16 %v1246, %v1244
    %v1265 = vpack.c.bf16 %v1247, %v1245
    %v1266 = vpack.c.bf16 %v1250, %v1248
    %v1267 = vpack.c.bf16 %v1251, %v1249
    %v1268 = vld [vmem:[#allocation8] sm:$0xff]
    %v1269 = vld [vmem:[#allocation8 + $0x8] sm:$0xff]
    %v1270 = vld [vmem:[#allocation8 + $0x10] sm:$0xff]
    %v1271 = vld [vmem:[#allocation8 + $0x18] sm:$0xff]
    %v1272 = vld [vmem:[#allocation8 + $0x20] sm:$0xff]
    %v1273 = vld [vmem:[#allocation8 + $0x28] sm:$0xff]
    %v1274 = vld [vmem:[#allocation8 + $0x30] sm:$0xff]
    %v1275 = vld [vmem:[#allocation8 + $0x38] sm:$0xff]
    %v1276 = vld [vmem:[#allocation8 + $0x40] sm:$0xff]
    %v1277 = vld [vmem:[#allocation8 + $0x48] sm:$0xff]
    %v1278 = vld [vmem:[#allocation8 + $0x50] sm:$0xff]
    %v1279 = vld [vmem:[#allocation8 + $0x58] sm:$0xff]
    %v1280 = vld [vmem:[#allocation8 + $0x60] sm:$0xff]
    %v1281 = vld [vmem:[#allocation8 + $0x68] sm:$0xff]
    %v1282 = vld [vmem:[#allocation8 + $0x70] sm:$0xff]
    %v1283 = vld [vmem:[#allocation8 + $0x78] sm:$0xff]
    %v1284 = vld [vmem:[#allocation8 + $0x80] sm:$0xff]
    %v1285 = vld [vmem:[#allocation8 + $0x88] sm:$0xff]
    %v1286 = vld [vmem:[#allocation8 + $0x90] sm:$0xff]
    %v1287 = vld [vmem:[#allocation8 + $0x98] sm:$0xff]
    %v1288 = vld [vmem:[#allocation8 + $0xa0] sm:$0xff]
    %v1289 = vld [vmem:[#allocation8 + $0xa8] sm:$0xff]
    %v1290 = vld [vmem:[#allocation8 + $0xb0] sm:$0xff]
    %v1291 = vld [vmem:[#allocation8 + $0xb8] sm:$0xff]
    %v1292 = vld [vmem:[#allocation8 + $0xc0] sm:$0xff]
    %v1293 = vld [vmem:[#allocation8 + $0xc8] sm:$0xff]
    %v1294 = vld [vmem:[#allocation8 + $0xd0] sm:$0xff]
    %v1295 = vld [vmem:[#allocation8 + $0xd8] sm:$0xff]
    %v1296 = vld [vmem:[#allocation8 + $0xe0] sm:$0xff]
    %v1297 = vld [vmem:[#allocation8 + $0xe8] sm:$0xff]
    %v1298 = vld [vmem:[#allocation8 + $0xf0] sm:$0xff]
    %v1299 = vld [vmem:[#allocation8 + $0xf8] sm:$0xff]
    %v1332 = vunpack.c.l.b16 %v1268
    %v1333 = vunpack.c.h.b16 %v1268
    %v1334 = vunpack.c.l.b16 %v1269
    %v1335 = vunpack.c.h.b16 %v1269
    %v1336 = vunpack.c.l.b16 %v1270
    %v1337 = vunpack.c.h.b16 %v1270
    %v1338 = vunpack.c.l.b16 %v1271
    %v1339 = vunpack.c.h.b16 %v1271
    %v1340 = vunpack.c.l.b16 %v1272
    %v1341 = vunpack.c.h.b16 %v1272
    %v1342 = vunpack.c.l.b16 %v1273
    %v1343 = vunpack.c.h.b16 %v1273
    %v1344 = vunpack.c.l.b16 %v1274
    %v1345 = vunpack.c.h.b16 %v1274
    %v1346 = vunpack.c.l.b16 %v1275
    %v1347 = vunpack.c.h.b16 %v1275
    %v1348 = vunpack.c.l.b16 %v1276
    %v1349 = vunpack.c.h.b16 %v1276
    %v1350 = vunpack.c.l.b16 %v1277
    %v1351 = vunpack.c.h.b16 %v1277
    %v1352 = vunpack.c.l.b16 %v1278
    %v1353 = vunpack.c.h.b16 %v1278
    %v1354 = vunpack.c.l.b16 %v1279
    %v1355 = vunpack.c.h.b16 %v1279
    %v1356 = vunpack.c.l.b16 %v1280
    %v1357 = vunpack.c.h.b16 %v1280
    %v1358 = vunpack.c.l.b16 %v1281
    %v1359 = vunpack.c.h.b16 %v1281
    %v1360 = vunpack.c.l.b16 %v1282
    %v1361 = vunpack.c.h.b16 %v1282
    %v1362 = vunpack.c.l.b16 %v1283
    %v1363 = vunpack.c.h.b16 %v1283
    %v1364 = vunpack.c.l.b16 %v1284
    %v1365 = vunpack.c.h.b16 %v1284
    %v1366 = vunpack.c.l.b16 %v1285
    %v1367 = vunpack.c.h.b16 %v1285
    %v1368 = vunpack.c.l.b16 %v1286
    %v1369 = vunpack.c.h.b16 %v1286
    %v1370 = vunpack.c.l.b16 %v1287
    %v1371 = vunpack.c.h.b16 %v1287
    %v1372 = vunpack.c.l.b16 %v1288
    %v1373 = vunpack.c.h.b16 %v1288
    %v1374 = vunpack.c.l.b16 %v1289
    %v1375 = vunpack.c.h.b16 %v1289
    %v1376 = vunpack.c.l.b16 %v1290
    %v1377 = vunpack.c.h.b16 %v1290
    %v1378 = vunpack.c.l.b16 %v1291
    %v1379 = vunpack.c.h.b16 %v1291
    %v1380 = vunpack.c.l.b16 %v1292
    %v1381 = vunpack.c.h.b16 %v1292
    %v1382 = vunpack.c.l.b16 %v1293
    %v1383 = vunpack.c.h.b16 %v1293
    %v1384 = vunpack.c.l.b16 %v1294
    %v1385 = vunpack.c.h.b16 %v1294
    %v1386 = vunpack.c.l.b16 %v1295
    %v1387 = vunpack.c.h.b16 %v1295
    %v1388 = vunpack.c.l.b16 %v1296
    %v1389 = vunpack.c.h.b16 %v1296
    %v1390 = vunpack.c.l.b16 %v1297
    %v1391 = vunpack.c.h.b16 %v1297
    %v1392 = vunpack.c.l.b16 %v1298
    %v1393 = vunpack.c.h.b16 %v1298
    %v1394 = vunpack.c.l.b16 %v1299
    %v1395 = vunpack.c.h.b16 %v1299
    %v1396 = vpack.c.b16 %v1334, %v1332
    %v1397 = vpack.c.b16 %v1335, %v1333
    %v1398 = vpack.c.b16 %v1338, %v1336
    %v1399 = vpack.c.b16 %v1339, %v1337
    %v1400 = vpack.c.b16 %v1342, %v1340
    %v1401 = vpack.c.b16 %v1343, %v1341
    %v1402 = vpack.c.b16 %v1346, %v1344
    %v1403 = vpack.c.b16 %v1347, %v1345
    %v1404 = vpack.c.b16 %v1350, %v1348
    %v1405 = vpack.c.b16 %v1351, %v1349
    %v1406 = vpack.c.b16 %v1354, %v1352
    %v1407 = vpack.c.b16 %v1355, %v1353
    %v1408 = vpack.c.b16 %v1358, %v1356
    %v1409 = vpack.c.b16 %v1359, %v1357
    %v1410 = vpack.c.b16 %v1362, %v1360
    %v1411 = vpack.c.b16 %v1363, %v1361
    %v1412 = vpack.c.b16 %v1366, %v1364
    %v1413 = vpack.c.b16 %v1367, %v1365
    %v1414 = vpack.c.b16 %v1370, %v1368
    %v1415 = vpack.c.b16 %v1371, %v1369
    %v1416 = vpack.c.b16 %v1374, %v1372
    %v1417 = vpack.c.b16 %v1375, %v1373
    %v1418 = vpack.c.b16 %v1378, %v1376
    %v1419 = vpack.c.b16 %v1379, %v1377
    %v1420 = vpack.c.b16 %v1382, %v1380
    %v1421 = vpack.c.b16 %v1383, %v1381
    %v1422 = vpack.c.b16 %v1386, %v1384
    %v1423 = vpack.c.b16 %v1387, %v1385
    %v1424 = vpack.c.b16 %v1390, %v1388
    %v1425 = vpack.c.b16 %v1391, %v1389
    %v1426 = vpack.c.b16 %v1394, %v1392
    %v1427 = vpack.c.b16 %v1395, %v1393
    %1460 = vmatpush.bf16.msra.mxu0 %v1410
    %1461 = vmatpush.bf16.msra.mxu0 %v1408
    %1462 = vmatpush.bf16.msra.mxu0 %v1406
    %1463 = vmatpush.bf16.msra.mxu0 %v1404
    %1464 = vmatpush.bf16.msra.mxu0 %v1402
    %1465 = vmatpush.bf16.msra.mxu0 %v1400
    %1466 = vmatpush.bf16.msra.mxu0 %v1398
    %1467 = vmatpush.bf16.msra.mxu0 %v1396
    %1468 = vmatmul.bf16.gmra.mxu0 %v1252
    %v1469 = vpop.f32.mrf.mxu0
    %v1470 = vadd.f32 0.0, %v1469
    %v1471 = vpop.f32.mrf.mxu0
    %v1472 = vadd.f32 0.0, %v1471
    %1473 = vmatmul.bf16.gmra.mxu0 %v1254
    %v1474 = vpop.f32.mrf.mxu0
    %v1475 = vadd.f32 0.0, %v1474
    %v1476 = vpop.f32.mrf.mxu0
    %v1477 = vadd.f32 0.0, %v1476
    %1478 = vmatmul.bf16.gmra.mxu0 %v1256
    %v1479 = vpop.f32.mrf.mxu0
    %v1480 = vadd.f32 0.0, %v1479
    %v1481 = vpop.f32.mrf.mxu0
    %v1482 = vadd.f32 0.0, %v1481
    %1483 = vmatmul.bf16.gmra.mxu0 %v1258
    %v1484 = vpop.f32.mrf.mxu0
    %v1485 = vadd.f32 0.0, %v1484
    %v1486 = vpop.f32.mrf.mxu0
    %v1487 = vadd.f32 0.0, %v1486
    %1488 = vmatmul.bf16.gmra.mxu0 %v1260
    %v1489 = vpop.f32.mrf.mxu0
    %v1490 = vadd.f32 0.0, %v1489
    %v1491 = vpop.f32.mrf.mxu0
    %v1492 = vadd.f32 0.0, %v1491
    %1493 = vmatmul.bf16.gmra.mxu0 %v1262
    %v1494 = vpop.f32.mrf.mxu0
    %v1495 = vadd.f32 0.0, %v1494
    %v1496 = vpop.f32.mrf.mxu0
    %v1497 = vadd.f32 0.0, %v1496
    %1498 = vmatmul.bf16.gmra.mxu0 %v1264
    %v1499 = vpop.f32.mrf.mxu0
    %v1500 = vadd.f32 0.0, %v1499
    %v1501 = vpop.f32.mrf.mxu0
    %v1502 = vadd.f32 0.0, %v1501
    %1503 = vmatmul.bf16.gmra.mxu0 %v1266
    %v1504 = vpop.f32.mrf.mxu0
    %v1505 = vadd.f32 0.0, %v1504
    %v1506 = vpop.f32.mrf.mxu0
    %v1507 = vadd.f32 0.0, %v1506
    %1508 = vdwg.mxu0
    %1509 = vmatpush.bf16.msra.mxu0 %v1426
    %1510 = vmatpush.bf16.msra.mxu0 %v1424
    %1511 = vmatpush.bf16.msra.mxu0 %v1422
    %1512 = vmatpush.bf16.msra.mxu0 %v1420
    %1513 = vmatpush.bf16.msra.mxu0 %v1418
    %1514 = vmatpush.bf16.msra.mxu0 %v1416
    %1515 = vmatpush.bf16.msra.mxu0 %v1414
    %1516 = vmatpush.bf16.msra.mxu0 %v1412
    %1517 = vmatmul.bf16.gmra.mxu0 %v1253
    %v1518 = vpop.f32.mrf.mxu0
    %v1519 = vadd.f32 %v1470, %v1518
    %v1520 = vpop.f32.mrf.mxu0
    %v1521 = vadd.f32 %v1472, %v1520
    %1522 = vmatmul.bf16.gmra.mxu0 %v1255
    %v1523 = vpop.f32.mrf.mxu0
    %v1524 = vadd.f32 %v1475, %v1523
    %v1525 = vpop.f32.mrf.mxu0
    %v1526 = vadd.f32 %v1477, %v1525
    %1527 = vmatmul.bf16.gmra.mxu0 %v1257
    %v1528 = vpop.f32.mrf.mxu0
    %v1529 = vadd.f32 %v1480, %v1528
    %v1530 = vpop.f32.mrf.mxu0
    %v1531 = vadd.f32 %v1482, %v1530
    %1532 = vmatmul.bf16.gmra.mxu0 %v1259
    %v1533 = vpop.f32.mrf.mxu0
    %v1534 = vadd.f32 %v1485, %v1533
    %v1535 = vpop.f32.mrf.mxu0
    %v1536 = vadd.f32 %v1487, %v1535
    %1537 = vmatmul.bf16.gmra.mxu0 %v1261
    %v1538 = vpop.f32.mrf.mxu0
    %v1539 = vadd.f32 %v1490, %v1538
    %v1540 = vpop.f32.mrf.mxu0
    %v1541 = vadd.f32 %v1492, %v1540
    %1542 = vmatmul.bf16.gmra.mxu0 %v1263
    %v1543 = vpop.f32.mrf.mxu0
    %v1544 = vadd.f32 %v1495, %v1543
    %v1545 = vpop.f32.mrf.mxu0
    %v1546 = vadd.f32 %v1497, %v1545
    %1547 = vmatmul.bf16.gmra.mxu0 %v1265
    %v1548 = vpop.f32.mrf.mxu0
    %v1549 = vadd.f32 %v1500, %v1548
    %v1550 = vpop.f32.mrf.mxu0
    %v1551 = vadd.f32 %v1502, %v1550
    %1552 = vmatmul.bf16.gmra.mxu0 %v1267
    %v1553 = vpop.f32.mrf.mxu0
    %v1554 = vadd.f32 %v1505, %v1553
    %v1555 = vpop.f32.mrf.mxu0
    %v1556 = vadd.f32 %v1507, %v1555
    %1557 = vdwg.mxu0
    %1558 = vmatpush.bf16.msra.mxu0 %v1411
    %1559 = vmatpush.bf16.msra.mxu0 %v1409
    %1560 = vmatpush.bf16.msra.mxu0 %v1407
    %1561 = vmatpush.bf16.msra.mxu0 %v1405
    %1562 = vmatpush.bf16.msra.mxu0 %v1403
    %1563 = vmatpush.bf16.msra.mxu0 %v1401
    %1564 = vmatpush.bf16.msra.mxu0 %v1399
    %1565 = vmatpush.bf16.msra.mxu0 %v1397
    %1566 = vmatmul.bf16.gmra.mxu0 %v1252
    %v1567 = vpop.f32.mrf.mxu0
    %v1568 = vadd.f32 0.0, %v1567
    %v1569 = vpop.f32.mrf.mxu0
    %v1570 = vadd.f32 0.0, %v1569
    %1571 = vmatmul.bf16.gmra.mxu0 %v1254
    %v1572 = vpop.f32.mrf.mxu0
    %v1573 = vadd.f32 0.0, %v1572
    %v1574 = vpop.f32.mrf.mxu0
    %v1575 = vadd.f32 0.0, %v1574
    %1576 = vmatmul.bf16.gmra.mxu0 %v1256
    %v1577 = vpop.f32.mrf.mxu0
    %v1578 = vadd.f32 0.0, %v1577
    %v1579 = vpop.f32.mrf.mxu0
    %v1580 = vadd.f32 0.0, %v1579
    %1581 = vmatmul.bf16.gmra.mxu0 %v1258
    %v1582 = vpop.f32.mrf.mxu0
    %v1583 = vadd.f32 0.0, %v1582
    %v1584 = vpop.f32.mrf.mxu0
    %v1585 = vadd.f32 0.0, %v1584
    %1586 = vmatmul.bf16.gmra.mxu0 %v1260
    %v1587 = vpop.f32.mrf.mxu0
    %v1588 = vadd.f32 0.0, %v1587
    %v1589 = vpop.f32.mrf.mxu0
    %v1590 = vadd.f32 0.0, %v1589
    %1591 = vmatmul.bf16.gmra.mxu0 %v1262
    %v1592 = vpop.f32.mrf.mxu0
    %v1593 = vadd.f32 0.0, %v1592
    %v1594 = vpop.f32.mrf.mxu0
    %v1595 = vadd.f32 0.0, %v1594
    %1596 = vmatmul.bf16.gmra.mxu0 %v1264
    %v1597 = vpop.f32.mrf.mxu0
    %v1598 = vadd.f32 0.0, %v1597
    %v1599 = vpop.f32.mrf.mxu0
    %v1600 = vadd.f32 0.0, %v1599
    %1601 = vmatmul.bf16.gmra.mxu0 %v1266
    %v1602 = vpop.f32.mrf.mxu0
    %v1603 = vadd.f32 0.0, %v1602
    %v1604 = vpop.f32.mrf.mxu0
    %v1605 = vadd.f32 0.0, %v1604
    %1606 = vdwg.mxu0
    %1607 = vmatpush.bf16.msra.mxu0 %v1427
    %1608 = vmatpush.bf16.msra.mxu0 %v1425
    %1609 = vmatpush.bf16.msra.mxu0 %v1423
    %1610 = vmatpush.bf16.msra.mxu0 %v1421
    %1611 = vmatpush.bf16.msra.mxu0 %v1419
    %1612 = vmatpush.bf16.msra.mxu0 %v1417
    %1613 = vmatpush.bf16.msra.mxu0 %v1415
    %1614 = vmatpush.bf16.msra.mxu0 %v1413
    %1615 = vmatmul.bf16.gmra.mxu0 %v1253
    %v1616 = vpop.f32.mrf.mxu0
    %v1617 = vadd.f32 %v1568, %v1616
    %v1618 = vpop.f32.mrf.mxu0
    %v1619 = vadd.f32 %v1570, %v1618
    %1620 = vmatmul.bf16.gmra.mxu0 %v1255
    %v1621 = vpop.f32.mrf.mxu0
    %v1622 = vadd.f32 %v1573, %v1621
    %v1623 = vpop.f32.mrf.mxu0
    %v1624 = vadd.f32 %v1575, %v1623
    %1625 = vmatmul.bf16.gmra.mxu0 %v1257
    %v1626 = vpop.f32.mrf.mxu0
    %v1627 = vadd.f32 %v1578, %v1626
    %v1628 = vpop.f32.mrf.mxu0
    %v1629 = vadd.f32 %v1580, %v1628
    %1630 = vmatmul.bf16.gmra.mxu0 %v1259
    %v1631 = vpop.f32.mrf.mxu0
    %v1632 = vadd.f32 %v1583, %v1631
    %v1633 = vpop.f32.mrf.mxu0
    %v1634 = vadd.f32 %v1585, %v1633
    %1635 = vmatmul.bf16.gmra.mxu0 %v1261
    %v1636 = vpop.f32.mrf.mxu0
    %v1637 = vadd.f32 %v1588, %v1636
    %v1638 = vpop.f32.mrf.mxu0
    %v1639 = vadd.f32 %v1590, %v1638
    %1640 = vmatmul.bf16.gmra.mxu0 %v1263
    %v1641 = vpop.f32.mrf.mxu0
    %v1642 = vadd.f32 %v1593, %v1641
    %v1643 = vpop.f32.mrf.mxu0
    %v1644 = vadd.f32 %v1595, %v1643
    %1645 = vmatmul.bf16.gmra.mxu0 %v1265
    %v1646 = vpop.f32.mrf.mxu0
    %v1647 = vadd.f32 %v1598, %v1646
    %v1648 = vpop.f32.mrf.mxu0
    %v1649 = vadd.f32 %v1600, %v1648
    %1650 = vmatmul.bf16.gmra.mxu0 %v1267
    %v1651 = vpop.f32.mrf.mxu0
    %v1652 = vadd.f32 %v1603, %v1651
    %v1653 = vpop.f32.mrf.mxu0
    %v1654 = vadd.f32 %v1605, %v1653
    %1655 = vdwg.mxu0
    %v1656 = vadd.f32 %v1519, %v1521
    %v1657 = vadd.f32 %v1656, %v1524
    %v1658 = vadd.f32 %v1657, %v1526
    %v1659 = vadd.f32 %v1658, %v1529
    %v1660 = vadd.f32 %v1659, %v1531
    %v1661 = vadd.f32 %v1660, %v1534
    %v1662 = vadd.f32 %v1661, %v1536
    %v1663 = vadd.f32 %v1662, %v1539
    %v1664 = vadd.f32 %v1663, %v1541
    %v1665 = vadd.f32 %v1664, %v1544
    %v1666 = vadd.f32 %v1665, %v1546
    %v1667 = vadd.f32 %v1666, %v1549
    %v1668 = vadd.f32 %v1667, %v1551
    %v1669 = vadd.f32 %v1668, %v1554
    %v1670 = vadd.f32 %v1669, %v1556
    %v1671 = vrot.slane %v1670, 4
    %v1672 = vadd.f32 %v1670, %v1671
    %v1673 = vrot.slane %v1672, 2
    %v1674 = vadd.f32 %v1672, %v1673
    %v1675 = vrot.slane %v1674, 1
    %v1676 = vadd.f32 %v1674, %v1675
    %v1677 = vadd.f32 %v1617, %v1619
    %v1678 = vadd.f32 %v1677, %v1622
    %v1679 = vadd.f32 %v1678, %v1624
    %v1680 = vadd.f32 %v1679, %v1627
    %v1681 = vadd.f32 %v1680, %v1629
    %v1682 = vadd.f32 %v1681, %v1632
    %v1683 = vadd.f32 %v1682, %v1634
    %v1684 = vadd.f32 %v1683, %v1637
    %v1685 = vadd.f32 %v1684, %v1639
    %v1686 = vadd.f32 %v1685, %v1642
    %v1687 = vadd.f32 %v1686, %v1644
    %v1688 = vadd.f32 %v1687, %v1647
    %v1689 = vadd.f32 %v1688, %v1649
    %v1690 = vadd.f32 %v1689, %v1652
    %v1691 = vadd.f32 %v1690, %v1654
    %v1692 = vrot.slane %v1691, 4
    %v1693 = vadd.f32 %v1691, %v1692
    %v1694 = vrot.slane %v1693, 2
    %v1695 = vadd.f32 %v1693, %v1694
    %v1696 = vrot.slane %v1695, 1
    %v1697 = vadd.f32 %v1695, %v1696
    %v1698 = vmul.f32 %v1676, %v419
    %v1699 = vmul.f32 %v1697, %v419
    %v1700 = vmul.f32 %v1519, %v1519
    %v1701 = vmul.f32 %v1617, %v1617
    %v1702 = vmul.f32 %v1521, %v1521
    %v1703 = vmul.f32 %v1619, %v1619
    %v1704 = vmul.f32 %v1524, %v1524
    %v1705 = vmul.f32 %v1622, %v1622
    %v1706 = vmul.f32 %v1526, %v1526
    %v1707 = vmul.f32 %v1624, %v1624
    %v1708 = vmul.f32 %v1529, %v1529
    %v1709 = vmul.f32 %v1627, %v1627
    %v1710 = vmul.f32 %v1531, %v1531
    %v1711 = vmul.f32 %v1629, %v1629
    %v1712 = vmul.f32 %v1534, %v1534
    %v1713 = vmul.f32 %v1632, %v1632
    %v1714 = vmul.f32 %v1536, %v1536
    %v1715 = vmul.f32 %v1634, %v1634
    %v1716 = vmul.f32 %v1539, %v1539
    %v1717 = vmul.f32 %v1637, %v1637
    %v1718 = vmul.f32 %v1541, %v1541
    %v1719 = vmul.f32 %v1639, %v1639
    %v1720 = vmul.f32 %v1544, %v1544
    %v1721 = vmul.f32 %v1642, %v1642
    %v1722 = vmul.f32 %v1546, %v1546
    %v1723 = vmul.f32 %v1644, %v1644
    %v1724 = vmul.f32 %v1549, %v1549
    %v1725 = vmul.f32 %v1647, %v1647
    %v1726 = vmul.f32 %v1551, %v1551
    %v1727 = vmul.f32 %v1649, %v1649
    %v1728 = vmul.f32 %v1554, %v1554
    %v1729 = vmul.f32 %v1652, %v1652
    %v1730 = vmul.f32 %v1556, %v1556
    %v1731 = vmul.f32 %v1654, %v1654
    %v1732 = vadd.f32 %v1700, %v1702
    %v1733 = vadd.f32 %v1732, %v1704
    %v1734 = vadd.f32 %v1733, %v1706
    %v1735 = vadd.f32 %v1734, %v1708
    %v1736 = vadd.f32 %v1735, %v1710
    %v1737 = vadd.f32 %v1736, %v1712
    %v1738 = vadd.f32 %v1737, %v1714
    %v1739 = vadd.f32 %v1738, %v1716
    %v1740 = vadd.f32 %v1739, %v1718
    %v1741 = vadd.f32 %v1740, %v1720
    %v1742 = vadd.f32 %v1741, %v1722
    %v1743 = vadd.f32 %v1742, %v1724
    %v1744 = vadd.f32 %v1743, %v1726
    %v1745 = vadd.f32 %v1744, %v1728
    %v1746 = vadd.f32 %v1745, %v1730
    %v1747 = vrot.slane %v1746, 4
    %v1748 = vadd.f32 %v1746, %v1747
    %v1749 = vrot.slane %v1748, 2
    %v1750 = vadd.f32 %v1748, %v1749
    %v1751 = vrot.slane %v1750, 1
    %v1752 = vadd.f32 %v1750, %v1751
    %v1753 = vadd.f32 %v1701, %v1703
    %v1754 = vadd.f32 %v1753, %v1705
    %v1755 = vadd.f32 %v1754, %v1707
    %v1756 = vadd.f32 %v1755, %v1709
    %v1757 = vadd.f32 %v1756, %v1711
    %v1758 = vadd.f32 %v1757, %v1713
    %v1759 = vadd.f32 %v1758, %v1715
    %v1760 = vadd.f32 %v1759, %v1717
    %v1761 = vadd.f32 %v1760, %v1719
    %v1762 = vadd.f32 %v1761, %v1721
    %v1763 = vadd.f32 %v1762, %v1723
    %v1764 = vadd.f32 %v1763, %v1725
    %v1765 = vadd.f32 %v1764, %v1727
    %v1766 = vadd.f32 %v1765, %v1729
    %v1767 = vadd.f32 %v1766, %v1731
    %v1768 = vrot.slane %v1767, 4
    %v1769 = vadd.f32 %v1767, %v1768
    %v1770 = vrot.slane %v1769, 2
    %v1771 = vadd.f32 %v1769, %v1770
    %v1772 = vrot.slane %v1771, 1
    %v1773 = vadd.f32 %v1771, %v1772
    %v1774 = vmul.f32 %v1752, %v419
    %v1775 = vmul.f32 %v1773, %v419
    %v1776 = vmul.f32 %v1698, %v1698
    %v1777 = vmul.f32 %v1699, %v1699
    %v1778 = vsub.f32 %v1774, %v1776
    %v1779 = vsub.f32 %v1775, %v1777
    %v1780 = vmax.f32 %v1778, 0.0
    %v1781 = vmax.f32 %v1779, 0.0
    %v1782 = vadd.f32 %v1780, 1e-05
    %v1783 = vadd.f32 %v1781, 1e-05
    %v1784 = vrsqrt.pop %v1782
    %v1785 = vmul.f32 %v1784, %v1782
    %v1786 = vmul.f32 %v1785, %v1784
    %v1787 = vmul.f32 0.5, %v1786
    %v1788 = vsub.f32 1.5, %v1787
    %v1789 = vmul.f32 %v1784, %v1788
    %vm1790 = vweird.f32 %v1782
    %vm1791 = vweird.f32 %v1784
    %vm1792 = vmor %vm1790, %vm1791
    %v1793 = vsel %vm1792, %v1784, %v1789
    %v1794 = vrsqrt.pop %v1783
    %v1795 = vmul.f32 %v1794, %v1783
    %v1796 = vmul.f32 %v1795, %v1794
    %v1797 = vmul.f32 0.5, %v1796
    %v1798 = vsub.f32 1.5, %v1797
    %v1799 = vmul.f32 %v1794, %v1798
    %vm1800 = vweird.f32 %v1783
    %vm1801 = vweird.f32 %v1794
    %vm1802 = vmor %vm1800, %vm1801
    %v1803 = vsel %vm1802, %v1794, %v1799
    %v1804 = vld [vmem:[#allocation10] ss:$4 sm:$0x3]
    %s1805 = scalar_lea.vmem [#allocation10], 1
    %v1806 = vld [vmem:[%s1805] ss:$4 sm:$0x3]
    %v1808 = vperm.slane %v1806, 0
    %v1809 = vperm.slane %v1806, 1
    %v1813 = vperm.slane %v1804, 0
    %v1814 = vperm.slane %v1804, 1
    %v1817 = vsel %vm609, %v1808, %v1813
    %v1818 = vsel %vm609, %v1809, %v1814
    %v1819 = vsel %vm610, %v1808, %v1813
    %v1820 = vsel %vm610, %v1809, %v1814
    %v1821 = vsel %vm611, %v1808, %v1813
    %v1822 = vsel %vm611, %v1809, %v1814
    %v1823 = vsel %vm612, %v1808, %v1813
    %v1824 = vsel %vm612, %v1809, %v1814
    %v1825 = vsel %vm613, %v1808, %v1813
    %v1826 = vsel %vm613, %v1809, %v1814
    %v1827 = vsel %vm614, %v1808, %v1813
    %v1828 = vsel %vm614, %v1809, %v1814
    %v1829 = vsel %vm615, %v1808, %v1813
    %v1830 = vsel %vm615, %v1809, %v1814
    %v1831 = vsel %vm616, %v1808, %v1813
    %v1832 = vsel %vm616, %v1809, %v1814
    %v1833 = vsel %vm617, %v1808, %v1813
    %v1834 = vsel %vm617, %v1809, %v1814
    %v1835 = vsel %vm618, %v1808, %v1813
    %v1836 = vsel %vm618, %v1809, %v1814
    %v1837 = vsel %vm619, %v1808, %v1813
    %v1838 = vsel %vm619, %v1809, %v1814
    %v1839 = vsel %vm620, %v1808, %v1813
    %v1840 = vsel %vm620, %v1809, %v1814
    %v1841 = vsel %vm621, %v1808, %v1813
    %v1842 = vsel %vm621, %v1809, %v1814
    %v1843 = vsel %vm622, %v1808, %v1813
    %v1844 = vsel %vm622, %v1809, %v1814
    %v1845 = vsel %vm623, %v1808, %v1813
    %v1846 = vsel %vm623, %v1809, %v1814
    %v1847 = vsel %vm624, %v1808, %v1813
    %v1848 = vsel %vm624, %v1809, %v1814
    %s1849 = scalar_lea.vmem [#allocation10], 2
    %v1850 = vld [vmem:[%s1849] ss:$4 sm:$0x3]
    %v1852 = vperm.slane %v1850, 0
    %v1853 = vperm.slane %v1850, 1
    %v1856 = vsel %vm749, %v1852, %v1817
    %v1857 = vsel %vm749, %v1853, %v1818
    %v1858 = vsel %vm750, %v1852, %v1819
    %v1859 = vsel %vm750, %v1853, %v1820
    %v1860 = vsel %vm751, %v1852, %v1821
    %v1861 = vsel %vm751, %v1853, %v1822
    %v1862 = vsel %vm752, %v1852, %v1823
    %v1863 = vsel %vm752, %v1853, %v1824
    %v1864 = vsel %vm753, %v1852, %v1825
    %v1865 = vsel %vm753, %v1853, %v1826
    %v1866 = vsel %vm754, %v1852, %v1827
    %v1867 = vsel %vm754, %v1853, %v1828
    %v1868 = vsel %vm755, %v1852, %v1829
    %v1869 = vsel %vm755, %v1853, %v1830
    %v1870 = vsel %vm756, %v1852, %v1831
    %v1871 = vsel %vm756, %v1853, %v1832
    %v1872 = vsel %vm757, %v1852, %v1833
    %v1873 = vsel %vm757, %v1853, %v1834
    %v1874 = vsel %vm758, %v1852, %v1835
    %v1875 = vsel %vm758, %v1853, %v1836
    %v1876 = vsel %vm759, %v1852, %v1837
    %v1877 = vsel %vm759, %v1853, %v1838
    %v1878 = vsel %vm760, %v1852, %v1839
    %v1879 = vsel %vm760, %v1853, %v1840
    %v1880 = vsel %vm761, %v1852, %v1841
    %v1881 = vsel %vm761, %v1853, %v1842
    %v1882 = vsel %vm762, %v1852, %v1843
    %v1883 = vsel %vm762, %v1853, %v1844
    %v1884 = vsel %vm763, %v1852, %v1845
    %v1885 = vsel %vm763, %v1853, %v1846
    %v1886 = vsel %vm764, %v1852, %v1847
    %v1887 = vsel %vm764, %v1853, %v1848
    %s1888 = scalar_lea.vmem [#allocation10], 3
    %v1889 = vld [vmem:[%s1888] ss:$4 sm:$0x3]
    %v1891 = vperm.slane %v1889, 0
    %v1892 = vperm.slane %v1889, 1
    %v1895 = vsel %vm884, %v1891, %v1856
    %v1896 = vsel %vm884, %v1892, %v1857
    %v1897 = vsel %vm885, %v1891, %v1858
    %v1898 = vsel %vm885, %v1892, %v1859
    %v1899 = vsel %vm886, %v1891, %v1860
    %v1900 = vsel %vm886, %v1892, %v1861
    %v1901 = vsel %vm887, %v1891, %v1862
    %v1902 = vsel %vm887, %v1892, %v1863
    %v1903 = vsel %vm888, %v1891, %v1864
    %v1904 = vsel %vm888, %v1892, %v1865
    %v1905 = vsel %vm889, %v1891, %v1866
    %v1906 = vsel %vm889, %v1892, %v1867
    %v1907 = vsel %vm890, %v1891, %v1868
    %v1908 = vsel %vm890, %v1892, %v1869
    %v1909 = vsel %vm891, %v1891, %v1870
    %v1910 = vsel %vm891, %v1892, %v1871
    %v1911 = vsel %vm892, %v1891, %v1872
    %v1912 = vsel %vm892, %v1892, %v1873
    %v1913 = vsel %vm893, %v1891, %v1874
    %v1914 = vsel %vm893, %v1892, %v1875
    %v1915 = vsel %vm894, %v1891, %v1876
    %v1916 = vsel %vm894, %v1892, %v1877
    %v1917 = vsel %vm895, %v1891, %v1878
    %v1918 = vsel %vm895, %v1892, %v1879
    %v1919 = vsel %vm896, %v1891, %v1880
    %v1920 = vsel %vm896, %v1892, %v1881
    %v1921 = vsel %vm897, %v1891, %v1882
    %v1922 = vsel %vm897, %v1892, %v1883
    %v1923 = vsel %vm898, %v1891, %v1884
    %v1924 = vsel %vm898, %v1892, %v1885
    %v1925 = vsel %vm899, %v1891, %v1886
    %v1926 = vsel %vm899, %v1892, %v1887
    %v1927 = vld [vmem:[#allocation11] ss:$4 sm:$0x3]
    %s1928 = scalar_lea.vmem [#allocation11], 1
    %v1929 = vld [vmem:[%s1928] ss:$4 sm:$0x3]
    %v1931 = vperm.slane %v1929, 0
    %v1932 = vperm.slane %v1929, 1
    %v1936 = vperm.slane %v1927, 0
    %v1937 = vperm.slane %v1927, 1
    %v1940 = vsel %vm609, %v1931, %v1936
    %v1941 = vsel %vm609, %v1932, %v1937
    %v1942 = vsel %vm610, %v1931, %v1936
    %v1943 = vsel %vm610, %v1932, %v1937
    %v1944 = vsel %vm611, %v1931, %v1936
    %v1945 = vsel %vm611, %v1932, %v1937
    %v1946 = vsel %vm612, %v1931, %v1936
    %v1947 = vsel %vm612, %v1932, %v1937
    %v1948 = vsel %vm613, %v1931, %v1936
    %v1949 = vsel %vm613, %v1932, %v1937
    %v1950 = vsel %vm614, %v1931, %v1936
    %v1951 = vsel %vm614, %v1932, %v1937
    %v1952 = vsel %vm615, %v1931, %v1936
    %v1953 = vsel %vm615, %v1932, %v1937
    %v1954 = vsel %vm616, %v1931, %v1936
    %v1955 = vsel %vm616, %v1932, %v1937
    %v1956 = vsel %vm617, %v1931, %v1936
    %v1957 = vsel %vm617, %v1932, %v1937
    %v1958 = vsel %vm618, %v1931, %v1936
    %v1959 = vsel %vm618, %v1932, %v1937
    %v1960 = vsel %vm619, %v1931, %v1936
    %v1961 = vsel %vm619, %v1932, %v1937
    %v1962 = vsel %vm620, %v1931, %v1936
    %v1963 = vsel %vm620, %v1932, %v1937
    %v1964 = vsel %vm621, %v1931, %v1936
    %v1965 = vsel %vm621, %v1932, %v1937
    %v1966 = vsel %vm622, %v1931, %v1936
    %v1967 = vsel %vm622, %v1932, %v1937
    %v1968 = vsel %vm623, %v1931, %v1936
    %v1969 = vsel %vm623, %v1932, %v1937
    %v1970 = vsel %vm624, %v1931, %v1936
    %v1971 = vsel %vm624, %v1932, %v1937
    %s1972 = scalar_lea.vmem [#allocation11], 2
    %v1973 = vld [vmem:[%s1972] ss:$4 sm:$0x3]
    %v1975 = vperm.slane %v1973, 0
    %v1976 = vperm.slane %v1973, 1
    %v1979 = vsel %vm749, %v1975, %v1940
    %v1980 = vsel %vm749, %v1976, %v1941
    %v1981 = vsel %vm750, %v1975, %v1942
    %v1982 = vsel %vm750, %v1976, %v1943
    %v1983 = vsel %vm751, %v1975, %v1944
    %v1984 = vsel %vm751, %v1976, %v1945
    %v1985 = vsel %vm752, %v1975, %v1946
    %v1986 = vsel %vm752, %v1976, %v1947
    %v1987 = vsel %vm753, %v1975, %v1948
    %v1988 = vsel %vm753, %v1976, %v1949
    %v1989 = vsel %vm754, %v1975, %v1950
    %v1990 = vsel %vm754, %v1976, %v1951
    %v1991 = vsel %vm755, %v1975, %v1952
    %v1992 = vsel %vm755, %v1976, %v1953
    %v1993 = vsel %vm756, %v1975, %v1954
    %v1994 = vsel %vm756, %v1976, %v1955
    %v1995 = vsel %vm757, %v1975, %v1956
    %v1996 = vsel %vm757, %v1976, %v1957
    %v1997 = vsel %vm758, %v1975, %v1958
    %v1998 = vsel %vm758, %v1976, %v1959
    %v1999 = vsel %vm759, %v1975, %v1960
    %v2000 = vsel %vm759, %v1976, %v1961
    %v2001 = vsel %vm760, %v1975, %v1962
    %v2002 = vsel %vm760, %v1976, %v1963
    %v2003 = vsel %vm761, %v1975, %v1964
    %v2004 = vsel %vm761, %v1976, %v1965
    %v2005 = vsel %vm762, %v1975, %v1966
    %v2006 = vsel %vm762, %v1976, %v1967
    %v2007 = vsel %vm763, %v1975, %v1968
    %v2008 = vsel %vm763, %v1976, %v1969
    %v2009 = vsel %vm764, %v1975, %v1970
    %v2010 = vsel %vm764, %v1976, %v1971
    %s2011 = scalar_lea.vmem [#allocation11], 3
    %v2012 = vld [vmem:[%s2011] ss:$4 sm:$0x3]
    %v2014 = vperm.slane %v2012, 0
    %v2015 = vperm.slane %v2012, 1
    %v2018 = vsel %vm884, %v2014, %v1979
    %v2019 = vsel %vm884, %v2015, %v1980
    %v2020 = vsel %vm885, %v2014, %v1981
    %v2021 = vsel %vm885, %v2015, %v1982
    %v2022 = vsel %vm886, %v2014, %v1983
    %v2023 = vsel %vm886, %v2015, %v1984
    %v2024 = vsel %vm887, %v2014, %v1985
    %v2025 = vsel %vm887, %v2015, %v1986
    %v2026 = vsel %vm888, %v2014, %v1987
    %v2027 = vsel %vm888, %v2015, %v1988
    %v2028 = vsel %vm889, %v2014, %v1989
    %v2029 = vsel %vm889, %v2015, %v1990
    %v2030 = vsel %vm890, %v2014, %v1991
    %v2031 = vsel %vm890, %v2015, %v1992
    %v2032 = vsel %vm891, %v2014, %v1993
    %v2033 = vsel %vm891, %v2015, %v1994
    %v2034 = vsel %vm892, %v2014, %v1995
    %v2035 = vsel %vm892, %v2015, %v1996
    %v2036 = vsel %vm893, %v2014, %v1997
    %v2037 = vsel %vm893, %v2015, %v1998
    %v2038 = vsel %vm894, %v2014, %v1999
    %v2039 = vsel %vm894, %v2015, %v2000
    %v2040 = vsel %vm895, %v2014, %v2001
    %v2041 = vsel %vm895, %v2015, %v2002
    %v2042 = vsel %vm896, %v2014, %v2003
    %v2043 = vsel %vm896, %v2015, %v2004
    %v2044 = vsel %vm897, %v2014, %v2005
    %v2045 = vsel %vm897, %v2015, %v2006
    %v2046 = vsel %vm898, %v2014, %v2007
    %v2047 = vsel %vm898, %v2015, %v2008
    %v2048 = vsel %vm899, %v2014, %v2009
    %v2049 = vsel %vm899, %v2015, %v2010
    %v2050 = vmul.f32 %v1895, %v1793
    %v2051 = vmul.f32 %v1896, %v1803
    %v2052 = vmul.f32 %v1897, %v1793
    %v2053 = vmul.f32 %v1898, %v1803
    %v2054 = vmul.f32 %v1899, %v1793
    %v2055 = vmul.f32 %v1900, %v1803
    %v2056 = vmul.f32 %v1901, %v1793
    %v2057 = vmul.f32 %v1902, %v1803
    %v2058 = vmul.f32 %v1903, %v1793
    %v2059 = vmul.f32 %v1904, %v1803
    %v2060 = vmul.f32 %v1905, %v1793
    %v2061 = vmul.f32 %v1906, %v1803
    %v2062 = vmul.f32 %v1907, %v1793
    %v2063 = vmul.f32 %v1908, %v1803
    %v2064 = vmul.f32 %v1909, %v1793
    %v2065 = vmul.f32 %v1910, %v1803
    %v2066 = vmul.f32 %v1911, %v1793
    %v2067 = vmul.f32 %v1912, %v1803
    %v2068 = vmul.f32 %v1913, %v1793
    %v2069 = vmul.f32 %v1914, %v1803
    %v2070 = vmul.f32 %v1915, %v1793
    %v2071 = vmul.f32 %v1916, %v1803
    %v2072 = vmul.f32 %v1917, %v1793
    %v2073 = vmul.f32 %v1918, %v1803
    %v2074 = vmul.f32 %v1919, %v1793
    %v2075 = vmul.f32 %v1920, %v1803
    %v2076 = vmul.f32 %v1921, %v1793
    %v2077 = vmul.f32 %v1922, %v1803
    %v2078 = vmul.f32 %v1923, %v1793
    %v2079 = vmul.f32 %v1924, %v1803
    %v2080 = vmul.f32 %v1925, %v1793
    %v2081 = vmul.f32 %v1926, %v1803
    %v2082 = vmul.f32 %v2050, %v1698
    %v2083 = vmul.f32 %v2051, %v1699
    %v2084 = vmul.f32 %v2052, %v1698
    %v2085 = vmul.f32 %v2053, %v1699
    %v2086 = vmul.f32 %v2054, %v1698
    %v2087 = vmul.f32 %v2055, %v1699
    %v2088 = vmul.f32 %v2056, %v1698
    %v2089 = vmul.f32 %v2057, %v1699
    %v2090 = vmul.f32 %v2058, %v1698
    %v2091 = vmul.f32 %v2059, %v1699
    %v2092 = vmul.f32 %v2060, %v1698
    %v2093 = vmul.f32 %v2061, %v1699
    %v2094 = vmul.f32 %v2062, %v1698
    %v2095 = vmul.f32 %v2063, %v1699
    %v2096 = vmul.f32 %v2064, %v1698
    %v2097 = vmul.f32 %v2065, %v1699
    %v2098 = vmul.f32 %v2066, %v1698
    %v2099 = vmul.f32 %v2067, %v1699
    %v2100 = vmul.f32 %v2068, %v1698
    %v2101 = vmul.f32 %v2069, %v1699
    %v2102 = vmul.f32 %v2070, %v1698
    %v2103 = vmul.f32 %v2071, %v1699
    %v2104 = vmul.f32 %v2072, %v1698
    %v2105 = vmul.f32 %v2073, %v1699
    %v2106 = vmul.f32 %v2074, %v1698
    %v2107 = vmul.f32 %v2075, %v1699
    %v2108 = vmul.f32 %v2076, %v1698
    %v2109 = vmul.f32 %v2077, %v1699
    %v2110 = vmul.f32 %v2078, %v1698
    %v2111 = vmul.f32 %v2079, %v1699
    %v2112 = vmul.f32 %v2080, %v1698
    %v2113 = vmul.f32 %v2081, %v1699
    %v2114 = vsub.f32 %v2018, %v2082
    %v2115 = vsub.f32 %v2019, %v2083
    %v2116 = vsub.f32 %v2020, %v2084
    %v2117 = vsub.f32 %v2021, %v2085
    %v2118 = vsub.f32 %v2022, %v2086
    %v2119 = vsub.f32 %v2023, %v2087
    %v2120 = vsub.f32 %v2024, %v2088
    %v2121 = vsub.f32 %v2025, %v2089
    %v2122 = vsub.f32 %v2026, %v2090
    %v2123 = vsub.f32 %v2027, %v2091
    %v2124 = vsub.f32 %v2028, %v2092
    %v2125 = vsub.f32 %v2029, %v2093
    %v2126 = vsub.f32 %v2030, %v2094
    %v2127 = vsub.f32 %v2031, %v2095
    %v2128 = vsub.f32 %v2032, %v2096
    %v2129 = vsub.f32 %v2033, %v2097
    %v2130 = vsub.f32 %v2034, %v2098
    %v2131 = vsub.f32 %v2035, %v2099
    %v2132 = vsub.f32 %v2036, %v2100
    %v2133 = vsub.f32 %v2037, %v2101
    %v2134 = vsub.f32 %v2038, %v2102
    %v2135 = vsub.f32 %v2039, %v2103
    %v2136 = vsub.f32 %v2040, %v2104
    %v2137 = vsub.f32 %v2041, %v2105
    %v2138 = vsub.f32 %v2042, %v2106
    %v2139 = vsub.f32 %v2043, %v2107
    %v2140 = vsub.f32 %v2044, %v2108
    %v2141 = vsub.f32 %v2045, %v2109
    %v2142 = vsub.f32 %v2046, %v2110
    %v2143 = vsub.f32 %v2047, %v2111
    %v2144 = vsub.f32 %v2048, %v2112
    %v2145 = vsub.f32 %v2049, %v2113
    %v2146 = vmul.f32 %v2050, %v1519
    %v2147 = vmul.f32 %v2051, %v1617
    %v2148 = vmul.f32 %v2052, %v1521
    %v2149 = vmul.f32 %v2053, %v1619
    %v2150 = vmul.f32 %v2054, %v1524
    %v2151 = vmul.f32 %v2055, %v1622
    %v2152 = vmul.f32 %v2056, %v1526
    %v2153 = vmul.f32 %v2057, %v1624
    %v2154 = vmul.f32 %v2058, %v1529
    %v2155 = vmul.f32 %v2059, %v1627
    %v2156 = vmul.f32 %v2060, %v1531
    %v2157 = vmul.f32 %v2061, %v1629
    %v2158 = vmul.f32 %v2062, %v1534
    %v2159 = vmul.f32 %v2063, %v1632
    %v2160 = vmul.f32 %v2064, %v1536
    %v2161 = vmul.f32 %v2065, %v1634
    %v2162 = vmul.f32 %v2066, %v1539
    %v2163 = vmul.f32 %v2067, %v1637
    %v2164 = vmul.f32 %v2068, %v1541
    %v2165 = vmul.f32 %v2069, %v1639
    %v2166 = vmul.f32 %v2070, %v1544
    %v2167 = vmul.f32 %v2071, %v1642
    %v2168 = vmul.f32 %v2072, %v1546
    %v2169 = vmul.f32 %v2073, %v1644
    %v2170 = vmul.f32 %v2074, %v1549
    %v2171 = vmul.f32 %v2075, %v1647
    %v2172 = vmul.f32 %v2076, %v1551
    %v2173 = vmul.f32 %v2077, %v1649
    %v2174 = vmul.f32 %v2078, %v1554
    %v2175 = vmul.f32 %v2079, %v1652
    %v2176 = vmul.f32 %v2080, %v1556
    %v2177 = vmul.f32 %v2081, %v1654
    %v2178 = vadd.f32 %v2146, %v2114
    %v2179 = vadd.f32 %v2147, %v2115
    %v2180 = vadd.f32 %v2148, %v2116
    %v2181 = vadd.f32 %v2149, %v2117
    %v2182 = vadd.f32 %v2150, %v2118
    %v2183 = vadd.f32 %v2151, %v2119
    %v2184 = vadd.f32 %v2152, %v2120
    %v2185 = vadd.f32 %v2153, %v2121
    %v2186 = vadd.f32 %v2154, %v2122
    %v2187 = vadd.f32 %v2155, %v2123
    %v2188 = vadd.f32 %v2156, %v2124
    %v2189 = vadd.f32 %v2157, %v2125
    %v2190 = vadd.f32 %v2158, %v2126
    %v2191 = vadd.f32 %v2159, %v2127
    %v2192 = vadd.f32 %v2160, %v2128
    %v2193 = vadd.f32 %v2161, %v2129
    %v2194 = vadd.f32 %v2162, %v2130
    %v2195 = vadd.f32 %v2163, %v2131
    %v2196 = vadd.f32 %v2164, %v2132
    %v2197 = vadd.f32 %v2165, %v2133
    %v2198 = vadd.f32 %v2166, %v2134
    %v2199 = vadd.f32 %v2167, %v2135
    %v2200 = vadd.f32 %v2168, %v2136
    %v2201 = vadd.f32 %v2169, %v2137
    %v2202 = vadd.f32 %v2170, %v2138
    %v2203 = vadd.f32 %v2171, %v2139
    %v2204 = vadd.f32 %v2172, %v2140
    %v2205 = vadd.f32 %v2173, %v2141
    %v2206 = vadd.f32 %v2174, %v2142
    %v2207 = vadd.f32 %v2175, %v2143
    %v2208 = vadd.f32 %v2176, %v2144
    %v2209 = vadd.f32 %v2177, %v2145
    %v2210 = vmax.f32 %v2178, 0.0
    %v2211 = vmax.f32 %v2179, 0.0
    %v2212 = vmax.f32 %v2180, 0.0
    %v2213 = vmax.f32 %v2181, 0.0
    %v2214 = vmax.f32 %v2182, 0.0
    %v2215 = vmax.f32 %v2183, 0.0
    %v2216 = vmax.f32 %v2184, 0.0
    %v2217 = vmax.f32 %v2185, 0.0
    %v2218 = vmax.f32 %v2186, 0.0
    %v2219 = vmax.f32 %v2187, 0.0
    %v2220 = vmax.f32 %v2188, 0.0
    %v2221 = vmax.f32 %v2189, 0.0
    %v2222 = vmax.f32 %v2190, 0.0
    %v2223 = vmax.f32 %v2191, 0.0
    %v2224 = vmax.f32 %v2192, 0.0
    %v2225 = vmax.f32 %v2193, 0.0
    %v2226 = vmax.f32 %v2194, 0.0
    %v2227 = vmax.f32 %v2195, 0.0
    %v2228 = vmax.f32 %v2196, 0.0
    %v2229 = vmax.f32 %v2197, 0.0
    %v2230 = vmax.f32 %v2198, 0.0
    %v2231 = vmax.f32 %v2199, 0.0
    %v2232 = vmax.f32 %v2200, 0.0
    %v2233 = vmax.f32 %v2201, 0.0
    %v2234 = vmax.f32 %v2202, 0.0
    %v2235 = vmax.f32 %v2203, 0.0
    %v2236 = vmax.f32 %v2204, 0.0
    %v2237 = vmax.f32 %v2205, 0.0
    %v2238 = vmax.f32 %v2206, 0.0
    %v2239 = vmax.f32 %v2207, 0.0
    %v2240 = vmax.f32 %v2208, 0.0
    %v2241 = vmax.f32 %v2209, 0.0
    %v2242 = vpack.c.bf16 %v2212, %v2210
    %v2243 = vpack.c.bf16 %v2213, %v2211
    %v2244 = vpack.c.bf16 %v2216, %v2214
    %v2245 = vpack.c.bf16 %v2217, %v2215
    %v2246 = vpack.c.bf16 %v2220, %v2218
    %v2247 = vpack.c.bf16 %v2221, %v2219
    %v2248 = vpack.c.bf16 %v2224, %v2222
    %v2249 = vpack.c.bf16 %v2225, %v2223
    %v2250 = vpack.c.bf16 %v2228, %v2226
    %v2251 = vpack.c.bf16 %v2229, %v2227
    %v2252 = vpack.c.bf16 %v2232, %v2230
    %v2253 = vpack.c.bf16 %v2233, %v2231
    %v2254 = vpack.c.bf16 %v2236, %v2234
    %v2255 = vpack.c.bf16 %v2237, %v2235
    %v2256 = vpack.c.bf16 %v2240, %v2238
    %v2257 = vpack.c.bf16 %v2241, %v2239
    %v2258 = vld [vmem:[#allocation13] sm:$0xff]
    %v2259 = vld [vmem:[#allocation13 + $0x8] sm:$0xff]
    %v2260 = vld [vmem:[#allocation13 + $0x10] sm:$0xff]
    %v2261 = vld [vmem:[#allocation13 + $0x18] sm:$0xff]
    %v2262 = vld [vmem:[#allocation13 + $0x20] sm:$0xff]
    %v2263 = vld [vmem:[#allocation13 + $0x28] sm:$0xff]
    %v2264 = vld [vmem:[#allocation13 + $0x30] sm:$0xff]
    %v2265 = vld [vmem:[#allocation13 + $0x38] sm:$0xff]
    %v2266 = vld [vmem:[#allocation13 + $0x40] sm:$0xff]
    %v2267 = vld [vmem:[#allocation13 + $0x48] sm:$0xff]
    %v2268 = vld [vmem:[#allocation13 + $0x50] sm:$0xff]
    %v2269 = vld [vmem:[#allocation13 + $0x58] sm:$0xff]
    %v2270 = vld [vmem:[#allocation13 + $0x60] sm:$0xff]
    %v2271 = vld [vmem:[#allocation13 + $0x68] sm:$0xff]
    %v2272 = vld [vmem:[#allocation13 + $0x70] sm:$0xff]
    %v2273 = vld [vmem:[#allocation13 + $0x78] sm:$0xff]
    %v2274 = vld [vmem:[#allocation13 + $0x80] sm:$0xff]
    %v2275 = vld [vmem:[#allocation13 + $0x88] sm:$0xff]
    %v2276 = vld [vmem:[#allocation13 + $0x90] sm:$0xff]
    %v2277 = vld [vmem:[#allocation13 + $0x98] sm:$0xff]
    %v2278 = vld [vmem:[#allocation13 + $0xa0] sm:$0xff]
    %v2279 = vld [vmem:[#allocation13 + $0xa8] sm:$0xff]
    %v2280 = vld [vmem:[#allocation13 + $0xb0] sm:$0xff]
    %v2281 = vld [vmem:[#allocation13 + $0xb8] sm:$0xff]
    %v2282 = vld [vmem:[#allocation13 + $0xc0] sm:$0xff]
    %v2283 = vld [vmem:[#allocation13 + $0xc8] sm:$0xff]
    %v2284 = vld [vmem:[#allocation13 + $0xd0] sm:$0xff]
    %v2285 = vld [vmem:[#allocation13 + $0xd8] sm:$0xff]
    %v2286 = vld [vmem:[#allocation13 + $0xe0] sm:$0xff]
    %v2287 = vld [vmem:[#allocation13 + $0xe8] sm:$0xff]
    %v2288 = vld [vmem:[#allocation13 + $0xf0] sm:$0xff]
    %v2289 = vld [vmem:[#allocation13 + $0xf8] sm:$0xff]
    %v2290 = vld [vmem:[#allocation13 + $0x100] sm:$0xff]
    %v2291 = vld [vmem:[#allocation13 + $0x108] sm:$0xff]
    %v2292 = vld [vmem:[#allocation13 + $0x110] sm:$0xff]
    %v2293 = vld [vmem:[#allocation13 + $0x118] sm:$0xff]
    %v2294 = vld [vmem:[#allocation13 + $0x120] sm:$0xff]
    %v2295 = vld [vmem:[#allocation13 + $0x128] sm:$0xff]
    %v2296 = vld [vmem:[#allocation13 + $0x130] sm:$0xff]
    %v2297 = vld [vmem:[#allocation13 + $0x138] sm:$0xff]
    %v2298 = vld [vmem:[#allocation13 + $0x140] sm:$0xff]
    %v2299 = vld [vmem:[#allocation13 + $0x148] sm:$0xff]
    %v2300 = vld [vmem:[#allocation13 + $0x150] sm:$0xff]
    %v2301 = vld [vmem:[#allocation13 + $0x158] sm:$0xff]
    %v2302 = vld [vmem:[#allocation13 + $0x160] sm:$0xff]
    %v2303 = vld [vmem:[#allocation13 + $0x168] sm:$0xff]
    %v2304 = vld [vmem:[#allocation13 + $0x170] sm:$0xff]
    %v2305 = vld [vmem:[#allocation13 + $0x178] sm:$0xff]
    %v2306 = vld [vmem:[#allocation13 + $0x180] sm:$0xff]
    %v2307 = vld [vmem:[#allocation13 + $0x188] sm:$0xff]
    %v2308 = vld [vmem:[#allocation13 + $0x190] sm:$0xff]
    %v2309 = vld [vmem:[#allocation13 + $0x198] sm:$0xff]
    %v2310 = vld [vmem:[#allocation13 + $0x1a0] sm:$0xff]
    %v2311 = vld [vmem:[#allocation13 + $0x1a8] sm:$0xff]
    %v2312 = vld [vmem:[#allocation13 + $0x1b0] sm:$0xff]
    %v2313 = vld [vmem:[#allocation13 + $0x1b8] sm:$0xff]
    %v2314 = vld [vmem:[#allocation13 + $0x1c0] sm:$0xff]
    %v2315 = vld [vmem:[#allocation13 + $0x1c8] sm:$0xff]
    %v2316 = vld [vmem:[#allocation13 + $0x1d0] sm:$0xff]
    %v2317 = vld [vmem:[#allocation13 + $0x1d8] sm:$0xff]
    %v2318 = vld [vmem:[#allocation13 + $0x1e0] sm:$0xff]
    %v2319 = vld [vmem:[#allocation13 + $0x1e8] sm:$0xff]
    %v2320 = vld [vmem:[#allocation13 + $0x1f0] sm:$0xff]
    %v2321 = vld [vmem:[#allocation13 + $0x1f8] sm:$0xff]
    %v2322 = vld [vmem:[%s9] sm:$0xf]
    %v2324 = vperm.slane %v2322, 0
    %v2325 = vperm.slane %v2322, 1
    %v2326 = vperm.slane %v2322, 2
    %v2327 = vperm.slane %v2322, 3
    %v2396 = vunpack.c.l.b16 %v2258
    %v2397 = vunpack.c.h.b16 %v2258
    %v2398 = vunpack.c.l.b16 %v2259
    %v2399 = vunpack.c.h.b16 %v2259
    %v2400 = vunpack.c.l.b16 %v2260
    %v2401 = vunpack.c.h.b16 %v2260
    %v2402 = vunpack.c.l.b16 %v2261
    %v2403 = vunpack.c.h.b16 %v2261
    %v2404 = vunpack.c.l.b16 %v2262
    %v2405 = vunpack.c.h.b16 %v2262
    %v2406 = vunpack.c.l.b16 %v2263
    %v2407 = vunpack.c.h.b16 %v2263
    %v2408 = vunpack.c.l.b16 %v2264
    %v2409 = vunpack.c.h.b16 %v2264
    %v2410 = vunpack.c.l.b16 %v2265
    %v2411 = vunpack.c.h.b16 %v2265
    %v2412 = vunpack.c.l.b16 %v2266
    %v2413 = vunpack.c.h.b16 %v2266
    %v2414 = vunpack.c.l.b16 %v2267
    %v2415 = vunpack.c.h.b16 %v2267
    %v2416 = vunpack.c.l.b16 %v2268
    %v2417 = vunpack.c.h.b16 %v2268
    %v2418 = vunpack.c.l.b16 %v2269
    %v2419 = vunpack.c.h.b16 %v2269
    %v2420 = vunpack.c.l.b16 %v2270
    %v2421 = vunpack.c.h.b16 %v2270
    %v2422 = vunpack.c.l.b16 %v2271
    %v2423 = vunpack.c.h.b16 %v2271
    %v2424 = vunpack.c.l.b16 %v2272
    %v2425 = vunpack.c.h.b16 %v2272
    %v2426 = vunpack.c.l.b16 %v2273
    %v2427 = vunpack.c.h.b16 %v2273
    %v2428 = vunpack.c.l.b16 %v2274
    %v2429 = vunpack.c.h.b16 %v2274
    %v2430 = vunpack.c.l.b16 %v2275
    %v2431 = vunpack.c.h.b16 %v2275
    %v2432 = vunpack.c.l.b16 %v2276
    %v2433 = vunpack.c.h.b16 %v2276
    %v2434 = vunpack.c.l.b16 %v2277
    %v2435 = vunpack.c.h.b16 %v2277
    %v2436 = vunpack.c.l.b16 %v2278
    %v2437 = vunpack.c.h.b16 %v2278
    %v2438 = vunpack.c.l.b16 %v2279
    %v2439 = vunpack.c.h.b16 %v2279
    %v2440 = vunpack.c.l.b16 %v2280
    %v2441 = vunpack.c.h.b16 %v2280
    %v2442 = vunpack.c.l.b16 %v2281
    %v2443 = vunpack.c.h.b16 %v2281
    %v2444 = vunpack.c.l.b16 %v2282
    %v2445 = vunpack.c.h.b16 %v2282
    %v2446 = vunpack.c.l.b16 %v2283
    %v2447 = vunpack.c.h.b16 %v2283
    %v2448 = vunpack.c.l.b16 %v2284
    %v2449 = vunpack.c.h.b16 %v2284
    %v2450 = vunpack.c.l.b16 %v2285
    %v2451 = vunpack.c.h.b16 %v2285
    %v2452 = vunpack.c.l.b16 %v2286
    %v2453 = vunpack.c.h.b16 %v2286
    %v2454 = vunpack.c.l.b16 %v2287
    %v2455 = vunpack.c.h.b16 %v2287
    %v2456 = vunpack.c.l.b16 %v2288
    %v2457 = vunpack.c.h.b16 %v2288
    %v2458 = vunpack.c.l.b16 %v2289
    %v2459 = vunpack.c.h.b16 %v2289
    %v2460 = vunpack.c.l.b16 %v2290
    %v2461 = vunpack.c.h.b16 %v2290
    %v2462 = vunpack.c.l.b16 %v2291
    %v2463 = vunpack.c.h.b16 %v2291
    %v2464 = vunpack.c.l.b16 %v2292
    %v2465 = vunpack.c.h.b16 %v2292
    %v2466 = vunpack.c.l.b16 %v2293
    %v2467 = vunpack.c.h.b16 %v2293
    %v2468 = vunpack.c.l.b16 %v2294
    %v2469 = vunpack.c.h.b16 %v2294
    %v2470 = vunpack.c.l.b16 %v2295
    %v2471 = vunpack.c.h.b16 %v2295
    %v2472 = vunpack.c.l.b16 %v2296
    %v2473 = vunpack.c.h.b16 %v2296
    %v2474 = vunpack.c.l.b16 %v2297
    %v2475 = vunpack.c.h.b16 %v2297
    %v2476 = vunpack.c.l.b16 %v2298
    %v2477 = vunpack.c.h.b16 %v2298
    %v2478 = vunpack.c.l.b16 %v2299
    %v2479 = vunpack.c.h.b16 %v2299
    %v2480 = vunpack.c.l.b16 %v2300
    %v2481 = vunpack.c.h.b16 %v2300
    %v2482 = vunpack.c.l.b16 %v2301
    %v2483 = vunpack.c.h.b16 %v2301
    %v2484 = vunpack.c.l.b16 %v2302
    %v2485 = vunpack.c.h.b16 %v2302
    %v2486 = vunpack.c.l.b16 %v2303
    %v2487 = vunpack.c.h.b16 %v2303
    %v2488 = vunpack.c.l.b16 %v2304
    %v2489 = vunpack.c.h.b16 %v2304
    %v2490 = vunpack.c.l.b16 %v2305
    %v2491 = vunpack.c.h.b16 %v2305
    %v2492 = vunpack.c.l.b16 %v2306
    %v2493 = vunpack.c.h.b16 %v2306
    %v2494 = vunpack.c.l.b16 %v2307
    %v2495 = vunpack.c.h.b16 %v2307
    %v2496 = vunpack.c.l.b16 %v2308
    %v2497 = vunpack.c.h.b16 %v2308
    %v2498 = vunpack.c.l.b16 %v2309
    %v2499 = vunpack.c.h.b16 %v2309
    %v2500 = vunpack.c.l.b16 %v2310
    %v2501 = vunpack.c.h.b16 %v2310
    %v2502 = vunpack.c.l.b16 %v2311
    %v2503 = vunpack.c.h.b16 %v2311
    %v2504 = vunpack.c.l.b16 %v2312
    %v2505 = vunpack.c.h.b16 %v2312
    %v2506 = vunpack.c.l.b16 %v2313
    %v2507 = vunpack.c.h.b16 %v2313
    %v2508 = vunpack.c.l.b16 %v2314
    %v2509 = vunpack.c.h.b16 %v2314
    %v2510 = vunpack.c.l.b16 %v2315
    %v2511 = vunpack.c.h.b16 %v2315
    %v2512 = vunpack.c.l.b16 %v2316
    %v2513 = vunpack.c.h.b16 %v2316
    %v2514 = vunpack.c.l.b16 %v2317
    %v2515 = vunpack.c.h.b16 %v2317
    %v2516 = vunpack.c.l.b16 %v2318
    %v2517 = vunpack.c.h.b16 %v2318
    %v2518 = vunpack.c.l.b16 %v2319
    %v2519 = vunpack.c.h.b16 %v2319
    %v2520 = vunpack.c.l.b16 %v2320
    %v2521 = vunpack.c.h.b16 %v2320
    %v2522 = vunpack.c.l.b16 %v2321
    %v2523 = vunpack.c.h.b16 %v2321
    %v2524 = vpack.c.b16 %v2400, %v2396
    %v2525 = vpack.c.b16 %v2401, %v2397
    %v2526 = vpack.c.b16 %v2402, %v2398
    %v2527 = vpack.c.b16 %v2403, %v2399
    %v2528 = vpack.c.b16 %v2408, %v2404
    %v2529 = vpack.c.b16 %v2409, %v2405
    %v2530 = vpack.c.b16 %v2410, %v2406
    %v2531 = vpack.c.b16 %v2411, %v2407
    %v2532 = vpack.c.b16 %v2416, %v2412
    %v2533 = vpack.c.b16 %v2417, %v2413
    %v2534 = vpack.c.b16 %v2418, %v2414
    %v2535 = vpack.c.b16 %v2419, %v2415
    %v2536 = vpack.c.b16 %v2424, %v2420
    %v2537 = vpack.c.b16 %v2425, %v2421
    %v2538 = vpack.c.b16 %v2426, %v2422
    %v2539 = vpack.c.b16 %v2427, %v2423
    %v2540 = vpack.c.b16 %v2432, %v2428
    %v2541 = vpack.c.b16 %v2433, %v2429
    %v2542 = vpack.c.b16 %v2434, %v2430
    %v2543 = vpack.c.b16 %v2435, %v2431
    %v2544 = vpack.c.b16 %v2440, %v2436
    %v2545 = vpack.c.b16 %v2441, %v2437
    %v2546 = vpack.c.b16 %v2442, %v2438
    %v2547 = vpack.c.b16 %v2443, %v2439
    %v2548 = vpack.c.b16 %v2448, %v2444
    %v2549 = vpack.c.b16 %v2449, %v2445
    %v2550 = vpack.c.b16 %v2450, %v2446
    %v2551 = vpack.c.b16 %v2451, %v2447
    %v2552 = vpack.c.b16 %v2456, %v2452
    %v2553 = vpack.c.b16 %v2457, %v2453
    %v2554 = vpack.c.b16 %v2458, %v2454
    %v2555 = vpack.c.b16 %v2459, %v2455
    %v2556 = vpack.c.b16 %v2464, %v2460
    %v2557 = vpack.c.b16 %v2465, %v2461
    %v2558 = vpack.c.b16 %v2466, %v2462
    %v2559 = vpack.c.b16 %v2467, %v2463
    %v2560 = vpack.c.b16 %v2472, %v2468
    %v2561 = vpack.c.b16 %v2473, %v2469
    %v2562 = vpack.c.b16 %v2474, %v2470
    %v2563 = vpack.c.b16 %v2475, %v2471
    %v2564 = vpack.c.b16 %v2480, %v2476
    %v2565 = vpack.c.b16 %v2481, %v2477
    %v2566 = vpack.c.b16 %v2482, %v2478
    %v2567 = vpack.c.b16 %v2483, %v2479
    %v2568 = vpack.c.b16 %v2488, %v2484
    %v2569 = vpack.c.b16 %v2489, %v2485
    %v2570 = vpack.c.b16 %v2490, %v2486
    %v2571 = vpack.c.b16 %v2491, %v2487
    %v2572 = vpack.c.b16 %v2496, %v2492
    %v2573 = vpack.c.b16 %v2497, %v2493
    %v2574 = vpack.c.b16 %v2498, %v2494
    %v2575 = vpack.c.b16 %v2499, %v2495
    %v2576 = vpack.c.b16 %v2504, %v2500
    %v2577 = vpack.c.b16 %v2505, %v2501
    %v2578 = vpack.c.b16 %v2506, %v2502
    %v2579 = vpack.c.b16 %v2507, %v2503
    %v2580 = vpack.c.b16 %v2512, %v2508
    %v2581 = vpack.c.b16 %v2513, %v2509
    %v2582 = vpack.c.b16 %v2514, %v2510
    %v2583 = vpack.c.b16 %v2515, %v2511
    %v2584 = vpack.c.b16 %v2520, %v2516
    %v2585 = vpack.c.b16 %v2521, %v2517
    %v2586 = vpack.c.b16 %v2522, %v2518
    %v2587 = vpack.c.b16 %v2523, %v2519
    %2652 = vmatpush.bf16.msra.mxu0 %v2552
    %2653 = vmatpush.bf16.msra.mxu0 %v2548
    %2654 = vmatpush.bf16.msra.mxu0 %v2544
    %2655 = vmatpush.bf16.msra.mxu0 %v2540
    %2656 = vmatpush.bf16.msra.mxu0 %v2536
    %2657 = vmatpush.bf16.msra.mxu0 %v2532
    %2658 = vmatpush.bf16.msra.mxu0 %v2528
    %2659 = vmatpush.bf16.msra.mxu0 %v2524
    %2660 = vmatmul.bf16.gmra.mxu0 %v2242
    %v2661 = vpop.f32.mrf.mxu0
    %v2662 = vadd.f32 %v2324, %v2661
    %v2663 = vpop.f32.mrf.mxu0
    %v2664 = vadd.f32 %v2324, %v2663
    %2665 = vmatmul.bf16.gmra.mxu0 %v2244
    %v2666 = vpop.f32.mrf.mxu0
    %v2667 = vadd.f32 %v2324, %v2666
    %v2668 = vpop.f32.mrf.mxu0
    %v2669 = vadd.f32 %v2324, %v2668
    %2670 = vmatmul.bf16.gmra.mxu0 %v2246
    %v2671 = vpop.f32.mrf.mxu0
    %v2672 = vadd.f32 %v2324, %v2671
    %v2673 = vpop.f32.mrf.mxu0
    %v2674 = vadd.f32 %v2324, %v2673
    %2675 = vmatmul.bf16.gmra.mxu0 %v2248
    %v2676 = vpop.f32.mrf.mxu0
    %v2677 = vadd.f32 %v2324, %v2676
    %v2678 = vpop.f32.mrf.mxu0
    %v2679 = vadd.f32 %v2324, %v2678
    %2680 = vmatmul.bf16.gmra.mxu0 %v2250
    %v2681 = vpop.f32.mrf.mxu0
    %v2682 = vadd.f32 %v2324, %v2681
    %v2683 = vpop.f32.mrf.mxu0
    %v2684 = vadd.f32 %v2324, %v2683
    %2685 = vmatmul.bf16.gmra.mxu0 %v2252
    %v2686 = vpop.f32.mrf.mxu0
    %v2687 = vadd.f32 %v2324, %v2686
    %v2688 = vpop.f32.mrf.mxu0
    %v2689 = vadd.f32 %v2324, %v2688
    %2690 = vmatmul.bf16.gmra.mxu0 %v2254
    %v2691 = vpop.f32.mrf.mxu0
    %v2692 = vadd.f32 %v2324, %v2691
    %v2693 = vpop.f32.mrf.mxu0
    %v2694 = vadd.f32 %v2324, %v2693
    %2695 = vmatmul.bf16.gmra.mxu0 %v2256
    %v2696 = vpop.f32.mrf.mxu0
    %v2697 = vadd.f32 %v2324, %v2696
    %v2698 = vpop.f32.mrf.mxu0
    %v2699 = vadd.f32 %v2324, %v2698
    %2700 = vdwg.mxu0
    %2701 = vmatpush.bf16.msra.mxu0 %v2584
    %2702 = vmatpush.bf16.msra.mxu0 %v2580
    %2703 = vmatpush.bf16.msra.mxu0 %v2576
    %2704 = vmatpush.bf16.msra.mxu0 %v2572
    %2705 = vmatpush.bf16.msra.mxu0 %v2568
    %2706 = vmatpush.bf16.msra.mxu0 %v2564
    %2707 = vmatpush.bf16.msra.mxu0 %v2560
    %2708 = vmatpush.bf16.msra.mxu0 %v2556
    %2709 = vmatmul.bf16.gmra.mxu0 %v2243
    %v2710 = vpop.f32.mrf.mxu0
    %v2711 = vadd.f32 %v2662, %v2710
    %v2712 = vpop.f32.mrf.mxu0
    %v2713 = vadd.f32 %v2664, %v2712
    %2714 = vmatmul.bf16.gmra.mxu0 %v2245
    %v2715 = vpop.f32.mrf.mxu0
    %v2716 = vadd.f32 %v2667, %v2715
    %v2717 = vpop.f32.mrf.mxu0
    %v2718 = vadd.f32 %v2669, %v2717
    %2719 = vmatmul.bf16.gmra.mxu0 %v2247
    %v2720 = vpop.f32.mrf.mxu0
    %v2721 = vadd.f32 %v2672, %v2720
    %v2722 = vpop.f32.mrf.mxu0
    %v2723 = vadd.f32 %v2674, %v2722
    %2724 = vmatmul.bf16.gmra.mxu0 %v2249
    %v2725 = vpop.f32.mrf.mxu0
    %v2726 = vadd.f32 %v2677, %v2725
    %v2727 = vpop.f32.mrf.mxu0
    %v2728 = vadd.f32 %v2679, %v2727
    %2729 = vmatmul.bf16.gmra.mxu0 %v2251
    %v2730 = vpop.f32.mrf.mxu0
    %v2731 = vadd.f32 %v2682, %v2730
    %v2732 = vpop.f32.mrf.mxu0
    %v2733 = vadd.f32 %v2684, %v2732
    %2734 = vmatmul.bf16.gmra.mxu0 %v2253
    %v2735 = vpop.f32.mrf.mxu0
    %v2736 = vadd.f32 %v2687, %v2735
    %v2737 = vpop.f32.mrf.mxu0
    %v2738 = vadd.f32 %v2689, %v2737
    %2739 = vmatmul.bf16.gmra.mxu0 %v2255
    %v2740 = vpop.f32.mrf.mxu0
    %v2741 = vadd.f32 %v2692, %v2740
    %v2742 = vpop.f32.mrf.mxu0
    %v2743 = vadd.f32 %v2694, %v2742
    %2744 = vmatmul.bf16.gmra.mxu0 %v2257
    %v2745 = vpop.f32.mrf.mxu0
    %v2746 = vadd.f32 %v2697, %v2745
    %v2747 = vpop.f32.mrf.mxu0
    %v2748 = vadd.f32 %v2699, %v2747
    %2749 = vdwg.mxu0
    %2750 = vmatpush.bf16.msra.mxu0 %v2553
    %2751 = vmatpush.bf16.msra.mxu0 %v2549
    %2752 = vmatpush.bf16.msra.mxu0 %v2545
    %2753 = vmatpush.bf16.msra.mxu0 %v2541
    %2754 = vmatpush.bf16.msra.mxu0 %v2537
    %2755 = vmatpush.bf16.msra.mxu0 %v2533
    %2756 = vmatpush.bf16.msra.mxu0 %v2529
    %2757 = vmatpush.bf16.msra.mxu0 %v2525
    %2758 = vmatmul.bf16.gmra.mxu0 %v2242
    %v2759 = vpop.f32.mrf.mxu0
    %v2760 = vadd.f32 %v2325, %v2759
    %v2761 = vpop.f32.mrf.mxu0
    %v2762 = vadd.f32 %v2325, %v2761
    %2763 = vmatmul.bf16.gmra.mxu0 %v2244
    %v2764 = vpop.f32.mrf.mxu0
    %v2765 = vadd.f32 %v2325, %v2764
    %v2766 = vpop.f32.mrf.mxu0
    %v2767 = vadd.f32 %v2325, %v2766
    %2768 = vmatmul.bf16.gmra.mxu0 %v2246
    %v2769 = vpop.f32.mrf.mxu0
    %v2770 = vadd.f32 %v2325, %v2769
    %v2771 = vpop.f32.mrf.mxu0
    %v2772 = vadd.f32 %v2325, %v2771
    %2773 = vmatmul.bf16.gmra.mxu0 %v2248
    %v2774 = vpop.f32.mrf.mxu0
    %v2775 = vadd.f32 %v2325, %v2774
    %v2776 = vpop.f32.mrf.mxu0
    %v2777 = vadd.f32 %v2325, %v2776
    %2778 = vmatmul.bf16.gmra.mxu0 %v2250
    %v2779 = vpop.f32.mrf.mxu0
    %v2780 = vadd.f32 %v2325, %v2779
    %v2781 = vpop.f32.mrf.mxu0
    %v2782 = vadd.f32 %v2325, %v2781
    %2783 = vmatmul.bf16.gmra.mxu0 %v2252
    %v2784 = vpop.f32.mrf.mxu0
    %v2785 = vadd.f32 %v2325, %v2784
    %v2786 = vpop.f32.mrf.mxu0
    %v2787 = vadd.f32 %v2325, %v2786
    %2788 = vmatmul.bf16.gmra.mxu0 %v2254
    %v2789 = vpop.f32.mrf.mxu0
    %v2790 = vadd.f32 %v2325, %v2789
    %v2791 = vpop.f32.mrf.mxu0
    %v2792 = vadd.f32 %v2325, %v2791
    %2793 = vmatmul.bf16.gmra.mxu0 %v2256
    %v2794 = vpop.f32.mrf.mxu0
    %v2795 = vadd.f32 %v2325, %v2794
    %v2796 = vpop.f32.mrf.mxu0
    %v2797 = vadd.f32 %v2325, %v2796
    %2798 = vdwg.mxu0
    %2799 = vmatpush.bf16.msra.mxu0 %v2585
    %2800 = vmatpush.bf16.msra.mxu0 %v2581
    %2801 = vmatpush.bf16.msra.mxu0 %v2577
    %2802 = vmatpush.bf16.msra.mxu0 %v2573
    %2803 = vmatpush.bf16.msra.mxu0 %v2569
    %2804 = vmatpush.bf16.msra.mxu0 %v2565
    %2805 = vmatpush.bf16.msra.mxu0 %v2561
    %2806 = vmatpush.bf16.msra.mxu0 %v2557
    %2807 = vmatmul.bf16.gmra.mxu0 %v2243
    %v2808 = vpop.f32.mrf.mxu0
    %v2809 = vadd.f32 %v2760, %v2808
    %v2810 = vpop.f32.mrf.mxu0
    %v2811 = vadd.f32 %v2762, %v2810
    %2812 = vmatmul.bf16.gmra.mxu0 %v2245
    %v2813 = vpop.f32.mrf.mxu0
    %v2814 = vadd.f32 %v2765, %v2813
    %v2815 = vpop.f32.mrf.mxu0
    %v2816 = vadd.f32 %v2767, %v2815
    %2817 = vmatmul.bf16.gmra.mxu0 %v2247
    %v2818 = vpop.f32.mrf.mxu0
    %v2819 = vadd.f32 %v2770, %v2818
    %v2820 = vpop.f32.mrf.mxu0
    %v2821 = vadd.f32 %v2772, %v2820
    %2822 = vmatmul.bf16.gmra.mxu0 %v2249
    %v2823 = vpop.f32.mrf.mxu0
    %v2824 = vadd.f32 %v2775, %v2823
    %v2825 = vpop.f32.mrf.mxu0
    %v2826 = vadd.f32 %v2777, %v2825
    %2827 = vmatmul.bf16.gmra.mxu0 %v2251
    %v2828 = vpop.f32.mrf.mxu0
    %v2829 = vadd.f32 %v2780, %v2828
    %v2830 = vpop.f32.mrf.mxu0
    %v2831 = vadd.f32 %v2782, %v2830
    %2832 = vmatmul.bf16.gmra.mxu0 %v2253
    %v2833 = vpop.f32.mrf.mxu0
    %v2834 = vadd.f32 %v2785, %v2833
    %v2835 = vpop.f32.mrf.mxu0
    %v2836 = vadd.f32 %v2787, %v2835
    %2837 = vmatmul.bf16.gmra.mxu0 %v2255
    %v2838 = vpop.f32.mrf.mxu0
    %v2839 = vadd.f32 %v2790, %v2838
    %v2840 = vpop.f32.mrf.mxu0
    %v2841 = vadd.f32 %v2792, %v2840
    %2842 = vmatmul.bf16.gmra.mxu0 %v2257
    %v2843 = vpop.f32.mrf.mxu0
    %v2844 = vadd.f32 %v2795, %v2843
    %v2845 = vpop.f32.mrf.mxu0
    %v2846 = vadd.f32 %v2797, %v2845
    %2847 = vdwg.mxu0
    %2848 = vmatpush.bf16.msra.mxu0 %v2554
    %2849 = vmatpush.bf16.msra.mxu0 %v2550
    %2850 = vmatpush.bf16.msra.mxu0 %v2546
    %2851 = vmatpush.bf16.msra.mxu0 %v2542
    %2852 = vmatpush.bf16.msra.mxu0 %v2538
    %2853 = vmatpush.bf16.msra.mxu0 %v2534
    %2854 = vmatpush.bf16.msra.mxu0 %v2530
    %2855 = vmatpush.bf16.msra.mxu0 %v2526
    %2856 = vmatmul.bf16.gmra.mxu0 %v2242
    %v2857 = vpop.f32.mrf.mxu0
    %v2858 = vadd.f32 %v2326, %v2857
    %v2859 = vpop.f32.mrf.mxu0
    %v2860 = vadd.f32 %v2326, %v2859
    %2861 = vmatmul.bf16.gmra.mxu0 %v2244
    %v2862 = vpop.f32.mrf.mxu0
    %v2863 = vadd.f32 %v2326, %v2862
    %v2864 = vpop.f32.mrf.mxu0
    %v2865 = vadd.f32 %v2326, %v2864
    %2866 = vmatmul.bf16.gmra.mxu0 %v2246
    %v2867 = vpop.f32.mrf.mxu0
    %v2868 = vadd.f32 %v2326, %v2867
    %v2869 = vpop.f32.mrf.mxu0
    %v2870 = vadd.f32 %v2326, %v2869
    %2871 = vmatmul.bf16.gmra.mxu0 %v2248
    %v2872 = vpop.f32.mrf.mxu0
    %v2873 = vadd.f32 %v2326, %v2872
    %v2874 = vpop.f32.mrf.mxu0
    %v2875 = vadd.f32 %v2326, %v2874
    %2876 = vmatmul.bf16.gmra.mxu0 %v2250
    %v2877 = vpop.f32.mrf.mxu0
    %v2878 = vadd.f32 %v2326, %v2877
    %v2879 = vpop.f32.mrf.mxu0
    %v2880 = vadd.f32 %v2326, %v2879
    %2881 = vmatmul.bf16.gmra.mxu0 %v2252
    %v2882 = vpop.f32.mrf.mxu0
    %v2883 = vadd.f32 %v2326, %v2882
    %v2884 = vpop.f32.mrf.mxu0
    %v2885 = vadd.f32 %v2326, %v2884
    %2886 = vmatmul.bf16.gmra.mxu0 %v2254
    %v2887 = vpop.f32.mrf.mxu0
    %v2888 = vadd.f32 %v2326, %v2887
    %v2889 = vpop.f32.mrf.mxu0
    %v2890 = vadd.f32 %v2326, %v2889
    %2891 = vmatmul.bf16.gmra.mxu0 %v2256
    %v2892 = vpop.f32.mrf.mxu0
    %v2893 = vadd.f32 %v2326, %v2892
    %v2894 = vpop.f32.mrf.mxu0
    %v2895 = vadd.f32 %v2326, %v2894
    %2896 = vdwg.mxu0
    %2897 = vmatpush.bf16.msra.mxu0 %v2586
    %2898 = vmatpush.bf16.msra.mxu0 %v2582
    %2899 = vmatpush.bf16.msra.mxu0 %v2578
    %2900 = vmatpush.bf16.msra.mxu0 %v2574
    %2901 = vmatpush.bf16.msra.mxu0 %v2570
    %2902 = vmatpush.bf16.msra.mxu0 %v2566
    %2903 = vmatpush.bf16.msra.mxu0 %v2562
    %2904 = vmatpush.bf16.msra.mxu0 %v2558
    %2905 = vmatmul.bf16.gmra.mxu0 %v2243
    %v2906 = vpop.f32.mrf.mxu0
    %v2907 = vadd.f32 %v2858, %v2906
    %v2908 = vpop.f32.mrf.mxu0
    %v2909 = vadd.f32 %v2860, %v2908
    %2910 = vmatmul.bf16.gmra.mxu0 %v2245
    %v2911 = vpop.f32.mrf.mxu0
    %v2912 = vadd.f32 %v2863, %v2911
    %v2913 = vpop.f32.mrf.mxu0
    %v2914 = vadd.f32 %v2865, %v2913
    %2915 = vmatmul.bf16.gmra.mxu0 %v2247
    %v2916 = vpop.f32.mrf.mxu0
    %v2917 = vadd.f32 %v2868, %v2916
    %v2918 = vpop.f32.mrf.mxu0
    %v2919 = vadd.f32 %v2870, %v2918
    %2920 = vmatmul.bf16.gmra.mxu0 %v2249
    %v2921 = vpop.f32.mrf.mxu0
    %v2922 = vadd.f32 %v2873, %v2921
    %v2923 = vpop.f32.mrf.mxu0
    %v2924 = vadd.f32 %v2875, %v2923
    %2925 = vmatmul.bf16.gmra.mxu0 %v2251
    %v2926 = vpop.f32.mrf.mxu0
    %v2927 = vadd.f32 %v2878, %v2926
    %v2928 = vpop.f32.mrf.mxu0
    %v2929 = vadd.f32 %v2880, %v2928
    %2930 = vmatmul.bf16.gmra.mxu0 %v2253
    %v2931 = vpop.f32.mrf.mxu0
    %v2932 = vadd.f32 %v2883, %v2931
    %v2933 = vpop.f32.mrf.mxu0
    %v2934 = vadd.f32 %v2885, %v2933
    %2935 = vmatmul.bf16.gmra.mxu0 %v2255
    %v2936 = vpop.f32.mrf.mxu0
    %v2937 = vadd.f32 %v2888, %v2936
    %v2938 = vpop.f32.mrf.mxu0
    %v2939 = vadd.f32 %v2890, %v2938
    %2940 = vmatmul.bf16.gmra.mxu0 %v2257
    %v2941 = vpop.f32.mrf.mxu0
    %v2942 = vadd.f32 %v2893, %v2941
    %v2943 = vpop.f32.mrf.mxu0
    %v2944 = vadd.f32 %v2895, %v2943
    %2945 = vdwg.mxu0
    %2946 = vmatpush.bf16.msra.mxu0 %v2555
    %2947 = vmatpush.bf16.msra.mxu0 %v2551
    %2948 = vmatpush.bf16.msra.mxu0 %v2547
    %2949 = vmatpush.bf16.msra.mxu0 %v2543
    %2950 = vmatpush.bf16.msra.mxu0 %v2539
    %2951 = vmatpush.bf16.msra.mxu0 %v2535
    %2952 = vmatpush.bf16.msra.mxu0 %v2531
    %2953 = vmatpush.bf16.msra.mxu0 %v2527
    %2954 = vmatmul.bf16.gmra.mxu0 %v2242
    %v2955 = vpop.f32.mrf.mxu0
    %v2956 = vadd.f32 %v2327, %v2955
    %v2957 = vpop.f32.mrf.mxu0
    %v2958 = vadd.f32 %v2327, %v2957
    %2959 = vmatmul.bf16.gmra.mxu0 %v2244
    %v2960 = vpop.f32.mrf.mxu0
    %v2961 = vadd.f32 %v2327, %v2960
    %v2962 = vpop.f32.mrf.mxu0
    %v2963 = vadd.f32 %v2327, %v2962
    %2964 = vmatmul.bf16.gmra.mxu0 %v2246
    %v2965 = vpop.f32.mrf.mxu0
    %v2966 = vadd.f32 %v2327, %v2965
    %v2967 = vpop.f32.mrf.mxu0
    %v2968 = vadd.f32 %v2327, %v2967
    %2969 = vmatmul.bf16.gmra.mxu0 %v2248
    %v2970 = vpop.f32.mrf.mxu0
    %v2971 = vadd.f32 %v2327, %v2970
    %v2972 = vpop.f32.mrf.mxu0
    %v2973 = vadd.f32 %v2327, %v2972
    %2974 = vmatmul.bf16.gmra.mxu0 %v2250
    %v2975 = vpop.f32.mrf.mxu0
    %v2976 = vadd.f32 %v2327, %v2975
    %v2977 = vpop.f32.mrf.mxu0
    %v2978 = vadd.f32 %v2327, %v2977
    %2979 = vmatmul.bf16.gmra.mxu0 %v2252
    %v2980 = vpop.f32.mrf.mxu0
    %v2981 = vadd.f32 %v2327, %v2980
    %v2982 = vpop.f32.mrf.mxu0
    %v2983 = vadd.f32 %v2327, %v2982
    %2984 = vmatmul.bf16.gmra.mxu0 %v2254
    %v2985 = vpop.f32.mrf.mxu0
    %v2986 = vadd.f32 %v2327, %v2985
    %v2987 = vpop.f32.mrf.mxu0
    %v2988 = vadd.f32 %v2327, %v2987
    %2989 = vmatmul.bf16.gmra.mxu0 %v2256
    %v2990 = vpop.f32.mrf.mxu0
    %v2991 = vadd.f32 %v2327, %v2990
    %v2992 = vpop.f32.mrf.mxu0
    %v2993 = vadd.f32 %v2327, %v2992
    %2994 = vdwg.mxu0
    %2995 = vmatpush.bf16.msra.mxu0 %v2587
    %2996 = vmatpush.bf16.msra.mxu0 %v2583
    %2997 = vmatpush.bf16.msra.mxu0 %v2579
    %2998 = vmatpush.bf16.msra.mxu0 %v2575
    %2999 = vmatpush.bf16.msra.mxu0 %v2571
    %3000 = vmatpush.bf16.msra.mxu0 %v2567
    %3001 = vmatpush.bf16.msra.mxu0 %v2563
    %3002 = vmatpush.bf16.msra.mxu0 %v2559
    %3003 = vmatmul.bf16.gmra.mxu0 %v2243
    %v3004 = vpop.f32.mrf.mxu0
    %v3005 = vadd.f32 %v2956, %v3004
    %v3006 = vpop.f32.mrf.mxu0
    %v3007 = vadd.f32 %v2958, %v3006
    %3008 = vmatmul.bf16.gmra.mxu0 %v2245
    %v3009 = vpop.f32.mrf.mxu0
    %v3010 = vadd.f32 %v2961, %v3009
    %v3011 = vpop.f32.mrf.mxu0
    %v3012 = vadd.f32 %v2963, %v3011
    %3013 = vmatmul.bf16.gmra.mxu0 %v2247
    %v3014 = vpop.f32.mrf.mxu0
    %v3015 = vadd.f32 %v2966, %v3014
    %v3016 = vpop.f32.mrf.mxu0
    %v3017 = vadd.f32 %v2968, %v3016
    %3018 = vmatmul.bf16.gmra.mxu0 %v2249
    %v3019 = vpop.f32.mrf.mxu0
    %v3020 = vadd.f32 %v2971, %v3019
    %v3021 = vpop.f32.mrf.mxu0
    %v3022 = vadd.f32 %v2973, %v3021
    %3023 = vmatmul.bf16.gmra.mxu0 %v2251
    %v3024 = vpop.f32.mrf.mxu0
    %v3025 = vadd.f32 %v2976, %v3024
    %v3026 = vpop.f32.mrf.mxu0
    %v3027 = vadd.f32 %v2978, %v3026
    %3028 = vmatmul.bf16.gmra.mxu0 %v2253
    %v3029 = vpop.f32.mrf.mxu0
    %v3030 = vadd.f32 %v2981, %v3029
    %v3031 = vpop.f32.mrf.mxu0
    %v3032 = vadd.f32 %v2983, %v3031
    %3033 = vmatmul.bf16.gmra.mxu0 %v2255
    %v3034 = vpop.f32.mrf.mxu0
    %v3035 = vadd.f32 %v2986, %v3034
    %v3036 = vpop.f32.mrf.mxu0
    %v3037 = vadd.f32 %v2988, %v3036
    %3038 = vmatmul.bf16.gmra.mxu0 %v2257
    %v3039 = vpop.f32.mrf.mxu0
    %v3040 = vadd.f32 %v2991, %v3039
    %v3041 = vpop.f32.mrf.mxu0
    %v3042 = vadd.f32 %v2993, %v3041
    %3043 = vdwg.mxu0
    %v3044 = vmax.f32 %v2711, 0.0
    %v3045 = vmax.f32 %v2809, 0.0
    %v3046 = vmax.f32 %v2907, 0.0
    %v3047 = vmax.f32 %v3005, 0.0
    %v3048 = vmax.f32 %v2713, 0.0
    %v3049 = vmax.f32 %v2811, 0.0
    %v3050 = vmax.f32 %v2909, 0.0
    %v3051 = vmax.f32 %v3007, 0.0
    %v3052 = vmax.f32 %v2716, 0.0
    %v3053 = vmax.f32 %v2814, 0.0
    %v3054 = vmax.f32 %v2912, 0.0
    %v3055 = vmax.f32 %v3010, 0.0
    %v3056 = vmax.f32 %v2718, 0.0
    %v3057 = vmax.f32 %v2816, 0.0
    %v3058 = vmax.f32 %v2914, 0.0
    %v3059 = vmax.f32 %v3012, 0.0
    %v3060 = vmax.f32 %v2721, 0.0
    %v3061 = vmax.f32 %v2819, 0.0
    %v3062 = vmax.f32 %v2917, 0.0
    %v3063 = vmax.f32 %v3015, 0.0
    %v3064 = vmax.f32 %v2723, 0.0
    %v3065 = vmax.f32 %v2821, 0.0
    %v3066 = vmax.f32 %v2919, 0.0
    %v3067 = vmax.f32 %v3017, 0.0
    %v3068 = vmax.f32 %v2726, 0.0
    %v3069 = vmax.f32 %v2824, 0.0
    %v3070 = vmax.f32 %v2922, 0.0
    %v3071 = vmax.f32 %v3020, 0.0
    %v3072 = vmax.f32 %v2728, 0.0
    %v3073 = vmax.f32 %v2826, 0.0
    %v3074 = vmax.f32 %v2924, 0.0
    %v3075 = vmax.f32 %v3022, 0.0
    %v3076 = vmax.f32 %v2731, 0.0
    %v3077 = vmax.f32 %v2829, 0.0
    %v3078 = vmax.f32 %v2927, 0.0
    %v3079 = vmax.f32 %v3025, 0.0
    %v3080 = vmax.f32 %v2733, 0.0
    %v3081 = vmax.f32 %v2831, 0.0
    %v3082 = vmax.f32 %v2929, 0.0
    %v3083 = vmax.f32 %v3027, 0.0
    %v3084 = vmax.f32 %v2736, 0.0
    %v3085 = vmax.f32 %v2834, 0.0
    %v3086 = vmax.f32 %v2932, 0.0
    %v3087 = vmax.f32 %v3030, 0.0
    %v3088 = vmax.f32 %v2738, 0.0
    %v3089 = vmax.f32 %v2836, 0.0
    %v3090 = vmax.f32 %v2934, 0.0
    %v3091 = vmax.f32 %v3032, 0.0
    %v3092 = vmax.f32 %v2741, 0.0
    %v3093 = vmax.f32 %v2839, 0.0
    %v3094 = vmax.f32 %v2937, 0.0
    %v3095 = vmax.f32 %v3035, 0.0
    %v3096 = vmax.f32 %v2743, 0.0
    %v3097 = vmax.f32 %v2841, 0.0
    %v3098 = vmax.f32 %v2939, 0.0
    %v3099 = vmax.f32 %v3037, 0.0
    %v3100 = vmax.f32 %v2746, 0.0
    %v3101 = vmax.f32 %v2844, 0.0
    %v3102 = vmax.f32 %v2942, 0.0
    %v3103 = vmax.f32 %v3040, 0.0
    %v3104 = vmax.f32 %v2748, 0.0
    %v3105 = vmax.f32 %v2846, 0.0
    %v3106 = vmax.f32 %v2944, 0.0
    %v3107 = vmax.f32 %v3042, 0.0
    %v3108 = vadd.f32 %v3044, %v3045
    %v3109 = vadd.f32 %v3108, %v3046
    %v3110 = vadd.f32 %v3109, %v3047
    %3111 = vadd.xlane.f32.xlu0 %v3110
    %v3112 = vpop.xlane.xlu0 %3111
    %v3113 = vadd.f32 %v3048, %v3049
    %v3114 = vadd.f32 %v3113, %v3050
    %v3115 = vadd.f32 %v3114, %v3051
    %3116 = vadd.xlane.f32.xlu0 %v3115
    %v3117 = vpop.xlane.xlu0 %3116
    %v3118 = vadd.f32 %v3052, %v3053
    %v3119 = vadd.f32 %v3118, %v3054
    %v3120 = vadd.f32 %v3119, %v3055
    %3121 = vadd.xlane.f32.xlu0 %v3120
    %v3122 = vpop.xlane.xlu0 %3121
    %v3123 = vadd.f32 %v3056, %v3057
    %v3124 = vadd.f32 %v3123, %v3058
    %v3125 = vadd.f32 %v3124, %v3059
    %3126 = vadd.xlane.f32.xlu0 %v3125
    %v3127 = vpop.xlane.xlu0 %3126
    %v3128 = vadd.f32 %v3060, %v3061
    %v3129 = vadd.f32 %v3128, %v3062
    %v3130 = vadd.f32 %v3129, %v3063
    %3131 = vadd.xlane.f32.xlu0 %v3130
    %v3132 = vpop.xlane.xlu0 %3131
    %v3133 = vadd.f32 %v3064, %v3065
    %v3134 = vadd.f32 %v3133, %v3066
    %v3135 = vadd.f32 %v3134, %v3067
    %3136 = vadd.xlane.f32.xlu0 %v3135
    %v3137 = vpop.xlane.xlu0 %3136
    %v3138 = vadd.f32 %v3068, %v3069
    %v3139 = vadd.f32 %v3138, %v3070
    %v3140 = vadd.f32 %v3139, %v3071
    %3141 = vadd.xlane.f32.xlu0 %v3140
    %v3142 = vpop.xlane.xlu0 %3141
    %v3143 = vadd.f32 %v3072, %v3073
    %v3144 = vadd.f32 %v3143, %v3074
    %v3145 = vadd.f32 %v3144, %v3075
    %3146 = vadd.xlane.f32.xlu0 %v3145
    %v3147 = vpop.xlane.xlu0 %3146
    %v3148 = vadd.f32 %v3076, %v3077
    %v3149 = vadd.f32 %v3148, %v3078
    %v3150 = vadd.f32 %v3149, %v3079
    %3151 = vadd.xlane.f32.xlu0 %v3150
    %v3152 = vpop.xlane.xlu0 %3151
    %v3153 = vadd.f32 %v3080, %v3081
    %v3154 = vadd.f32 %v3153, %v3082
    %v3155 = vadd.f32 %v3154, %v3083
    %3156 = vadd.xlane.f32.xlu0 %v3155
    %v3157 = vpop.xlane.xlu0 %3156
    %v3158 = vadd.f32 %v3084, %v3085
    %v3159 = vadd.f32 %v3158, %v3086
    %v3160 = vadd.f32 %v3159, %v3087
    %3161 = vadd.xlane.f32.xlu0 %v3160
    %v3162 = vpop.xlane.xlu0 %3161
    %v3163 = vadd.f32 %v3088, %v3089
    %v3164 = vadd.f32 %v3163, %v3090
    %v3165 = vadd.f32 %v3164, %v3091
    %3166 = vadd.xlane.f32.xlu0 %v3165
    %v3167 = vpop.xlane.xlu0 %3166
    %v3168 = vadd.f32 %v3092, %v3093
    %v3169 = vadd.f32 %v3168, %v3094
    %v3170 = vadd.f32 %v3169, %v3095
    %3171 = vadd.xlane.f32.xlu0 %v3170
    %v3172 = vpop.xlane.xlu0 %3171
    %v3173 = vadd.f32 %v3096, %v3097
    %v3174 = vadd.f32 %v3173, %v3098
    %v3175 = vadd.f32 %v3174, %v3099
    %3176 = vadd.xlane.f32.xlu0 %v3175
    %v3177 = vpop.xlane.xlu0 %3176
    %v3178 = vadd.f32 %v3100, %v3101
    %v3179 = vadd.f32 %v3178, %v3102
    %v3180 = vadd.f32 %v3179, %v3103
    %3181 = vadd.xlane.f32.xlu0 %v3180
    %v3182 = vpop.xlane.xlu0 %3181
    %v3183 = vadd.f32 %v3104, %v3105
    %v3184 = vadd.f32 %v3183, %v3106
    %v3185 = vadd.f32 %v3184, %v3107
    %3186 = vadd.xlane.f32.xlu0 %v3185
    %v3187 = vpop.xlane.xlu0 %3186
    %v3188 = vmax.f32 %v3112, 1e-12
    %v3189 = vmax.f32 %v3117, 1e-12
    %v3190 = vmax.f32 %v3122, 1e-12
    %v3191 = vmax.f32 %v3127, 1e-12
    %v3192 = vmax.f32 %v3132, 1e-12
    %v3193 = vmax.f32 %v3137, 1e-12
    %v3194 = vmax.f32 %v3142, 1e-12
    %v3195 = vmax.f32 %v3147, 1e-12
    %v3196 = vmax.f32 %v3152, 1e-12
    %v3197 = vmax.f32 %v3157, 1e-12
    %v3198 = vmax.f32 %v3162, 1e-12
    %v3199 = vmax.f32 %v3167, 1e-12
    %v3200 = vmax.f32 %v3172, 1e-12
    %v3201 = vmax.f32 %v3177, 1e-12
    %v3202 = vmax.f32 %v3182, 1e-12
    %v3203 = vmax.f32 %v3187, 1e-12
    %v3204 = vrcp.pop %v3188
    %v3205 = vrcp.pop %v3189
    %v3206 = vrcp.pop %v3190
    %v3207 = vrcp.pop %v3191
    %v3208 = vrcp.pop %v3192
    %v3209 = vrcp.pop %v3193
    %v3210 = vrcp.pop %v3194
    %v3211 = vrcp.pop %v3195
    %v3212 = vrcp.pop %v3196
    %v3213 = vrcp.pop %v3197
    %v3214 = vrcp.pop %v3198
    %v3215 = vrcp.pop %v3199
    %v3216 = vrcp.pop %v3200
    %v3217 = vrcp.pop %v3201
    %v3218 = vrcp.pop %v3202
    %v3219 = vrcp.pop %v3203
    %v3220 = vmul.f32 %v3188, %v3204
    %v3221 = vmul.f32 %v3189, %v3205
    %v3222 = vmul.f32 %v3190, %v3206
    %v3223 = vmul.f32 %v3191, %v3207
    %v3224 = vmul.f32 %v3192, %v3208
    %v3225 = vmul.f32 %v3193, %v3209
    %v3226 = vmul.f32 %v3194, %v3210
    %v3227 = vmul.f32 %v3195, %v3211
    %v3228 = vmul.f32 %v3196, %v3212
    %v3229 = vmul.f32 %v3197, %v3213
    %v3230 = vmul.f32 %v3198, %v3214
    %v3231 = vmul.f32 %v3199, %v3215
    %v3232 = vmul.f32 %v3200, %v3216
    %v3233 = vmul.f32 %v3201, %v3217
    %v3234 = vmul.f32 %v3202, %v3218
    %v3235 = vmul.f32 %v3203, %v3219
    %v3236 = vsub.f32 2.0, %v3220
    %v3237 = vsub.f32 2.0, %v3221
    %v3238 = vsub.f32 2.0, %v3222
    %v3239 = vsub.f32 2.0, %v3223
    %v3240 = vsub.f32 2.0, %v3224
    %v3241 = vsub.f32 2.0, %v3225
    %v3242 = vsub.f32 2.0, %v3226
    %v3243 = vsub.f32 2.0, %v3227
    %v3244 = vsub.f32 2.0, %v3228
    %v3245 = vsub.f32 2.0, %v3229
    %v3246 = vsub.f32 2.0, %v3230
    %v3247 = vsub.f32 2.0, %v3231
    %v3248 = vsub.f32 2.0, %v3232
    %v3249 = vsub.f32 2.0, %v3233
    %v3250 = vsub.f32 2.0, %v3234
    %v3251 = vsub.f32 2.0, %v3235
    %v3252 = vmul.f32 %v3204, %v3236
    %v3253 = vmul.f32 %v3205, %v3237
    %v3254 = vmul.f32 %v3206, %v3238
    %v3255 = vmul.f32 %v3207, %v3239
    %v3256 = vmul.f32 %v3208, %v3240
    %v3257 = vmul.f32 %v3209, %v3241
    %v3258 = vmul.f32 %v3210, %v3242
    %v3259 = vmul.f32 %v3211, %v3243
    %v3260 = vmul.f32 %v3212, %v3244
    %v3261 = vmul.f32 %v3213, %v3245
    %v3262 = vmul.f32 %v3214, %v3246
    %v3263 = vmul.f32 %v3215, %v3247
    %v3264 = vmul.f32 %v3216, %v3248
    %v3265 = vmul.f32 %v3217, %v3249
    %v3266 = vmul.f32 %v3218, %v3250
    %v3267 = vmul.f32 %v3219, %v3251
    %v3268 = vmul.f32 %v3252, 2000.0
    %v3269 = vmul.f32 %v3253, 2000.0
    %v3270 = vmul.f32 %v3254, 2000.0
    %v3271 = vmul.f32 %v3255, 2000.0
    %v3272 = vmul.f32 %v3256, 2000.0
    %v3273 = vmul.f32 %v3257, 2000.0
    %v3274 = vmul.f32 %v3258, 2000.0
    %v3275 = vmul.f32 %v3259, 2000.0
    %v3276 = vmul.f32 %v3260, 2000.0
    %v3277 = vmul.f32 %v3261, 2000.0
    %v3278 = vmul.f32 %v3262, 2000.0
    %v3279 = vmul.f32 %v3263, 2000.0
    %v3280 = vmul.f32 %v3264, 2000.0
    %v3281 = vmul.f32 %v3265, 2000.0
    %v3282 = vmul.f32 %v3266, 2000.0
    %v3283 = vmul.f32 %v3267, 2000.0
    %v3284 = vmul.f32 %v3044, %v3268
    %v3285 = vmul.f32 %v3045, %v3268
    %v3286 = vmul.f32 %v3046, %v3268
    %v3287 = vmul.f32 %v3047, %v3268
    %v3288 = vmul.f32 %v3048, %v3269
    %v3289 = vmul.f32 %v3049, %v3269
    %v3290 = vmul.f32 %v3050, %v3269
    %v3291 = vmul.f32 %v3051, %v3269
    %v3292 = vmul.f32 %v3052, %v3270
    %v3293 = vmul.f32 %v3053, %v3270
    %v3294 = vmul.f32 %v3054, %v3270
    %v3295 = vmul.f32 %v3055, %v3270
    %v3296 = vmul.f32 %v3056, %v3271
    %v3297 = vmul.f32 %v3057, %v3271
    %v3298 = vmul.f32 %v3058, %v3271
    %v3299 = vmul.f32 %v3059, %v3271
    %v3300 = vmul.f32 %v3060, %v3272
    %v3301 = vmul.f32 %v3061, %v3272
    %v3302 = vmul.f32 %v3062, %v3272
    %v3303 = vmul.f32 %v3063, %v3272
    %v3304 = vmul.f32 %v3064, %v3273
    %v3305 = vmul.f32 %v3065, %v3273
    %v3306 = vmul.f32 %v3066, %v3273
    %v3307 = vmul.f32 %v3067, %v3273
    %v3308 = vmul.f32 %v3068, %v3274
    %v3309 = vmul.f32 %v3069, %v3274
    %v3310 = vmul.f32 %v3070, %v3274
    %v3311 = vmul.f32 %v3071, %v3274
    %v3312 = vmul.f32 %v3072, %v3275
    %v3313 = vmul.f32 %v3073, %v3275
    %v3314 = vmul.f32 %v3074, %v3275
    %v3315 = vmul.f32 %v3075, %v3275
    %v3316 = vmul.f32 %v3076, %v3276
    %v3317 = vmul.f32 %v3077, %v3276
    %v3318 = vmul.f32 %v3078, %v3276
    %v3319 = vmul.f32 %v3079, %v3276
    %v3320 = vmul.f32 %v3080, %v3277
    %v3321 = vmul.f32 %v3081, %v3277
    %v3322 = vmul.f32 %v3082, %v3277
    %v3323 = vmul.f32 %v3083, %v3277
    %v3324 = vmul.f32 %v3084, %v3278
    %v3325 = vmul.f32 %v3085, %v3278
    %v3326 = vmul.f32 %v3086, %v3278
    %v3327 = vmul.f32 %v3087, %v3278
    %v3328 = vmul.f32 %v3088, %v3279
    %v3329 = vmul.f32 %v3089, %v3279
    %v3330 = vmul.f32 %v3090, %v3279
    %v3331 = vmul.f32 %v3091, %v3279
    %v3332 = vmul.f32 %v3092, %v3280
    %v3333 = vmul.f32 %v3093, %v3280
    %v3334 = vmul.f32 %v3094, %v3280
    %v3335 = vmul.f32 %v3095, %v3280
    %v3336 = vmul.f32 %v3096, %v3281
    %v3337 = vmul.f32 %v3097, %v3281
    %v3338 = vmul.f32 %v3098, %v3281
    %v3339 = vmul.f32 %v3099, %v3281
    %v3340 = vmul.f32 %v3100, %v3282
    %v3341 = vmul.f32 %v3101, %v3282
    %v3342 = vmul.f32 %v3102, %v3282
    %v3343 = vmul.f32 %v3103, %v3282
    %v3344 = vmul.f32 %v3104, %v3283
    %v3345 = vmul.f32 %v3105, %v3283
    %v3346 = vmul.f32 %v3106, %v3283
    %v3347 = vmul.f32 %v3107, %v3283
    %3348 = vst [vmem:[#allocation14] sm:$0xff] %v3284
    %3349 = vst [vmem:[#allocation14 + $0x8] sm:$0xff] %v3285
    %3350 = vst [vmem:[#allocation14 + $0x10] sm:$0xff] %v3286
    %3351 = vst [vmem:[#allocation14 + $0x18] sm:$0xff] %v3287
    %3352 = vst [vmem:[#allocation14 + $0x20] sm:$0xff] %v3288
    %3353 = vst [vmem:[#allocation14 + $0x28] sm:$0xff] %v3289
    %3354 = vst [vmem:[#allocation14 + $0x30] sm:$0xff] %v3290
    %3355 = vst [vmem:[#allocation14 + $0x38] sm:$0xff] %v3291
    %3356 = vst [vmem:[#allocation14 + $0x40] sm:$0xff] %v3292
    %3357 = vst [vmem:[#allocation14 + $0x48] sm:$0xff] %v3293
    %3358 = vst [vmem:[#allocation14 + $0x50] sm:$0xff] %v3294
    %3359 = vst [vmem:[#allocation14 + $0x58] sm:$0xff] %v3295
    %3360 = vst [vmem:[#allocation14 + $0x60] sm:$0xff] %v3296
    %3361 = vst [vmem:[#allocation14 + $0x68] sm:$0xff] %v3297
    %3362 = vst [vmem:[#allocation14 + $0x70] sm:$0xff] %v3298
    %3363 = vst [vmem:[#allocation14 + $0x78] sm:$0xff] %v3299
    %3364 = vst [vmem:[#allocation14 + $0x80] sm:$0xff] %v3300
    %3365 = vst [vmem:[#allocation14 + $0x88] sm:$0xff] %v3301
    %3366 = vst [vmem:[#allocation14 + $0x90] sm:$0xff] %v3302
    %3367 = vst [vmem:[#allocation14 + $0x98] sm:$0xff] %v3303
    %3368 = vst [vmem:[#allocation14 + $0xa0] sm:$0xff] %v3304
    %3369 = vst [vmem:[#allocation14 + $0xa8] sm:$0xff] %v3305
    %3370 = vst [vmem:[#allocation14 + $0xb0] sm:$0xff] %v3306
    %3371 = vst [vmem:[#allocation14 + $0xb8] sm:$0xff] %v3307
    %3372 = vst [vmem:[#allocation14 + $0xc0] sm:$0xff] %v3308
    %3373 = vst [vmem:[#allocation14 + $0xc8] sm:$0xff] %v3309
    %3374 = vst [vmem:[#allocation14 + $0xd0] sm:$0xff] %v3310
    %3375 = vst [vmem:[#allocation14 + $0xd8] sm:$0xff] %v3311
    %3376 = vst [vmem:[#allocation14 + $0xe0] sm:$0xff] %v3312
    %3377 = vst [vmem:[#allocation14 + $0xe8] sm:$0xff] %v3313
    %3378 = vst [vmem:[#allocation14 + $0xf0] sm:$0xff] %v3314
    %3379 = vst [vmem:[#allocation14 + $0xf8] sm:$0xff] %v3315
    %3380 = vst [vmem:[#allocation14 + $0x100] sm:$0xff] %v3316
    %3381 = vst [vmem:[#allocation14 + $0x108] sm:$0xff] %v3317
    %3382 = vst [vmem:[#allocation14 + $0x110] sm:$0xff] %v3318
    %3383 = vst [vmem:[#allocation14 + $0x118] sm:$0xff] %v3319
    %3384 = vst [vmem:[#allocation14 + $0x120] sm:$0xff] %v3320
    %3385 = vst [vmem:[#allocation14 + $0x128] sm:$0xff] %v3321
    %3386 = vst [vmem:[#allocation14 + $0x130] sm:$0xff] %v3322
    %3387 = vst [vmem:[#allocation14 + $0x138] sm:$0xff] %v3323
    %3388 = vst [vmem:[#allocation14 + $0x140] sm:$0xff] %v3324
    %3389 = vst [vmem:[#allocation14 + $0x148] sm:$0xff] %v3325
    %3390 = vst [vmem:[#allocation14 + $0x150] sm:$0xff] %v3326
    %3391 = vst [vmem:[#allocation14 + $0x158] sm:$0xff] %v3327
    %3392 = vst [vmem:[#allocation14 + $0x160] sm:$0xff] %v3328
    %3393 = vst [vmem:[#allocation14 + $0x168] sm:$0xff] %v3329
    %3394 = vst [vmem:[#allocation14 + $0x170] sm:$0xff] %v3330
    %3395 = vst [vmem:[#allocation14 + $0x178] sm:$0xff] %v3331
    %3396 = vst [vmem:[#allocation14 + $0x180] sm:$0xff] %v3332
    %3397 = vst [vmem:[#allocation14 + $0x188] sm:$0xff] %v3333
    %3398 = vst [vmem:[#allocation14 + $0x190] sm:$0xff] %v3334
    %3399 = vst [vmem:[#allocation14 + $0x198] sm:$0xff] %v3335
    %3400 = vst [vmem:[#allocation14 + $0x1a0] sm:$0xff] %v3336
    %3401 = vst [vmem:[#allocation14 + $0x1a8] sm:$0xff] %v3337
    %3402 = vst [vmem:[#allocation14 + $0x1b0] sm:$0xff] %v3338
    %3403 = vst [vmem:[#allocation14 + $0x1b8] sm:$0xff] %v3339
    %3404 = vst [vmem:[#allocation14 + $0x1c0] sm:$0xff] %v3340
    %3405 = vst [vmem:[#allocation14 + $0x1c8] sm:$0xff] %v3341
    %3406 = vst [vmem:[#allocation14 + $0x1d0] sm:$0xff] %v3342
    %3407 = vst [vmem:[#allocation14 + $0x1d8] sm:$0xff] %v3343
    %3408 = vst [vmem:[#allocation14 + $0x1e0] sm:$0xff] %v3344
    %3409 = vst [vmem:[#allocation14 + $0x1e8] sm:$0xff] %v3345
    %3410 = vst [vmem:[#allocation14 + $0x1f0] sm:$0xff] %v3346
    %3411 = vst [vmem:[#allocation14 + $0x1f8] sm:$0xff] %v3347
    // Predicated region
    $region70: #{tpu_custom_call.1} parent=1 // pred_check
      _
    $region71: #{tpu_custom_call.1} parent=1 // pred_check_branch
      %3413 = sbr.rel (0) target = $region73
    $region72: #{tpu_custom_call.1} parent=1 // pred_region
      %3415 = vsyncadd [#allocation4], 0
      %s3416 = sshll.u32 [#allocation14], 4
      %s3417 = int_to_ptr.vmem [resolvable:$true] %s3416
      %s3418 = sshll.u32 %s10, 4
      %s3419 = int_to_ptr.hbm [resolvable:$true] %s3418
      %3424 = dma.vmem_to_hbm [thread:$0]  %s3417, 8192, %s3419, [#allocation4], 512, 512, 32
    $region73: #{tpu_custom_call.1} parent=1 // pred_fallthru
      _
    // Predicated region
    $region74: #{tpu_custom_call.1} parent=1 // pred_check
      _
    $region75: #{tpu_custom_call.1} parent=1 // pred_check_branch
      %3426 = sbr.rel (0) target = $region77
    $region76: #{tpu_custom_call.1} parent=1 // pred_region
      %3428 = dma.done [#allocation4], 8192
    $region77: #{tpu_custom_call.1} parent=1 // pred_fallthru
      _
    %3429 = vsyncpa [#allocation3], 1
    %3430 = vsyncpa [#allocation6], 1
    %3431 = vsyncpa [#allocation9], 1
    %3432 = vsyncpa [#allocation12], 1
    %3433 = vsyncpa [#allocation4], 1

</llo_original>
